<compile_context>
chip_gen: v7x
topology: tpu7x:2x2x1
jax: 0.10.0
libtpu: 0.0.40
codegen_flags: <defaults>
</compile_context>

<pallas_src>
import jax
import jax.numpy as jnp
from jax.experimental import pallas as pl
from jax.experimental.pallas import tpu as pltpu

ZP_DIM = 3
ZS_DIM = 5
Z_DIM = ZP_DIM + ZS_DIM
HIDDEN = 512
OUT_DIM = 784          # 28*28 (true output width)
OUT_PAD = 896          # 7*128, lane-dense padded output width


def _round_up(x, m):
    return ((x + m - 1) // m) * m


def _swish(x):
    # Swish: x * sigmoid(x)  (https://arxiv.org/abs/1710.05941)
    return x * jax.nn.sigmoid(x)


def image_decoder_kernel(zp_ref, zs_ref,
                         w1p_ref, w1s_ref, b1_ref,
                         w2_ref, b2_ref,
                         w3_ref, b3_ref,
                         w4_ref, b4_ref,
                         out_ref):
    """One batch tile; all four layers fused.

    h = swish(zP @ W1[:3] + zS @ W1[3:] + b1)
    h = swish(h @ W2 + b2)
    h = swish(h @ W3 + b3)
    out = h @ W4pad + b4pad        (padded columns are zero)
    Weights are bf16, accumulation and activations are f32.
    """
    zp = zp_ref[...].astype(jnp.bfloat16)
    zs = zs_ref[...].astype(jnp.bfloat16)

    h = (jnp.dot(zp, w1p_ref[...], preferred_element_type=jnp.float32)
         + jnp.dot(zs, w1s_ref[...], preferred_element_type=jnp.float32)
         + b1_ref[...])
    h = _swish(h)

    h = jnp.dot(h.astype(jnp.bfloat16), w2_ref[...],
                preferred_element_type=jnp.float32) + b2_ref[...]
    h = _swish(h)

    h = jnp.dot(h.astype(jnp.bfloat16), w3_ref[...],
                preferred_element_type=jnp.float32) + b3_ref[...]
    h = _swish(h)

    out = jnp.dot(h.astype(jnp.bfloat16), w4_ref[...],
                  preferred_element_type=jnp.float32) + b4_ref[...]
    out_ref[...] = out.astype(out_ref.dtype)


def init_params(key):
    """Deterministic synthetic f32 weights (shapes match the PyTorch module,
    stored as [in_features, out_features] so the kernel computes x @ W + b)."""
    dims = [(Z_DIM, HIDDEN), (HIDDEN, HIDDEN), (HIDDEN, HIDDEN), (HIDDEN, OUT_DIM)]
    params = []
    keys = jax.random.split(key, 2 * len(dims))
    for i, (fan_in, fan_out) in enumerate(dims):
        bound = 1.0 / jnp.sqrt(jnp.float32(fan_in))
        w = jax.random.uniform(keys[2 * i], (fan_in, fan_out),
                               dtype=jnp.float32, minval=-bound, maxval=bound)
        b = jax.random.uniform(keys[2 * i + 1], (1, fan_out),
                               dtype=jnp.float32, minval=-bound, maxval=bound)
        params += [w, b]
    return tuple(params)


def prepare_kernel_params(params):
    """One-time prep: bf16 weights, split W1 by input, pad layer-4 to OUT_PAD."""
    w1, b1, w2, b2, w3, b3, w4, b4 = params
    w1p = w1[:ZP_DIM, :].astype(jnp.bfloat16)
    w1s = w1[ZP_DIM:, :].astype(jnp.bfloat16)
    w2b = w2.astype(jnp.bfloat16)
    w3b = w3.astype(jnp.bfloat16)
    # zero-padded columns keep the PyTorch-equivalent result in the first 784 cols
    w4p = jnp.zeros((HIDDEN, OUT_PAD), jnp.bfloat16).at[:, :OUT_DIM].set(
        w4.astype(jnp.bfloat16))
    b4p = jnp.zeros((1, OUT_PAD), jnp.float32).at[:, :OUT_DIM].set(
        b4.astype(jnp.float32))
    return (w1p, w1s, b1.astype(jnp.float32),
            w2b, b2.astype(jnp.float32),
            w3b, b3.astype(jnp.float32),
            w4p, b4p)


def image_decoder_forward(zPrivate, zShared, kparams):
    B = zPrivate.shape[0]

    # Batch tile: 256 for MXU-shaped M at large batch, else a small 8-aligned tile.
    tile_m = 256 if B >= 256 else max(8, _round_up(B, 8))
    b_pad = _round_up(B, tile_m)

    zp = jnp.zeros((b_pad, ZP_DIM), jnp.float32).at[:B].set(
        zPrivate.astype(jnp.float32))
    zs = jnp.zeros((b_pad, ZS_DIM), jnp.float32).at[:B].set(
        zShared.astype(jnp.float32))

    grid = (b_pad // tile_m,)

    def row_spec(feat):                       # streamed per-tile operands
        return pl.BlockSpec((tile_m, feat), lambda i: (i, 0))

    def const_spec(shape):                    # weights/biases: resident, DMA'd once
        return pl.BlockSpec(shape, lambda i: (0, 0))

    in_specs = [
        row_spec(ZP_DIM), row_spec(ZS_DIM),
        const_spec((ZP_DIM, HIDDEN)), const_spec((ZS_DIM, HIDDEN)),
        const_spec((1, HIDDEN)),
        const_spec((HIDDEN, HIDDEN)), const_spec((1, HIDDEN)),
        const_spec((HIDDEN, HIDDEN)), const_spec((1, HIDDEN)),
        const_spec((HIDDEN, OUT_PAD)), const_spec((1, OUT_PAD)),
    ]
    out_spec = pl.BlockSpec((tile_m, OUT_PAD), lambda i: (i, 0))

    # Advisory cost hint for XLA's scheduler.
    weight_bytes = 2 * (Z_DIM * HIDDEN + 2 * HIDDEN * HIDDEN + HIDDEN * OUT_PAD)
    bias_bytes = 4 * (3 * HIDDEN + OUT_PAD)
    io_bytes = b_pad * 4 * (Z_DIM + OUT_PAD)
    cost = pl.CostEstimate(
        flops=2 * b_pad * (Z_DIM * HIDDEN + 2 * HIDDEN * HIDDEN + HIDDEN * OUT_PAD),
        transcendentals=3 * b_pad * HIDDEN,
        bytes_accessed=weight_bytes + bias_bytes + io_bytes,
    )

    out_pad = pl.pallas_call(
        image_decoder_kernel,
        out_shape=jax.ShapeDtypeStruct((b_pad, OUT_PAD), jnp.float32),
        grid_spec=pltpu.PrefetchScalarGridSpec(
            num_scalar_prefetch=0,
            grid=grid,
            in_specs=in_specs,
            out_specs=out_spec,
        ),
        compiler_params=pltpu.CompilerParams(
            dimension_semantics=("parallel",)),   # shards batch over v7x's 2 TCs
        cost_estimate=cost,
    )(zp, zs, *kparams)

    return out_pad[:B, :OUT_DIM]


def _reference_forward(zPrivate, zShared, params):
    """Plain-JAX f32 reference mirroring the PyTorch forward."""
    w1, b1, w2, b2, w3, b3, w4, b4 = params
    z = jnp.concatenate([zPrivate, zShared], axis=1)
    h = _swish(z @ w1 + b1)
    h = _swish(h @ w2 + b2)
    h = _swish(h @ w3 + b3)
    return h @ w4 + b4


if __name__ == "__main__":
    key = jax.random.PRNGKey(0)
    k_params, k_zp, k_zs = jax.random.split(key, 3)

    B = 2
    params = init_params(k_params)
    kparams = prepare_kernel_params(params)
    zPrivate = jax.random.normal(k_zp, (B, ZP_DIM), dtype=jnp.float32)
    zShared = jax.random.normal(k_zs, (B, ZS_DIM), dtype=jnp.float32)

    out = image_decoder_forward(zPrivate, zShared, kparams)
    out = jax.block_until_ready(out)

    ref = _reference_forward(zPrivate, zShared, params)
    assert out.shape == (B, OUT_DIM)
    # Looser tolerance: weights are bf16 in the kernel, f32 in the reference.
    assert jnp.allclose(out, ref, atol=5e-2, rtol=5e-2), (
        float(jnp.max(jnp.abs(out - ref))))

    print("KERNEL_OK")
</pallas_src>

<mosaic_0001>
module attributes {stable_mosaic.version = 11 : i64} {
  func.func @image_decoder_kernel(%arg0: i32, %arg1: memref<8x3xf32, #tpu.memory_space<vmem>>, %arg2: memref<8x5xf32, #tpu.memory_space<vmem>>, %arg3: memref<3x512xbf16, #tpu.memory_space<vmem>>, %arg4: memref<5x512xbf16, #tpu.memory_space<vmem>>, %arg5: memref<1x512xf32, #tpu.memory_space<vmem>>, %arg6: memref<512x512xbf16, #tpu.memory_space<vmem>>, %arg7: memref<1x512xf32, #tpu.memory_space<vmem>>, %arg8: memref<512x512xbf16, #tpu.memory_space<vmem>>, %arg9: memref<1x512xf32, #tpu.memory_space<vmem>>, %arg10: memref<512x896xbf16, #tpu.memory_space<vmem>>, %arg11: memref<1x896xf32, #tpu.memory_space<vmem>>, %arg12: memref<8x896xf32, #tpu.memory_space<vmem>>) attributes {dimension_semantics = [#tpu.dimension_semantics<parallel>], iteration_bounds = array<i64: 1>, scalar_prefetch = 0 : i64, scratch_operands = 0 : i64, tpu.core_type = #tpu.core_type<tc>, window_params = [{transform_indices = @transform_0, window_bounds = array<i64: 8, 3>}, {transform_indices = @transform_1, window_bounds = array<i64: 8, 5>}, {pipeline_mode = #tpu.pipeline_mode<synchronous>, transform_indices = @transform_2, window_bounds = array<i64: 3, 512>}, {pipeline_mode = #tpu.pipeline_mode<synchronous>, transform_indices = @transform_3, window_bounds = array<i64: 5, 512>}, {pipeline_mode = #tpu.pipeline_mode<synchronous>, transform_indices = @transform_4, window_bounds = array<i64: 1, 512>}, {pipeline_mode = #tpu.pipeline_mode<synchronous>, transform_indices = @transform_5, window_bounds = array<i64: 512, 512>}, {pipeline_mode = #tpu.pipeline_mode<synchronous>, transform_indices = @transform_6, window_bounds = array<i64: 1, 512>}, {pipeline_mode = #tpu.pipeline_mode<synchronous>, transform_indices = @transform_7, window_bounds = array<i64: 512, 512>}, {pipeline_mode = #tpu.pipeline_mode<synchronous>, transform_indices = @transform_8, window_bounds = array<i64: 1, 512>}, {pipeline_mode = #tpu.pipeline_mode<synchronous>, transform_indices = @transform_9, window_bounds = array<i64: 512, 896>}, {pipeline_mode = #tpu.pipeline_mode<synchronous>, transform_indices = @transform_10, window_bounds = array<i64: 1, 896>}, {transform_indices = @transform_11, window_bounds = array<i64: 8, 896>}]} {
    %c0 = arith.constant 0 : index
    %c0_0 = arith.constant 0 : index
    %0 = vector.load %arg1[%c0, %c0_0] : memref<8x3xf32, #tpu.memory_space<vmem>>, vector<8x3xf32>
    %1 = arith.truncf %0 : vector<8x3xf32> to vector<8x3xbf16>
    %c0_1 = arith.constant 0 : index
    %c0_2 = arith.constant 0 : index
    %2 = vector.load %arg2[%c0_1, %c0_2] : memref<8x5xf32, #tpu.memory_space<vmem>>, vector<8x5xf32>
    %3 = arith.truncf %2 : vector<8x5xf32> to vector<8x5xbf16>
    %c0_3 = arith.constant 0 : index
    %c0_4 = arith.constant 0 : index
    %4 = vector.load %arg3[%c0_3, %c0_4] : memref<3x512xbf16, #tpu.memory_space<vmem>>, vector<3x512xbf16>
    %cst = arith.constant dense<0.000000e+00> : vector<8x512xf32>
    %5 = tpu.matmul %1, %4, %cst {dimension_numbers = #tpu.dot_dimension_numbers<[1], [0], [0], [1], [0, 0, 1, 1], [], []>} : vector<8x3xbf16>, vector<3x512xbf16>, vector<8x512xf32> -> vector<8x512xf32>
    %c0_5 = arith.constant 0 : index
    %c0_6 = arith.constant 0 : index
    %6 = vector.load %arg4[%c0_5, %c0_6] : memref<5x512xbf16, #tpu.memory_space<vmem>>, vector<5x512xbf16>
    %cst_7 = arith.constant dense<0.000000e+00> : vector<8x512xf32>
    %7 = tpu.matmul %3, %6, %cst_7 {dimension_numbers = #tpu.dot_dimension_numbers<[1], [0], [0], [1], [0, 0, 1, 1], [], []>} : vector<8x5xbf16>, vector<5x512xbf16>, vector<8x512xf32> -> vector<8x512xf32>
    %8 = arith.addf %5, %7 : vector<8x512xf32>
    %c0_8 = arith.constant 0 : index
    %c0_9 = arith.constant 0 : index
    %9 = vector.load %arg5[%c0_8, %c0_9] : memref<1x512xf32, #tpu.memory_space<vmem>>, vector<1x512xf32>
    %10 = vector.broadcast %9 : vector<1x512xf32> to vector<8x512xf32>
    %11 = arith.addf %8, %10 : vector<8x512xf32>
    %12 = arith.negf %11 : vector<8x512xf32>
    %13 = math.exp %12 : vector<8x512xf32>
    %cst_10 = arith.constant 1.000000e+00 : f32
    %14 = vector.broadcast %cst_10 : f32 to vector<8x512xf32>
    %15 = arith.addf %14, %13 : vector<8x512xf32>
    %16 = arith.divf %14, %15 : vector<8x512xf32>
    %17 = arith.mulf %11, %16 : vector<8x512xf32>
    %18 = arith.truncf %17 : vector<8x512xf32> to vector<8x512xbf16>
    %c0_11 = arith.constant 0 : index
    %c0_12 = arith.constant 0 : index
    %19 = vector.load %arg6[%c0_11, %c0_12] : memref<512x512xbf16, #tpu.memory_space<vmem>>, vector<512x512xbf16>
    %cst_13 = arith.constant dense<0.000000e+00> : vector<8x512xf32>
    %20 = tpu.matmul %18, %19, %cst_13 {dimension_numbers = #tpu.dot_dimension_numbers<[1], [0], [0], [1], [0, 0, 1, 1], [], []>} : vector<8x512xbf16>, vector<512x512xbf16>, vector<8x512xf32> -> vector<8x512xf32>
    %c0_14 = arith.constant 0 : index
    %c0_15 = arith.constant 0 : index
    %21 = vector.load %arg7[%c0_14, %c0_15] : memref<1x512xf32, #tpu.memory_space<vmem>>, vector<1x512xf32>
    %22 = vector.broadcast %21 : vector<1x512xf32> to vector<8x512xf32>
    %23 = arith.addf %20, %22 : vector<8x512xf32>
    %24 = arith.negf %23 : vector<8x512xf32>
    %25 = math.exp %24 : vector<8x512xf32>
    %cst_16 = arith.constant 1.000000e+00 : f32
    %26 = vector.broadcast %cst_16 : f32 to vector<8x512xf32>
    %27 = arith.addf %26, %25 : vector<8x512xf32>
    %28 = arith.divf %26, %27 : vector<8x512xf32>
    %29 = arith.mulf %23, %28 : vector<8x512xf32>
    %30 = arith.truncf %29 : vector<8x512xf32> to vector<8x512xbf16>
    %c0_17 = arith.constant 0 : index
    %c0_18 = arith.constant 0 : index
    %31 = vector.load %arg8[%c0_17, %c0_18] : memref<512x512xbf16, #tpu.memory_space<vmem>>, vector<512x512xbf16>
    %cst_19 = arith.constant dense<0.000000e+00> : vector<8x512xf32>
    %32 = tpu.matmul %30, %31, %cst_19 {dimension_numbers = #tpu.dot_dimension_numbers<[1], [0], [0], [1], [0, 0, 1, 1], [], []>} : vector<8x512xbf16>, vector<512x512xbf16>, vector<8x512xf32> -> vector<8x512xf32>
    %c0_20 = arith.constant 0 : index
    %c0_21 = arith.constant 0 : index
    %33 = vector.load %arg9[%c0_20, %c0_21] : memref<1x512xf32, #tpu.memory_space<vmem>>, vector<1x512xf32>
    %34 = vector.broadcast %33 : vector<1x512xf32> to vector<8x512xf32>
    %35 = arith.addf %32, %34 : vector<8x512xf32>
    %36 = arith.negf %35 : vector<8x512xf32>
    %37 = math.exp %36 : vector<8x512xf32>
    %cst_22 = arith.constant 1.000000e+00 : f32
    %38 = vector.broadcast %cst_22 : f32 to vector<8x512xf32>
    %39 = arith.addf %38, %37 : vector<8x512xf32>
    %40 = arith.divf %38, %39 : vector<8x512xf32>
    %41 = arith.mulf %35, %40 : vector<8x512xf32>
    %42 = arith.truncf %41 : vector<8x512xf32> to vector<8x512xbf16>
    %c0_23 = arith.constant 0 : index
    %c0_24 = arith.constant 0 : index
    %43 = vector.load %arg10[%c0_23, %c0_24] : memref<512x896xbf16, #tpu.memory_space<vmem>>, vector<512x896xbf16>
    %cst_25 = arith.constant dense<0.000000e+00> : vector<8x896xf32>
    %44 = tpu.matmul %42, %43, %cst_25 {dimension_numbers = #tpu.dot_dimension_numbers<[1], [0], [0], [1], [0, 0, 1, 1], [], []>} : vector<8x512xbf16>, vector<512x896xbf16>, vector<8x896xf32> -> vector<8x896xf32>
    %c0_26 = arith.constant 0 : index
    %c0_27 = arith.constant 0 : index
    %45 = vector.load %arg11[%c0_26, %c0_27] : memref<1x896xf32, #tpu.memory_space<vmem>>, vector<1x896xf32>
    %46 = vector.broadcast %45 : vector<1x896xf32> to vector<8x896xf32>
    %47 = arith.addf %44, %46 : vector<8x896xf32>
    %c0_28 = arith.constant 0 : index
    %c0_29 = arith.constant 0 : index
    %48 = vector.load %arg12[%c0_28, %c0_29] : memref<8x896xf32, #tpu.memory_space<vmem>>, vector<8x896xf32>
    tpu.vector_store %arg12[%c0_28, %c0_29], %47 {strides = array<i32>} : memref<8x896xf32, #tpu.memory_space<vmem>>, vector<8x896xf32>,
    return
  }
  func.func @transform_0(%arg0: i32) -> (i32, i32) {
    %c0_i32 = arith.constant 0 : i32
    %c0_i32_0 = arith.constant 0 : i32
    return %arg0, %c0_i32 : i32, i32
  }
  func.func @transform_1(%arg0: i32) -> (i32, i32) {
    %c0_i32 = arith.constant 0 : i32
    %c0_i32_0 = arith.constant 0 : i32
    return %arg0, %c0_i32 : i32, i32
  }
  func.func @transform_2(%arg0: i32) -> (i32, i32) {
    %c0_i32 = arith.constant 0 : i32
    %c0_i32_0 = arith.constant 0 : i32
    %c0_i32_1 = arith.constant 0 : i32
    return %c0_i32, %c0_i32_0 : i32, i32
  }
  func.func @transform_3(%arg0: i32) -> (i32, i32) {
    %c0_i32 = arith.constant 0 : i32
    %c0_i32_0 = arith.constant 0 : i32
    %c0_i32_1 = arith.constant 0 : i32
    return %c0_i32, %c0_i32_0 : i32, i32
  }
  func.func @transform_4(%arg0: i32) -> (i32, i32) {
    %c0_i32 = arith.constant 0 : i32
    %c0_i32_0 = arith.constant 0 : i32
    %c0_i32_1 = arith.constant 0 : i32
    return %c0_i32, %c0_i32_0 : i32, i32
  }
  func.func @transform_5(%arg0: i32) -> (i32, i32) {
    %c0_i32 = arith.constant 0 : i32
    %c0_i32_0 = arith.constant 0 : i32
    %c0_i32_1 = arith.constant 0 : i32
    return %c0_i32, %c0_i32_0 : i32, i32
  }
  func.func @transform_6(%arg0: i32) -> (i32, i32) {
    %c0_i32 = arith.constant 0 : i32
    %c0_i32_0 = arith.constant 0 : i32
    %c0_i32_1 = arith.constant 0 : i32
    return %c0_i32, %c0_i32_0 : i32, i32
  }
  func.func @transform_7(%arg0: i32) -> (i32, i32) {
    %c0_i32 = arith.constant 0 : i32
    %c0_i32_0 = arith.constant 0 : i32
    %c0_i32_1 = arith.constant 0 : i32
    return %c0_i32, %c0_i32_0 : i32, i32
  }
  func.func @transform_8(%arg0: i32) -> (i32, i32) {
    %c0_i32 = arith.constant 0 : i32
    %c0_i32_0 = arith.constant 0 : i32
    %c0_i32_1 = arith.constant 0 : i32
    return %c0_i32, %c0_i32_0 : i32, i32
  }
  func.func @transform_9(%arg0: i32) -> (i32, i32) {
    %c0_i32 = arith.constant 0 : i32
    %c0_i32_0 = arith.constant 0 : i32
    %c0_i32_1 = arith.constant 0 : i32
    return %c0_i32, %c0_i32_0 : i32, i32
  }
  func.func @transform_10(%arg0: i32) -> (i32, i32) {
    %c0_i32 = arith.constant 0 : i32
    %c0_i32_0 = arith.constant 0 : i32
    %c0_i32_1 = arith.constant 0 : i32
    return %c0_i32, %c0_i32_0 : i32, i32
  }
  func.func @transform_11(%arg0: i32) -> (i32, i32) {
    %c0_i32 = arith.constant 0 : i32
    %c0_i32_0 = arith.constant 0 : i32
    return %arg0, %c0_i32 : i32, i32
  }
}

</mosaic_0001>

<llo_original>
// kernel: tpu_custom_call.1
$region0: #{tpu_custom_call.1}
  #allocation0 [shape = 'u32[]', space=smem, size = 0x4, offset = 0x4, fixed_abs, tag = 'smem constant byte address 0x4 - core index']
  #allocation1 [shape = 'u32[144,128]{1,0:T(1,128)}', space=vmem, size = 0x12000, scoped, tag = 'internal scratch']
  %s0 = inlined_call_operand.vmem [shape: f32[8,3], index: 0, kind: input, shape index: {}]
  %s1 = inlined_call_operand.hbm [shape: f32[8,5], index: 1, kind: input, shape index: {}]
  %s2 = inlined_call_operand.hbm [shape: bf16[3,512], index: 2, kind: input, shape index: {}]
  %s3 = inlined_call_operand.vmem [shape: bf16[5,512], index: 3, kind: input, shape index: {}]
  %s4 = inlined_call_operand.vmem [shape: f32[1,512], index: 4, kind: input, shape index: {}]
  %s5 = inlined_call_operand.hbm [shape: bf16[512,512], index: 5, kind: input, shape index: {}]
  %s6 = inlined_call_operand.vmem [shape: f32[1,512], index: 6, kind: input, shape index: {}]
  %s7 = inlined_call_operand.hbm [shape: bf16[512,512], index: 7, kind: input, shape index: {}]
  %s8 = inlined_call_operand.vmem [shape: f32[1,512], index: 8, kind: input, shape index: {}]
  %s9 = inlined_call_operand.hbm [shape: bf16[512,896], index: 9, kind: input, shape index: {}]
  %s10 = inlined_call_operand.vmem [shape: f32[1,896], index: 10, kind: input, shape index: {}]
  %s11 = inlined_call_operand.hbm [shape: f32[8,896], index: 11, kind: output, shape index: {}]
  %s12 = sld [smem:[#allocation0]]
  $region74: #{tpu_custom_call.1} parent=0
    _
  %s14 = ssub.s32 1, %s12
  %s15 = scalar_select 0, %s14, %s12
  $region1: #{tpu_custom_call.1} parent=0
    #allocation2 [shape = 'u8[4096]{0}', space=vmem, size = 0x1000, scoped, tag = 'input window, operand 1, single buffered']
    #allocation3 [shape = 's32[1]{0}', space=sflag, size = 0x4, scoped, tag = 'scoped memory for tpu_custom_call.1']
    #allocation4 [shape = 's32[1]{0}', space=sflag, size = 0x4, scoped, tag = 'scoped memory for tpu_custom_call.1']
    #allocation5 [shape = 'u8[4096]{0}', space=vmem, size = 0x1000, scoped, tag = 'input window, operand 2, single buffered']
    #allocation6 [shape = 's32[1]{0}', space=sflag, size = 0x4, scoped, tag = 'scoped memory for tpu_custom_call.1']
    #allocation7 [shape = 'u8[524288]{0}', space=vmem, size = 0x80000, scoped, tag = 'input window, operand 5, single buffered']
    #allocation8 [shape = 'u8[524288]{0}', space=vmem, size = 0x80000, scoped, tag = 'input window, operand 7, single buffered']
    #allocation9 [shape = 's32[1]{0}', space=sflag, size = 0x4, scoped, tag = 'scoped memory for tpu_custom_call.1']
    #allocation10 [shape = 'u8[917504]{0}', space=vmem, size = 0xe0000, scoped, tag = 'input window, operand 9, single buffered']
    #allocation11 [shape = 'u8[28672]{0}', space=vmem, size = 0x7000, scoped, tag = 'output window, operand 0, single buffered']
    %16 = vsyncpa [#allocation3], 0
    %17 = vsyncpa [#allocation6], 0
    %18 = vsyncpa [#allocation9], 0
    %19 = vsyncpa [#allocation4], 0
    // Predicated region
    $region2: #{tpu_custom_call.1} parent=1 // pred_check
      _
    $region3: #{tpu_custom_call.1} parent=1 // pred_check_branch
      %21 = sbr.rel (0) target = $region5
    $region4: #{tpu_custom_call.1} parent=1 // pred_region
      _
    $region5: #{tpu_custom_call.1} parent=1 // pred_fallthru
      _
    // Predicated region
    $region6: #{tpu_custom_call.1} parent=1 // pred_check
      _
    $region7: #{tpu_custom_call.1} parent=1 // pred_check_branch
      %23 = sbr.rel (0) target = $region9
    $region8: #{tpu_custom_call.1} parent=1 // pred_region
      %s25 = ssub.s32 128, 128
      %26 = vsyncadd [#allocation3], %s25
      %s28 = sshll.u32 [#allocation2], 4
      %s29 = int_to_ptr.vmem [resolvable:$true] %s28
      %31 = dma.hbm_to_vmem [thread:$0]  %s1, 128, %s29, [#allocation3]
    $region9: #{tpu_custom_call.1} parent=1 // pred_fallthru
      _
    // Predicated region
    $region10: #{tpu_custom_call.1} parent=1 // pred_check
      _
    $region11: #{tpu_custom_call.1} parent=1 // pred_check_branch
      %33 = sbr.rel (0) target = $region13
    $region12: #{tpu_custom_call.1} parent=1 // pred_region
      %s35 = ssub.s32 128, 128
      %36 = vsyncadd [#allocation6], %s35
      %s38 = sshll.u32 [#allocation5], 4
      %s39 = int_to_ptr.vmem [resolvable:$true] %s38
      %41 = dma.hbm_to_vmem [thread:$0]  %s2, 128, %s39, [#allocation6]
    $region13: #{tpu_custom_call.1} parent=1 // pred_fallthru
      _
    // Predicated region
    $region14: #{tpu_custom_call.1} parent=1 // pred_check
      _
    $region15: #{tpu_custom_call.1} parent=1 // pred_check_branch
      %43 = sbr.rel (0) target = $region17
    $region16: #{tpu_custom_call.1} parent=1 // pred_region
      _
    $region17: #{tpu_custom_call.1} parent=1 // pred_fallthru
      _
    // Predicated region
    $region18: #{tpu_custom_call.1} parent=1 // pred_check
      _
    $region19: #{tpu_custom_call.1} parent=1 // pred_check_branch
      %45 = sbr.rel (0) target = $region21
    $region20: #{tpu_custom_call.1} parent=1 // pred_region
      _
    $region21: #{tpu_custom_call.1} parent=1 // pred_fallthru
      _
    // Predicated region
    $region22: #{tpu_custom_call.1} parent=1 // pred_check
      _
    $region23: #{tpu_custom_call.1} parent=1 // pred_check_branch
      %47 = sbr.rel (0) target = $region25
    $region24: #{tpu_custom_call.1} parent=1 // pred_region
      %s49 = ssub.s32 16384, 16384
      %50 = vsyncadd [#allocation6], %s49
      %s51 = sshll.u32 [#allocation7], 4
      %s52 = int_to_ptr.vmem [resolvable:$true] %s51
      %57 = dma.hbm_to_vmem [thread:$0]  %s5, 16384, %s52, [#allocation6], 256, 256, 16
    $region25: #{tpu_custom_call.1} parent=1 // pred_fallthru
      _
    // Predicated region
    $region26: #{tpu_custom_call.1} parent=1 // pred_check
      _
    $region27: #{tpu_custom_call.1} parent=1 // pred_check_branch
      %59 = sbr.rel (0) target = $region29
    $region28: #{tpu_custom_call.1} parent=1 // pred_region
      _
    $region29: #{tpu_custom_call.1} parent=1 // pred_fallthru
      _
    // Predicated region
    $region30: #{tpu_custom_call.1} parent=1 // pred_check
      _
    $region31: #{tpu_custom_call.1} parent=1 // pred_check_branch
      %61 = sbr.rel (0) target = $region33
    $region32: #{tpu_custom_call.1} parent=1 // pred_region
      %s63 = ssub.s32 16384, 16384
      %64 = vsyncadd [#allocation9], %s63
      %s65 = sshll.u32 [#allocation8], 4
      %s66 = int_to_ptr.vmem [resolvable:$true] %s65
      %71 = dma.hbm_to_vmem [thread:$0]  %s7, 16384, %s66, [#allocation9], 256, 256, 16
    $region33: #{tpu_custom_call.1} parent=1 // pred_fallthru
      _
    // Predicated region
    $region34: #{tpu_custom_call.1} parent=1 // pred_check
      _
    $region35: #{tpu_custom_call.1} parent=1 // pred_check_branch
      %73 = sbr.rel (0) target = $region37
    $region36: #{tpu_custom_call.1} parent=1 // pred_region
      _
    $region37: #{tpu_custom_call.1} parent=1 // pred_fallthru
      _
    // Predicated region
    $region38: #{tpu_custom_call.1} parent=1 // pred_check
      _
    $region39: #{tpu_custom_call.1} parent=1 // pred_check_branch
      %75 = sbr.rel (0) target = $region41
    $region40: #{tpu_custom_call.1} parent=1 // pred_region
      %s77 = ssub.s32 28672, 28672
      %78 = vsyncadd [#allocation9], %s77
      %s79 = sshll.u32 [#allocation10], 4
      %s80 = int_to_ptr.vmem [resolvable:$true] %s79
      %85 = dma.hbm_to_vmem [thread:$0]  %s9, 28672, %s80, [#allocation9], 448, 448, 28
    $region41: #{tpu_custom_call.1} parent=1 // pred_fallthru
      _
    // Predicated region
    $region42: #{tpu_custom_call.1} parent=1 // pred_check
      _
    $region43: #{tpu_custom_call.1} parent=1 // pred_check_branch
      %87 = sbr.rel (0) target = $region45
    $region44: #{tpu_custom_call.1} parent=1 // pred_region
      _
    $region45: #{tpu_custom_call.1} parent=1 // pred_fallthru
      _
    // Predicated region
    $region46: #{tpu_custom_call.1} parent=1 // pred_check
      _
    $region47: #{tpu_custom_call.1} parent=1 // pred_check_branch
      %89 = sbr.rel (0) target = $region49
    $region48: #{tpu_custom_call.1} parent=1 // pred_region
      %90 = dma.done [#allocation3], 128
    $region49: #{tpu_custom_call.1} parent=1 // pred_fallthru
      _
    // Predicated region
    $region50: #{tpu_custom_call.1} parent=1 // pred_check
      _
    $region51: #{tpu_custom_call.1} parent=1 // pred_check_branch
      %92 = sbr.rel (0) target = $region53
    $region52: #{tpu_custom_call.1} parent=1 // pred_region
      %93 = dma.done [#allocation6], 128
    $region53: #{tpu_custom_call.1} parent=1 // pred_fallthru
      _
    // Predicated region
    $region54: #{tpu_custom_call.1} parent=1 // pred_check
      _
    $region55: #{tpu_custom_call.1} parent=1 // pred_check_branch
      %95 = sbr.rel (0) target = $region57
    $region56: #{tpu_custom_call.1} parent=1 // pred_region
      %96 = dma.done [#allocation6], 16384
    $region57: #{tpu_custom_call.1} parent=1 // pred_fallthru
      _
    // Predicated region
    $region58: #{tpu_custom_call.1} parent=1 // pred_check
      _
    $region59: #{tpu_custom_call.1} parent=1 // pred_check_branch
      %98 = sbr.rel (0) target = $region61
    $region60: #{tpu_custom_call.1} parent=1 // pred_region
      %99 = dma.done [#allocation9], 16384
    $region61: #{tpu_custom_call.1} parent=1 // pred_fallthru
      _
    // Predicated region
    $region62: #{tpu_custom_call.1} parent=1 // pred_check
      _
    $region63: #{tpu_custom_call.1} parent=1 // pred_check_branch
      %101 = sbr.rel (0) target = $region65
    $region64: #{tpu_custom_call.1} parent=1 // pred_region
      %102 = dma.done [#allocation9], 28672
    $region65: #{tpu_custom_call.1} parent=1 // pred_fallthru
      _
    %v104 = vld [vmem:[%s0] sm:$0xff]
    %v105 = vpack.c.bf16 %v104, %v104
    %v106 = vld [vmem:[#allocation2] sm:$0xff]
    %v107 = vpack.c.bf16 %v106, %v106
    %v108 = vld [vmem:[#allocation5] sm:$0xff]
    %v109 = vld [vmem:[%s3] sm:$0x77]
    %v110 = vld [vmem:[%s3 + $0x8] sm:$0x77]
    %v113 = vunpack.c.l.b16 %v109
    %v114 = vunpack.c.h.b16 %v109
    %v115 = vunpack.c.l.b16 %v110
    %v116 = vunpack.c.h.b16 %v110
    %v117 = vpack.c.b16 %v113, %v113
    %v118 = vpack.c.b16 %v114, %v114
    %v119 = vpack.c.b16 %v115, %v115
    %v120 = vpack.c.b16 %v116, %v116
    %vm121 = vcmask 39936
    %v123 = vsel %vm121, %v107, 0
    %vm125 = vcmask 1041408
    %vm126 = vcmask 1042432
    %v127 = vsel %vm125, 4294967295, 65535
    %v128 = vsel %vm126, %v127, 0
    %v130 = vand.u32 %v117, %v128
    %v133 = vand.u32 %v118, %v128
    %v136 = vand.u32 %v119, %v128
    %v139 = vand.u32 %v120, %v128
    %141 = vmatprep.subr.bf16.mxu0 %v133
    %142 = vmatpush1.bf16.msra.mxu0 %v130
    %143 = vmatprep.subr.bf16.mxu0 0
    %144 = vmatpush1.bf16.msra.mxu0 0
    %145 = vmatprep.subr.bf16.mxu0 0
    %146 = vmatpush1.bf16.msra.mxu0 0
    %147 = vmatprep.subr.bf16.mxu0 0
    %148 = vmatpush1.bf16.msra.mxu0 0
    %149 = vmatprep.subr.bf16.mxu0 0
    %150 = vmatpush1.bf16.msra.mxu0 0
    %151 = vmatprep.subr.bf16.mxu0 0
    %152 = vmatpush1.bf16.msra.mxu0 0
    %153 = vmatprep.subr.bf16.mxu0 0
    %154 = vmatpush1.bf16.msra.mxu0 0
    %155 = vmatprep.subr.bf16.mxu0 0
    %156 = vmatpush1.bf16.msra.mxu0 0
    %157 = vmatprep.subr.bf16.mxu0 0
    %158 = vmatpush1.bf16.msra.mxu0 0
    %159 = vmatprep.subr.bf16.mxu0 0
    %160 = vmatpush1.bf16.msra.mxu0 0
    %161 = vmatprep.subr.bf16.mxu0 0
    %162 = vmatpush1.bf16.msra.mxu0 0
    %163 = vmatprep.subr.bf16.mxu0 0
    %164 = vmatpush1.bf16.msra.mxu0 0
    %165 = vmatprep.subr.bf16.mxu0 0
    %166 = vmatpush1.bf16.msra.mxu0 0
    %167 = vmatprep.subr.bf16.mxu0 0
    %168 = vmatpush1.bf16.msra.mxu0 0
    %169 = vmatprep.subr.bf16.mxu0 0
    %170 = vmatpush1.bf16.msra.mxu0 0
    %171 = vmatprep.subr.bf16.mxu0 0
    %172 = vmatpush1.bf16.msra.mxu0 0
    %173 = vmatprep.mubr.bf16.mxu0 0
    %174 = vmatmul.mubr.bf16.gmra.mrb[0].mxu0 %v123
    %v175 = vpop.f32.mrb[0].mxu0
    %v176 = vadd.f32 0.0, %v175
    %v177 = vpop.f32.mrb[0].mxu0
    %v178 = vadd.f32 0.0, %v177
    %v179 = vpop.f32.mrb[0].mxu0
    %v180 = vpop.f32.mrb[0].mxu0
    %181 = vdwg.mxu0
    %182 = vmatprep.subr.bf16.mxu0 %v139
    %183 = vmatpush1.bf16.msra.mxu0 %v136
    %184 = vmatprep.subr.bf16.mxu0 0
    %185 = vmatpush1.bf16.msra.mxu0 0
    %186 = vmatprep.subr.bf16.mxu0 0
    %187 = vmatpush1.bf16.msra.mxu0 0
    %188 = vmatprep.subr.bf16.mxu0 0
    %189 = vmatpush1.bf16.msra.mxu0 0
    %190 = vmatprep.subr.bf16.mxu0 0
    %191 = vmatpush1.bf16.msra.mxu0 0
    %192 = vmatprep.subr.bf16.mxu0 0
    %193 = vmatpush1.bf16.msra.mxu0 0
    %194 = vmatprep.subr.bf16.mxu0 0
    %195 = vmatpush1.bf16.msra.mxu0 0
    %196 = vmatprep.subr.bf16.mxu0 0
    %197 = vmatpush1.bf16.msra.mxu0 0
    %198 = vmatprep.subr.bf16.mxu0 0
    %199 = vmatpush1.bf16.msra.mxu0 0
    %200 = vmatprep.subr.bf16.mxu0 0
    %201 = vmatpush1.bf16.msra.mxu0 0
    %202 = vmatprep.subr.bf16.mxu0 0
    %203 = vmatpush1.bf16.msra.mxu0 0
    %204 = vmatprep.subr.bf16.mxu0 0
    %205 = vmatpush1.bf16.msra.mxu0 0
    %206 = vmatprep.subr.bf16.mxu0 0
    %207 = vmatpush1.bf16.msra.mxu0 0
    %208 = vmatprep.subr.bf16.mxu0 0
    %209 = vmatpush1.bf16.msra.mxu0 0
    %210 = vmatprep.subr.bf16.mxu0 0
    %211 = vmatpush1.bf16.msra.mxu0 0
    %212 = vmatprep.subr.bf16.mxu0 0
    %213 = vmatpush1.bf16.msra.mxu0 0
    %214 = vmatprep.mubr.bf16.mxu0 0
    %215 = vmatmul.mubr.bf16.gmra.mrb[0].mxu0 %v123
    %v216 = vpop.f32.mrb[0].mxu0
    %v217 = vadd.f32 0.0, %v216
    %v218 = vpop.f32.mrb[0].mxu0
    %v219 = vadd.f32 0.0, %v218
    %v220 = vpop.f32.mrb[0].mxu0
    %v221 = vpop.f32.mrb[0].mxu0
    %222 = vdwg.mxu0
    %v224 = vcombine.high %v108, %v108
    %v226 = vunpack.c.l.s4 1983009808
    %v227 = vunpack.c.0.s8 %v226
    %v228 = vlaneseq
    %v229 = vshrl.u32 %v228, 7
    %v230 = vsub.s32 %v227, %v229
    %v231 = vrot.slane %v108, %v230
    %v233 = vunpack.c.l.s4 1983009808
    %v234 = vunpack.c.0.s8 %v233
    %v235 = vlaneseq
    %v236 = vshrl.u32 %v235, 7
    %v237 = vsub.s32 %v234, %v236
    %v238 = vrot.slane %v224, %v237
    %v239 = vcombine.high %v231, %v231
    %v240 = vcombine.high %v238, %v238
    %vm241 = vcmask 23552
    %v243 = vsel %vm241, %v105, 0
    %vm245 = vcmask 1040384
    %v246 = vsel %vm245, 4294967295, 65535
    %v247 = vsel %vm125, %v246, 0
    %v249 = vand.u32 %v231, %v247
    %v252 = vand.u32 %v239, %v247
    %v255 = vand.u32 %v238, %v247
    %v258 = vand.u32 %v240, %v247
    %260 = vmatprep.subr.bf16.mxu0 %v252
    %261 = vmatpush1.bf16.msra.mxu0 %v249
    %262 = vmatprep.subr.bf16.mxu0 0
    %263 = vmatpush1.bf16.msra.mxu0 0
    %264 = vmatprep.subr.bf16.mxu0 0
    %265 = vmatpush1.bf16.msra.mxu0 0
    %266 = vmatprep.subr.bf16.mxu0 0
    %267 = vmatpush1.bf16.msra.mxu0 0
    %268 = vmatprep.subr.bf16.mxu0 0
    %269 = vmatpush1.bf16.msra.mxu0 0
    %270 = vmatprep.subr.bf16.mxu0 0
    %271 = vmatpush1.bf16.msra.mxu0 0
    %272 = vmatprep.subr.bf16.mxu0 0
    %273 = vmatpush1.bf16.msra.mxu0 0
    %274 = vmatprep.subr.bf16.mxu0 0
    %275 = vmatpush1.bf16.msra.mxu0 0
    %276 = vmatprep.subr.bf16.mxu0 0
    %277 = vmatpush1.bf16.msra.mxu0 0
    %278 = vmatprep.subr.bf16.mxu0 0
    %279 = vmatpush1.bf16.msra.mxu0 0
    %280 = vmatprep.subr.bf16.mxu0 0
    %281 = vmatpush1.bf16.msra.mxu0 0
    %282 = vmatprep.subr.bf16.mxu0 0
    %283 = vmatpush1.bf16.msra.mxu0 0
    %284 = vmatprep.subr.bf16.mxu0 0
    %285 = vmatpush1.bf16.msra.mxu0 0
    %286 = vmatprep.subr.bf16.mxu0 0
    %287 = vmatpush1.bf16.msra.mxu0 0
    %288 = vmatprep.subr.bf16.mxu0 0
    %289 = vmatpush1.bf16.msra.mxu0 0
    %290 = vmatprep.subr.bf16.mxu0 0
    %291 = vmatpush1.bf16.msra.mxu0 0
    %292 = vmatprep.mubr.bf16.mxu0 0
    %293 = vmatmul.mubr.bf16.gmra.mrb[0].mxu0 %v243
    %v294 = vpop.f32.mrb[0].mxu0
    %v295 = vadd.f32 %v176, %v294
    %v296 = vpop.f32.mrb[0].mxu0
    %v297 = vadd.f32 %v178, %v296
    %v298 = vpop.f32.mrb[0].mxu0
    %v299 = vpop.f32.mrb[0].mxu0
    %300 = vdwg.mxu0
    %301 = vmatprep.subr.bf16.mxu0 %v258
    %302 = vmatpush1.bf16.msra.mxu0 %v255
    %303 = vmatprep.subr.bf16.mxu0 0
    %304 = vmatpush1.bf16.msra.mxu0 0
    %305 = vmatprep.subr.bf16.mxu0 0
    %306 = vmatpush1.bf16.msra.mxu0 0
    %307 = vmatprep.subr.bf16.mxu0 0
    %308 = vmatpush1.bf16.msra.mxu0 0
    %309 = vmatprep.subr.bf16.mxu0 0
    %310 = vmatpush1.bf16.msra.mxu0 0
    %311 = vmatprep.subr.bf16.mxu0 0
    %312 = vmatpush1.bf16.msra.mxu0 0
    %313 = vmatprep.subr.bf16.mxu0 0
    %314 = vmatpush1.bf16.msra.mxu0 0
    %315 = vmatprep.subr.bf16.mxu0 0
    %316 = vmatpush1.bf16.msra.mxu0 0
    %317 = vmatprep.subr.bf16.mxu0 0
    %318 = vmatpush1.bf16.msra.mxu0 0
    %319 = vmatprep.subr.bf16.mxu0 0
    %320 = vmatpush1.bf16.msra.mxu0 0
    %321 = vmatprep.subr.bf16.mxu0 0
    %322 = vmatpush1.bf16.msra.mxu0 0
    %323 = vmatprep.subr.bf16.mxu0 0
    %324 = vmatpush1.bf16.msra.mxu0 0
    %325 = vmatprep.subr.bf16.mxu0 0
    %326 = vmatpush1.bf16.msra.mxu0 0
    %327 = vmatprep.subr.bf16.mxu0 0
    %328 = vmatpush1.bf16.msra.mxu0 0
    %329 = vmatprep.subr.bf16.mxu0 0
    %330 = vmatpush1.bf16.msra.mxu0 0
    %331 = vmatprep.subr.bf16.mxu0 0
    %332 = vmatpush1.bf16.msra.mxu0 0
    %333 = vmatprep.mubr.bf16.mxu0 0
    %334 = vmatmul.mubr.bf16.gmra.mrb[0].mxu0 %v243
    %v335 = vpop.f32.mrb[0].mxu0
    %v336 = vadd.f32 %v217, %v335
    %v337 = vpop.f32.mrb[0].mxu0
    %v338 = vadd.f32 %v219, %v337
    %v339 = vpop.f32.mrb[0].mxu0
    %v340 = vpop.f32.mrb[0].mxu0
    %341 = vdwg.mxu0
    %v342 = vld [vmem:[%s4] sm:$0xf]
    %v344 = vlaneseq
    %v345 = vshrl.u32 %v344, 7
    %v346 = vsub.s32 0, %v345
    %v347 = vrot.slane %v342, %v346
    %v348 = vlaneseq
    %v349 = vshrl.u32 %v348, 7
    %v350 = vsub.s32 1, %v349
    %v351 = vrot.slane %v342, %v350
    %v352 = vlaneseq
    %v353 = vshrl.u32 %v352, 7
    %v354 = vsub.s32 2, %v353
    %v355 = vrot.slane %v342, %v354
    %v356 = vlaneseq
    %v357 = vshrl.u32 %v356, 7
    %v358 = vsub.s32 3, %v357
    %v359 = vrot.slane %v342, %v358
    %v364 = vadd.f32 %v295, %v347
    %v365 = vadd.f32 %v297, %v351
    %v366 = vadd.f32 %v336, %v355
    %v367 = vadd.f32 %v338, %v359
    %v368 = vxor.u32 %v364, 2147483648
    %v369 = vxor.u32 %v365, 2147483648
    %v370 = vxor.u32 %v366, 2147483648
    %v371 = vxor.u32 %v367, 2147483648
    %v372 = vmul.f32 %v368, 1.442695
    %v373 = vpow.pop %v372
    %v374 = vmul.f32 %v369, 1.442695
    %v375 = vpow.pop %v374
    %v376 = vmul.f32 %v370, 1.442695
    %v377 = vpow.pop %v376
    %v378 = vmul.f32 %v371, 1.442695
    %v379 = vpow.pop %v378
    %v380 = vadd.f32 %v373, 1.0
    %v381 = vadd.f32 %v375, 1.0
    %v382 = vadd.f32 %v377, 1.0
    %v383 = vadd.f32 %v379, 1.0
    %v384 = vrcp.pop %v380
    %v385 = vmul.f32 1.0, %v384
    %v386 = vrcp.pop %v381
    %v387 = vmul.f32 1.0, %v386
    %v388 = vrcp.pop %v382
    %v389 = vmul.f32 1.0, %v388
    %v390 = vrcp.pop %v383
    %v391 = vmul.f32 1.0, %v390
    %v392 = vmul.f32 %v364, %v385
    %v393 = vmul.f32 %v365, %v387
    %v394 = vmul.f32 %v366, %v389
    %v395 = vmul.f32 %v367, %v391
    %v396 = vpack.c.bf16 %v392, %v392
    %v397 = vpack.c.bf16 %v393, %v393
    %v398 = vpack.c.bf16 %v394, %v394
    %v399 = vpack.c.bf16 %v395, %v395
    %v400 = vld [vmem:[#allocation7] sm:$0xff]
    %v401 = vld [vmem:[#allocation7 + $0x8] sm:$0xff]
    %v402 = vld [vmem:[#allocation7 + $0x10] sm:$0xff]
    %v403 = vld [vmem:[#allocation7 + $0x18] sm:$0xff]
    %v404 = vld [vmem:[#allocation7 + $0x20] sm:$0xff]
    %v405 = vld [vmem:[#allocation7 + $0x28] sm:$0xff]
    %v406 = vld [vmem:[#allocation7 + $0x30] sm:$0xff]
    %v407 = vld [vmem:[#allocation7 + $0x38] sm:$0xff]
    %v408 = vld [vmem:[#allocation7 + $0x40] sm:$0xff]
    %v409 = vld [vmem:[#allocation7 + $0x48] sm:$0xff]
    %v410 = vld [vmem:[#allocation7 + $0x50] sm:$0xff]
    %v411 = vld [vmem:[#allocation7 + $0x58] sm:$0xff]
    %v412 = vld [vmem:[#allocation7 + $0x60] sm:$0xff]
    %v413 = vld [vmem:[#allocation7 + $0x68] sm:$0xff]
    %v414 = vld [vmem:[#allocation7 + $0x70] sm:$0xff]
    %v415 = vld [vmem:[#allocation7 + $0x78] sm:$0xff]
    %v416 = vld [vmem:[#allocation7 + $0x80] sm:$0xff]
    %v417 = vld [vmem:[#allocation7 + $0x88] sm:$0xff]
    %v418 = vld [vmem:[#allocation7 + $0x90] sm:$0xff]
    %v419 = vld [vmem:[#allocation7 + $0x98] sm:$0xff]
    %v420 = vld [vmem:[#allocation7 + $0xa0] sm:$0xff]
    %v421 = vld [vmem:[#allocation7 + $0xa8] sm:$0xff]
    %v422 = vld [vmem:[#allocation7 + $0xb0] sm:$0xff]
    %v423 = vld [vmem:[#allocation7 + $0xb8] sm:$0xff]
    %v424 = vld [vmem:[#allocation7 + $0xc0] sm:$0xff]
    %v425 = vld [vmem:[#allocation7 + $0xc8] sm:$0xff]
    %v426 = vld [vmem:[#allocation7 + $0xd0] sm:$0xff]
    %v427 = vld [vmem:[#allocation7 + $0xd8] sm:$0xff]
    %v428 = vld [vmem:[#allocation7 + $0xe0] sm:$0xff]
    %v429 = vld [vmem:[#allocation7 + $0xe8] sm:$0xff]
    %v430 = vld [vmem:[#allocation7 + $0xf0] sm:$0xff]
    %v431 = vld [vmem:[#allocation7 + $0xf8] sm:$0xff]
    %v432 = vld [vmem:[#allocation7 + $0x100] sm:$0xff]
    %v433 = vld [vmem:[#allocation7 + $0x108] sm:$0xff]
    %v434 = vld [vmem:[#allocation7 + $0x110] sm:$0xff]
    %v435 = vld [vmem:[#allocation7 + $0x118] sm:$0xff]
    %v436 = vld [vmem:[#allocation7 + $0x120] sm:$0xff]
    %v437 = vld [vmem:[#allocation7 + $0x128] sm:$0xff]
    %v438 = vld [vmem:[#allocation7 + $0x130] sm:$0xff]
    %v439 = vld [vmem:[#allocation7 + $0x138] sm:$0xff]
    %v440 = vld [vmem:[#allocation7 + $0x140] sm:$0xff]
    %v441 = vld [vmem:[#allocation7 + $0x148] sm:$0xff]
    %v442 = vld [vmem:[#allocation7 + $0x150] sm:$0xff]
    %v443 = vld [vmem:[#allocation7 + $0x158] sm:$0xff]
    %v444 = vld [vmem:[#allocation7 + $0x160] sm:$0xff]
    %v445 = vld [vmem:[#allocation7 + $0x168] sm:$0xff]
    %v446 = vld [vmem:[#allocation7 + $0x170] sm:$0xff]
    %v447 = vld [vmem:[#allocation7 + $0x178] sm:$0xff]
    %v448 = vld [vmem:[#allocation7 + $0x180] sm:$0xff]
    %v449 = vld [vmem:[#allocation7 + $0x188] sm:$0xff]
    %v450 = vld [vmem:[#allocation7 + $0x190] sm:$0xff]
    %v451 = vld [vmem:[#allocation7 + $0x198] sm:$0xff]
    %v452 = vld [vmem:[#allocation7 + $0x1a0] sm:$0xff]
    %v453 = vld [vmem:[#allocation7 + $0x1a8] sm:$0xff]
    %v454 = vld [vmem:[#allocation7 + $0x1b0] sm:$0xff]
    %v455 = vld [vmem:[#allocation7 + $0x1b8] sm:$0xff]
    %v456 = vld [vmem:[#allocation7 + $0x1c0] sm:$0xff]
    %v457 = vld [vmem:[#allocation7 + $0x1c8] sm:$0xff]
    %v458 = vld [vmem:[#allocation7 + $0x1d0] sm:$0xff]
    %v459 = vld [vmem:[#allocation7 + $0x1d8] sm:$0xff]
    %v460 = vld [vmem:[#allocation7 + $0x1e0] sm:$0xff]
    %v461 = vld [vmem:[#allocation7 + $0x1e8] sm:$0xff]
    %v462 = vld [vmem:[#allocation7 + $0x1f0] sm:$0xff]
    %v463 = vld [vmem:[#allocation7 + $0x1f8] sm:$0xff]
    %v464 = vld [vmem:[#allocation7 + $0x200] sm:$0xff]
    %v465 = vld [vmem:[#allocation7 + $0x208] sm:$0xff]
    %v466 = vld [vmem:[#allocation7 + $0x210] sm:$0xff]
    %v467 = vld [vmem:[#allocation7 + $0x218] sm:$0xff]
    %v468 = vld [vmem:[#allocation7 + $0x220] sm:$0xff]
    %v469 = vld [vmem:[#allocation7 + $0x228] sm:$0xff]
    %v470 = vld [vmem:[#allocation7 + $0x230] sm:$0xff]
    %v471 = vld [vmem:[#allocation7 + $0x238] sm:$0xff]
    %v472 = vld [vmem:[#allocation7 + $0x240] sm:$0xff]
    %v473 = vld [vmem:[#allocation7 + $0x248] sm:$0xff]
    %v474 = vld [vmem:[#allocation7 + $0x250] sm:$0xff]
    %v475 = vld [vmem:[#allocation7 + $0x258] sm:$0xff]
    %v476 = vld [vmem:[#allocation7 + $0x260] sm:$0xff]
    %v477 = vld [vmem:[#allocation7 + $0x268] sm:$0xff]
    %v478 = vld [vmem:[#allocation7 + $0x270] sm:$0xff]
    %v479 = vld [vmem:[#allocation7 + $0x278] sm:$0xff]
    %v480 = vld [vmem:[#allocation7 + $0x280] sm:$0xff]
    %v481 = vld [vmem:[#allocation7 + $0x288] sm:$0xff]
    %v482 = vld [vmem:[#allocation7 + $0x290] sm:$0xff]
    %v483 = vld [vmem:[#allocation7 + $0x298] sm:$0xff]
    %v484 = vld [vmem:[#allocation7 + $0x2a0] sm:$0xff]
    %v485 = vld [vmem:[#allocation7 + $0x2a8] sm:$0xff]
    %v486 = vld [vmem:[#allocation7 + $0x2b0] sm:$0xff]
    %v487 = vld [vmem:[#allocation7 + $0x2b8] sm:$0xff]
    %v488 = vld [vmem:[#allocation7 + $0x2c0] sm:$0xff]
    %v489 = vld [vmem:[#allocation7 + $0x2c8] sm:$0xff]
    %v490 = vld [vmem:[#allocation7 + $0x2d0] sm:$0xff]
    %v491 = vld [vmem:[#allocation7 + $0x2d8] sm:$0xff]
    %v492 = vld [vmem:[#allocation7 + $0x2e0] sm:$0xff]
    %v493 = vld [vmem:[#allocation7 + $0x2e8] sm:$0xff]
    %v494 = vld [vmem:[#allocation7 + $0x2f0] sm:$0xff]
    %v495 = vld [vmem:[#allocation7 + $0x2f8] sm:$0xff]
    %v496 = vld [vmem:[#allocation7 + $0x300] sm:$0xff]
    %v497 = vld [vmem:[#allocation7 + $0x308] sm:$0xff]
    %v498 = vld [vmem:[#allocation7 + $0x310] sm:$0xff]
    %v499 = vld [vmem:[#allocation7 + $0x318] sm:$0xff]
    %v500 = vld [vmem:[#allocation7 + $0x320] sm:$0xff]
    %v501 = vld [vmem:[#allocation7 + $0x328] sm:$0xff]
    %v502 = vld [vmem:[#allocation7 + $0x330] sm:$0xff]
    %v503 = vld [vmem:[#allocation7 + $0x338] sm:$0xff]
    %v504 = vld [vmem:[#allocation7 + $0x340] sm:$0xff]
    %v505 = vld [vmem:[#allocation7 + $0x348] sm:$0xff]
    %v506 = vld [vmem:[#allocation7 + $0x350] sm:$0xff]
    %v507 = vld [vmem:[#allocation7 + $0x358] sm:$0xff]
    %v508 = vld [vmem:[#allocation7 + $0x360] sm:$0xff]
    %v509 = vld [vmem:[#allocation7 + $0x368] sm:$0xff]
    %v510 = vld [vmem:[#allocation7 + $0x370] sm:$0xff]
    %v511 = vld [vmem:[#allocation7 + $0x378] sm:$0xff]
    %v512 = vld [vmem:[#allocation7 + $0x380] sm:$0xff]
    %v513 = vld [vmem:[#allocation7 + $0x388] sm:$0xff]
    %v514 = vld [vmem:[#allocation7 + $0x390] sm:$0xff]
    %v515 = vld [vmem:[#allocation7 + $0x398] sm:$0xff]
    %v516 = vld [vmem:[#allocation7 + $0x3a0] sm:$0xff]
    %v517 = vld [vmem:[#allocation7 + $0x3a8] sm:$0xff]
    %v518 = vld [vmem:[#allocation7 + $0x3b0] sm:$0xff]
    %v519 = vld [vmem:[#allocation7 + $0x3b8] sm:$0xff]
    %v520 = vld [vmem:[#allocation7 + $0x3c0] sm:$0xff]
    %v521 = vld [vmem:[#allocation7 + $0x3c8] sm:$0xff]
    %v522 = vld [vmem:[#allocation7 + $0x3d0] sm:$0xff]
    %v523 = vld [vmem:[#allocation7 + $0x3d8] sm:$0xff]
    %v524 = vld [vmem:[#allocation7 + $0x3e0] sm:$0xff]
    %v525 = vld [vmem:[#allocation7 + $0x3e8] sm:$0xff]
    %v526 = vld [vmem:[#allocation7 + $0x3f0] sm:$0xff]
    %v527 = vld [vmem:[#allocation7 + $0x3f8] sm:$0xff]
    %v528 = vld [vmem:[%s6] sm:$0xf]
    %v530 = vlaneseq
    %v531 = vshrl.u32 %v530, 7
    %v532 = vsub.s32 0, %v531
    %v533 = vrot.slane %v528, %v532
    %v534 = vlaneseq
    %v535 = vshrl.u32 %v534, 7
    %v536 = vsub.s32 1, %v535
    %v537 = vrot.slane %v528, %v536
    %v538 = vlaneseq
    %v539 = vshrl.u32 %v538, 7
    %v540 = vsub.s32 2, %v539
    %v541 = vrot.slane %v528, %v540
    %v542 = vlaneseq
    %v543 = vshrl.u32 %v542, 7
    %v544 = vsub.s32 3, %v543
    %v545 = vrot.slane %v528, %v544
    %v678 = vunpack.c.l.b16 %v400
    %v679 = vunpack.c.h.b16 %v400
    %v680 = vunpack.c.l.b16 %v401
    %v681 = vunpack.c.h.b16 %v401
    %v682 = vunpack.c.l.b16 %v402
    %v683 = vunpack.c.h.b16 %v402
    %v684 = vunpack.c.l.b16 %v403
    %v685 = vunpack.c.h.b16 %v403
    %v686 = vunpack.c.l.b16 %v404
    %v687 = vunpack.c.h.b16 %v404
    %v688 = vunpack.c.l.b16 %v405
    %v689 = vunpack.c.h.b16 %v405
    %v690 = vunpack.c.l.b16 %v406
    %v691 = vunpack.c.h.b16 %v406
    %v692 = vunpack.c.l.b16 %v407
    %v693 = vunpack.c.h.b16 %v407
    %v694 = vunpack.c.l.b16 %v408
    %v695 = vunpack.c.h.b16 %v408
    %v696 = vunpack.c.l.b16 %v409
    %v697 = vunpack.c.h.b16 %v409
    %v698 = vunpack.c.l.b16 %v410
    %v699 = vunpack.c.h.b16 %v410
    %v700 = vunpack.c.l.b16 %v411
    %v701 = vunpack.c.h.b16 %v411
    %v702 = vunpack.c.l.b16 %v412
    %v703 = vunpack.c.h.b16 %v412
    %v704 = vunpack.c.l.b16 %v413
    %v705 = vunpack.c.h.b16 %v413
    %v706 = vunpack.c.l.b16 %v414
    %v707 = vunpack.c.h.b16 %v414
    %v708 = vunpack.c.l.b16 %v415
    %v709 = vunpack.c.h.b16 %v415
    %v710 = vunpack.c.l.b16 %v416
    %v711 = vunpack.c.h.b16 %v416
    %v712 = vunpack.c.l.b16 %v417
    %v713 = vunpack.c.h.b16 %v417
    %v714 = vunpack.c.l.b16 %v418
    %v715 = vunpack.c.h.b16 %v418
    %v716 = vunpack.c.l.b16 %v419
    %v717 = vunpack.c.h.b16 %v419
    %v718 = vunpack.c.l.b16 %v420
    %v719 = vunpack.c.h.b16 %v420
    %v720 = vunpack.c.l.b16 %v421
    %v721 = vunpack.c.h.b16 %v421
    %v722 = vunpack.c.l.b16 %v422
    %v723 = vunpack.c.h.b16 %v422
    %v724 = vunpack.c.l.b16 %v423
    %v725 = vunpack.c.h.b16 %v423
    %v726 = vunpack.c.l.b16 %v424
    %v727 = vunpack.c.h.b16 %v424
    %v728 = vunpack.c.l.b16 %v425
    %v729 = vunpack.c.h.b16 %v425
    %v730 = vunpack.c.l.b16 %v426
    %v731 = vunpack.c.h.b16 %v426
    %v732 = vunpack.c.l.b16 %v427
    %v733 = vunpack.c.h.b16 %v427
    %v734 = vunpack.c.l.b16 %v428
    %v735 = vunpack.c.h.b16 %v428
    %v736 = vunpack.c.l.b16 %v429
    %v737 = vunpack.c.h.b16 %v429
    %v738 = vunpack.c.l.b16 %v430
    %v739 = vunpack.c.h.b16 %v430
    %v740 = vunpack.c.l.b16 %v431
    %v741 = vunpack.c.h.b16 %v431
    %v742 = vunpack.c.l.b16 %v432
    %v743 = vunpack.c.h.b16 %v432
    %v744 = vunpack.c.l.b16 %v433
    %v745 = vunpack.c.h.b16 %v433
    %v746 = vunpack.c.l.b16 %v434
    %v747 = vunpack.c.h.b16 %v434
    %v748 = vunpack.c.l.b16 %v435
    %v749 = vunpack.c.h.b16 %v435
    %v750 = vunpack.c.l.b16 %v436
    %v751 = vunpack.c.h.b16 %v436
    %v752 = vunpack.c.l.b16 %v437
    %v753 = vunpack.c.h.b16 %v437
    %v754 = vunpack.c.l.b16 %v438
    %v755 = vunpack.c.h.b16 %v438
    %v756 = vunpack.c.l.b16 %v439
    %v757 = vunpack.c.h.b16 %v439
    %v758 = vunpack.c.l.b16 %v440
    %v759 = vunpack.c.h.b16 %v440
    %v760 = vunpack.c.l.b16 %v441
    %v761 = vunpack.c.h.b16 %v441
    %v762 = vunpack.c.l.b16 %v442
    %v763 = vunpack.c.h.b16 %v442
    %v764 = vunpack.c.l.b16 %v443
    %v765 = vunpack.c.h.b16 %v443
    %v766 = vunpack.c.l.b16 %v444
    %v767 = vunpack.c.h.b16 %v444
    %v768 = vunpack.c.l.b16 %v445
    %v769 = vunpack.c.h.b16 %v445
    %v770 = vunpack.c.l.b16 %v446
    %v771 = vunpack.c.h.b16 %v446
    %v772 = vunpack.c.l.b16 %v447
    %v773 = vunpack.c.h.b16 %v447
    %v774 = vunpack.c.l.b16 %v448
    %v775 = vunpack.c.h.b16 %v448
    %v776 = vunpack.c.l.b16 %v449
    %v777 = vunpack.c.h.b16 %v449
    %v778 = vunpack.c.l.b16 %v450
    %v779 = vunpack.c.h.b16 %v450
    %v780 = vunpack.c.l.b16 %v451
    %v781 = vunpack.c.h.b16 %v451
    %v782 = vunpack.c.l.b16 %v452
    %v783 = vunpack.c.h.b16 %v452
    %v784 = vunpack.c.l.b16 %v453
    %v785 = vunpack.c.h.b16 %v453
    %v786 = vunpack.c.l.b16 %v454
    %v787 = vunpack.c.h.b16 %v454
    %v788 = vunpack.c.l.b16 %v455
    %v789 = vunpack.c.h.b16 %v455
    %v790 = vunpack.c.l.b16 %v456
    %v791 = vunpack.c.h.b16 %v456
    %v792 = vunpack.c.l.b16 %v457
    %v793 = vunpack.c.h.b16 %v457
    %v794 = vunpack.c.l.b16 %v458
    %v795 = vunpack.c.h.b16 %v458
    %v796 = vunpack.c.l.b16 %v459
    %v797 = vunpack.c.h.b16 %v459
    %v798 = vunpack.c.l.b16 %v460
    %v799 = vunpack.c.h.b16 %v460
    %v800 = vunpack.c.l.b16 %v461
    %v801 = vunpack.c.h.b16 %v461
    %v802 = vunpack.c.l.b16 %v462
    %v803 = vunpack.c.h.b16 %v462
    %v804 = vunpack.c.l.b16 %v463
    %v805 = vunpack.c.h.b16 %v463
    %v806 = vunpack.c.l.b16 %v464
    %v807 = vunpack.c.h.b16 %v464
    %v808 = vunpack.c.l.b16 %v465
    %v809 = vunpack.c.h.b16 %v465
    %v810 = vunpack.c.l.b16 %v466
    %v811 = vunpack.c.h.b16 %v466
    %v812 = vunpack.c.l.b16 %v467
    %v813 = vunpack.c.h.b16 %v467
    %v814 = vunpack.c.l.b16 %v468
    %v815 = vunpack.c.h.b16 %v468
    %v816 = vunpack.c.l.b16 %v469
    %v817 = vunpack.c.h.b16 %v469
    %v818 = vunpack.c.l.b16 %v470
    %v819 = vunpack.c.h.b16 %v470
    %v820 = vunpack.c.l.b16 %v471
    %v821 = vunpack.c.h.b16 %v471
    %v822 = vunpack.c.l.b16 %v472
    %v823 = vunpack.c.h.b16 %v472
    %v824 = vunpack.c.l.b16 %v473
    %v825 = vunpack.c.h.b16 %v473
    %v826 = vunpack.c.l.b16 %v474
    %v827 = vunpack.c.h.b16 %v474
    %v828 = vunpack.c.l.b16 %v475
    %v829 = vunpack.c.h.b16 %v475
    %v830 = vunpack.c.l.b16 %v476
    %v831 = vunpack.c.h.b16 %v476
    %v832 = vunpack.c.l.b16 %v477
    %v833 = vunpack.c.h.b16 %v477
    %v834 = vunpack.c.l.b16 %v478
    %v835 = vunpack.c.h.b16 %v478
    %v836 = vunpack.c.l.b16 %v479
    %v837 = vunpack.c.h.b16 %v479
    %v838 = vunpack.c.l.b16 %v480
    %v839 = vunpack.c.h.b16 %v480
    %v840 = vunpack.c.l.b16 %v481
    %v841 = vunpack.c.h.b16 %v481
    %v842 = vunpack.c.l.b16 %v482
    %v843 = vunpack.c.h.b16 %v482
    %v844 = vunpack.c.l.b16 %v483
    %v845 = vunpack.c.h.b16 %v483
    %v846 = vunpack.c.l.b16 %v484
    %v847 = vunpack.c.h.b16 %v484
    %v848 = vunpack.c.l.b16 %v485
    %v849 = vunpack.c.h.b16 %v485
    %v850 = vunpack.c.l.b16 %v486
    %v851 = vunpack.c.h.b16 %v486
    %v852 = vunpack.c.l.b16 %v487
    %v853 = vunpack.c.h.b16 %v487
    %v854 = vunpack.c.l.b16 %v488
    %v855 = vunpack.c.h.b16 %v488
    %v856 = vunpack.c.l.b16 %v489
    %v857 = vunpack.c.h.b16 %v489
    %v858 = vunpack.c.l.b16 %v490
    %v859 = vunpack.c.h.b16 %v490
    %v860 = vunpack.c.l.b16 %v491
    %v861 = vunpack.c.h.b16 %v491
    %v862 = vunpack.c.l.b16 %v492
    %v863 = vunpack.c.h.b16 %v492
    %v864 = vunpack.c.l.b16 %v493
    %v865 = vunpack.c.h.b16 %v493
    %v866 = vunpack.c.l.b16 %v494
    %v867 = vunpack.c.h.b16 %v494
    %v868 = vunpack.c.l.b16 %v495
    %v869 = vunpack.c.h.b16 %v495
    %v870 = vunpack.c.l.b16 %v496
    %v871 = vunpack.c.h.b16 %v496
    %v872 = vunpack.c.l.b16 %v497
    %v873 = vunpack.c.h.b16 %v497
    %v874 = vunpack.c.l.b16 %v498
    %v875 = vunpack.c.h.b16 %v498
    %v876 = vunpack.c.l.b16 %v499
    %v877 = vunpack.c.h.b16 %v499
    %v878 = vunpack.c.l.b16 %v500
    %v879 = vunpack.c.h.b16 %v500
    %v880 = vunpack.c.l.b16 %v501
    %v881 = vunpack.c.h.b16 %v501
    %v882 = vunpack.c.l.b16 %v502
    %v883 = vunpack.c.h.b16 %v502
    %v884 = vunpack.c.l.b16 %v503
    %v885 = vunpack.c.h.b16 %v503
    %v886 = vunpack.c.l.b16 %v504
    %v887 = vunpack.c.h.b16 %v504
    %v888 = vunpack.c.l.b16 %v505
    %v889 = vunpack.c.h.b16 %v505
    %v890 = vunpack.c.l.b16 %v506
    %v891 = vunpack.c.h.b16 %v506
    %v892 = vunpack.c.l.b16 %v507
    %v893 = vunpack.c.h.b16 %v507
    %v894 = vunpack.c.l.b16 %v508
    %v895 = vunpack.c.h.b16 %v508
    %v896 = vunpack.c.l.b16 %v509
    %v897 = vunpack.c.h.b16 %v509
    %v898 = vunpack.c.l.b16 %v510
    %v899 = vunpack.c.h.b16 %v510
    %v900 = vunpack.c.l.b16 %v511
    %v901 = vunpack.c.h.b16 %v511
    %v902 = vunpack.c.l.b16 %v512
    %v903 = vunpack.c.h.b16 %v512
    %v904 = vunpack.c.l.b16 %v513
    %v905 = vunpack.c.h.b16 %v513
    %v906 = vunpack.c.l.b16 %v514
    %v907 = vunpack.c.h.b16 %v514
    %v908 = vunpack.c.l.b16 %v515
    %v909 = vunpack.c.h.b16 %v515
    %v910 = vunpack.c.l.b16 %v516
    %v911 = vunpack.c.h.b16 %v516
    %v912 = vunpack.c.l.b16 %v517
    %v913 = vunpack.c.h.b16 %v517
    %v914 = vunpack.c.l.b16 %v518
    %v915 = vunpack.c.h.b16 %v518
    %v916 = vunpack.c.l.b16 %v519
    %v917 = vunpack.c.h.b16 %v519
    %v918 = vunpack.c.l.b16 %v520
    %v919 = vunpack.c.h.b16 %v520
    %v920 = vunpack.c.l.b16 %v521
    %v921 = vunpack.c.h.b16 %v521
    %v922 = vunpack.c.l.b16 %v522
    %v923 = vunpack.c.h.b16 %v522
    %v924 = vunpack.c.l.b16 %v523
    %v925 = vunpack.c.h.b16 %v523
    %v926 = vunpack.c.l.b16 %v524
    %v927 = vunpack.c.h.b16 %v524
    %v928 = vunpack.c.l.b16 %v525
    %v929 = vunpack.c.h.b16 %v525
    %v930 = vunpack.c.l.b16 %v526
    %v931 = vunpack.c.h.b16 %v526
    %v932 = vunpack.c.l.b16 %v527
    %v933 = vunpack.c.h.b16 %v527
    %v934 = vpack.c.b16 %v682, %v678
    %v935 = vpack.c.b16 %v683, %v679
    %v936 = vpack.c.b16 %v684, %v680
    %v937 = vpack.c.b16 %v685, %v681
    %v938 = vpack.c.b16 %v690, %v686
    %v939 = vpack.c.b16 %v691, %v687
    %v940 = vpack.c.b16 %v692, %v688
    %v941 = vpack.c.b16 %v693, %v689
    %v942 = vpack.c.b16 %v698, %v694
    %v943 = vpack.c.b16 %v699, %v695
    %v944 = vpack.c.b16 %v700, %v696
    %v945 = vpack.c.b16 %v701, %v697
    %v946 = vpack.c.b16 %v706, %v702
    %v947 = vpack.c.b16 %v707, %v703
    %v948 = vpack.c.b16 %v708, %v704
    %v949 = vpack.c.b16 %v709, %v705
    %v950 = vpack.c.b16 %v714, %v710
    %v951 = vpack.c.b16 %v715, %v711
    %v952 = vpack.c.b16 %v716, %v712
    %v953 = vpack.c.b16 %v717, %v713
    %v954 = vpack.c.b16 %v722, %v718
    %v955 = vpack.c.b16 %v723, %v719
    %v956 = vpack.c.b16 %v724, %v720
    %v957 = vpack.c.b16 %v725, %v721
    %v958 = vpack.c.b16 %v730, %v726
    %v959 = vpack.c.b16 %v731, %v727
    %v960 = vpack.c.b16 %v732, %v728
    %v961 = vpack.c.b16 %v733, %v729
    %v962 = vpack.c.b16 %v738, %v734
    %v963 = vpack.c.b16 %v739, %v735
    %v964 = vpack.c.b16 %v740, %v736
    %v965 = vpack.c.b16 %v741, %v737
    %v966 = vpack.c.b16 %v746, %v742
    %v967 = vpack.c.b16 %v747, %v743
    %v968 = vpack.c.b16 %v748, %v744
    %v969 = vpack.c.b16 %v749, %v745
    %v970 = vpack.c.b16 %v754, %v750
    %v971 = vpack.c.b16 %v755, %v751
    %v972 = vpack.c.b16 %v756, %v752
    %v973 = vpack.c.b16 %v757, %v753
    %v974 = vpack.c.b16 %v762, %v758
    %v975 = vpack.c.b16 %v763, %v759
    %v976 = vpack.c.b16 %v764, %v760
    %v977 = vpack.c.b16 %v765, %v761
    %v978 = vpack.c.b16 %v770, %v766
    %v979 = vpack.c.b16 %v771, %v767
    %v980 = vpack.c.b16 %v772, %v768
    %v981 = vpack.c.b16 %v773, %v769
    %v982 = vpack.c.b16 %v778, %v774
    %v983 = vpack.c.b16 %v779, %v775
    %v984 = vpack.c.b16 %v780, %v776
    %v985 = vpack.c.b16 %v781, %v777
    %v986 = vpack.c.b16 %v786, %v782
    %v987 = vpack.c.b16 %v787, %v783
    %v988 = vpack.c.b16 %v788, %v784
    %v989 = vpack.c.b16 %v789, %v785
    %v990 = vpack.c.b16 %v794, %v790
    %v991 = vpack.c.b16 %v795, %v791
    %v992 = vpack.c.b16 %v796, %v792
    %v993 = vpack.c.b16 %v797, %v793
    %v994 = vpack.c.b16 %v802, %v798
    %v995 = vpack.c.b16 %v803, %v799
    %v996 = vpack.c.b16 %v804, %v800
    %v997 = vpack.c.b16 %v805, %v801
    %v998 = vpack.c.b16 %v810, %v806
    %v999 = vpack.c.b16 %v811, %v807
    %v1000 = vpack.c.b16 %v812, %v808
    %v1001 = vpack.c.b16 %v813, %v809
    %v1002 = vpack.c.b16 %v818, %v814
    %v1003 = vpack.c.b16 %v819, %v815
    %v1004 = vpack.c.b16 %v820, %v816
    %v1005 = vpack.c.b16 %v821, %v817
    %v1006 = vpack.c.b16 %v826, %v822
    %v1007 = vpack.c.b16 %v827, %v823
    %v1008 = vpack.c.b16 %v828, %v824
    %v1009 = vpack.c.b16 %v829, %v825
    %v1010 = vpack.c.b16 %v834, %v830
    %v1011 = vpack.c.b16 %v835, %v831
    %v1012 = vpack.c.b16 %v836, %v832
    %v1013 = vpack.c.b16 %v837, %v833
    %v1014 = vpack.c.b16 %v842, %v838
    %v1015 = vpack.c.b16 %v843, %v839
    %v1016 = vpack.c.b16 %v844, %v840
    %v1017 = vpack.c.b16 %v845, %v841
    %v1018 = vpack.c.b16 %v850, %v846
    %v1019 = vpack.c.b16 %v851, %v847
    %v1020 = vpack.c.b16 %v852, %v848
    %v1021 = vpack.c.b16 %v853, %v849
    %v1022 = vpack.c.b16 %v858, %v854
    %v1023 = vpack.c.b16 %v859, %v855
    %v1024 = vpack.c.b16 %v860, %v856
    %v1025 = vpack.c.b16 %v861, %v857
    %v1026 = vpack.c.b16 %v866, %v862
    %v1027 = vpack.c.b16 %v867, %v863
    %v1028 = vpack.c.b16 %v868, %v864
    %v1029 = vpack.c.b16 %v869, %v865
    %v1030 = vpack.c.b16 %v874, %v870
    %v1031 = vpack.c.b16 %v875, %v871
    %v1032 = vpack.c.b16 %v876, %v872
    %v1033 = vpack.c.b16 %v877, %v873
    %v1034 = vpack.c.b16 %v882, %v878
    %v1035 = vpack.c.b16 %v883, %v879
    %v1036 = vpack.c.b16 %v884, %v880
    %v1037 = vpack.c.b16 %v885, %v881
    %v1038 = vpack.c.b16 %v890, %v886
    %v1039 = vpack.c.b16 %v891, %v887
    %v1040 = vpack.c.b16 %v892, %v888
    %v1041 = vpack.c.b16 %v893, %v889
    %v1042 = vpack.c.b16 %v898, %v894
    %v1043 = vpack.c.b16 %v899, %v895
    %v1044 = vpack.c.b16 %v900, %v896
    %v1045 = vpack.c.b16 %v901, %v897
    %v1046 = vpack.c.b16 %v906, %v902
    %v1047 = vpack.c.b16 %v907, %v903
    %v1048 = vpack.c.b16 %v908, %v904
    %v1049 = vpack.c.b16 %v909, %v905
    %v1050 = vpack.c.b16 %v914, %v910
    %v1051 = vpack.c.b16 %v915, %v911
    %v1052 = vpack.c.b16 %v916, %v912
    %v1053 = vpack.c.b16 %v917, %v913
    %v1054 = vpack.c.b16 %v922, %v918
    %v1055 = vpack.c.b16 %v923, %v919
    %v1056 = vpack.c.b16 %v924, %v920
    %v1057 = vpack.c.b16 %v925, %v921
    %v1058 = vpack.c.b16 %v930, %v926
    %v1059 = vpack.c.b16 %v931, %v927
    %v1060 = vpack.c.b16 %v932, %v928
    %v1061 = vpack.c.b16 %v933, %v929
    %1190 = vmatprep.subr.bf16.mxu0 %v935
    %1191 = vmatpush1.bf16.msra.mxu0 %v934
    %1192 = vmatprep.subr.bf16.mxu0 %v939
    %1193 = vmatpush1.bf16.msra.mxu0 %v938
    %1194 = vmatprep.subr.bf16.mxu0 %v943
    %1195 = vmatpush1.bf16.msra.mxu0 %v942
    %1196 = vmatprep.subr.bf16.mxu0 %v947
    %1197 = vmatpush1.bf16.msra.mxu0 %v946
    %1198 = vmatprep.subr.bf16.mxu0 %v951
    %1199 = vmatpush1.bf16.msra.mxu0 %v950
    %1200 = vmatprep.subr.bf16.mxu0 %v955
    %1201 = vmatpush1.bf16.msra.mxu0 %v954
    %1202 = vmatprep.subr.bf16.mxu0 %v959
    %1203 = vmatpush1.bf16.msra.mxu0 %v958
    %1204 = vmatprep.subr.bf16.mxu0 %v963
    %1205 = vmatpush1.bf16.msra.mxu0 %v962
    %1206 = vmatprep.subr.bf16.mxu0 %v967
    %1207 = vmatpush1.bf16.msra.mxu0 %v966
    %1208 = vmatprep.subr.bf16.mxu0 %v971
    %1209 = vmatpush1.bf16.msra.mxu0 %v970
    %1210 = vmatprep.subr.bf16.mxu0 %v975
    %1211 = vmatpush1.bf16.msra.mxu0 %v974
    %1212 = vmatprep.subr.bf16.mxu0 %v979
    %1213 = vmatpush1.bf16.msra.mxu0 %v978
    %1214 = vmatprep.subr.bf16.mxu0 %v983
    %1215 = vmatpush1.bf16.msra.mxu0 %v982
    %1216 = vmatprep.subr.bf16.mxu0 %v987
    %1217 = vmatpush1.bf16.msra.mxu0 %v986
    %1218 = vmatprep.subr.bf16.mxu0 %v991
    %1219 = vmatpush1.bf16.msra.mxu0 %v990
    %1220 = vmatprep.subr.bf16.mxu0 %v995
    %1221 = vmatpush1.bf16.msra.mxu0 %v994
    %1222 = vmatprep.mubr.bf16.mxu0 %v397
    %1223 = vmatmul.mubr.bf16.gmra.mrb[0].mxu0 %v396
    %v1224 = vpop.f32.mrb[0].mxu0
    %v1225 = vadd.f32 %v533, %v1224
    %v1226 = vpop.f32.mrb[0].mxu0
    %v1227 = vadd.f32 %v537, %v1226
    %v1228 = vpop.f32.mrb[0].mxu0
    %v1229 = vpop.f32.mrb[0].mxu0
    %1230 = vdwg.mxu0
    %1231 = vmatprep.subr.bf16.mxu0 %v999
    %1232 = vmatpush1.bf16.msra.mxu0 %v998
    %1233 = vmatprep.subr.bf16.mxu0 %v1003
    %1234 = vmatpush1.bf16.msra.mxu0 %v1002
    %1235 = vmatprep.subr.bf16.mxu0 %v1007
    %1236 = vmatpush1.bf16.msra.mxu0 %v1006
    %1237 = vmatprep.subr.bf16.mxu0 %v1011
    %1238 = vmatpush1.bf16.msra.mxu0 %v1010
    %1239 = vmatprep.subr.bf16.mxu0 %v1015
    %1240 = vmatpush1.bf16.msra.mxu0 %v1014
    %1241 = vmatprep.subr.bf16.mxu0 %v1019
    %1242 = vmatpush1.bf16.msra.mxu0 %v1018
    %1243 = vmatprep.subr.bf16.mxu0 %v1023
    %1244 = vmatpush1.bf16.msra.mxu0 %v1022
    %1245 = vmatprep.subr.bf16.mxu0 %v1027
    %1246 = vmatpush1.bf16.msra.mxu0 %v1026
    %1247 = vmatprep.subr.bf16.mxu0 %v1031
    %1248 = vmatpush1.bf16.msra.mxu0 %v1030
    %1249 = vmatprep.subr.bf16.mxu0 %v1035
    %1250 = vmatpush1.bf16.msra.mxu0 %v1034
    %1251 = vmatprep.subr.bf16.mxu0 %v1039
    %1252 = vmatpush1.bf16.msra.mxu0 %v1038
    %1253 = vmatprep.subr.bf16.mxu0 %v1043
    %1254 = vmatpush1.bf16.msra.mxu0 %v1042
    %1255 = vmatprep.subr.bf16.mxu0 %v1047
    %1256 = vmatpush1.bf16.msra.mxu0 %v1046
    %1257 = vmatprep.subr.bf16.mxu0 %v1051
    %1258 = vmatpush1.bf16.msra.mxu0 %v1050
    %1259 = vmatprep.subr.bf16.mxu0 %v1055
    %1260 = vmatpush1.bf16.msra.mxu0 %v1054
    %1261 = vmatprep.subr.bf16.mxu0 %v1059
    %1262 = vmatpush1.bf16.msra.mxu0 %v1058
    %1263 = vmatprep.mubr.bf16.mxu0 %v399
    %1264 = vmatmul.mubr.bf16.gmra.mrb[0].mxu0 %v398
    %v1265 = vpop.f32.mrb[0].mxu0
    %v1266 = vadd.f32 %v1225, %v1265
    %v1267 = vpop.f32.mrb[0].mxu0
    %v1268 = vadd.f32 %v1227, %v1267
    %v1269 = vpop.f32.mrb[0].mxu0
    %v1270 = vpop.f32.mrb[0].mxu0
    %1271 = vdwg.mxu0
    %1272 = vmatprep.subr.bf16.mxu0 %v937
    %1273 = vmatpush1.bf16.msra.mxu0 %v936
    %1274 = vmatprep.subr.bf16.mxu0 %v941
    %1275 = vmatpush1.bf16.msra.mxu0 %v940
    %1276 = vmatprep.subr.bf16.mxu0 %v945
    %1277 = vmatpush1.bf16.msra.mxu0 %v944
    %1278 = vmatprep.subr.bf16.mxu0 %v949
    %1279 = vmatpush1.bf16.msra.mxu0 %v948
    %1280 = vmatprep.subr.bf16.mxu0 %v953
    %1281 = vmatpush1.bf16.msra.mxu0 %v952
    %1282 = vmatprep.subr.bf16.mxu0 %v957
    %1283 = vmatpush1.bf16.msra.mxu0 %v956
    %1284 = vmatprep.subr.bf16.mxu0 %v961
    %1285 = vmatpush1.bf16.msra.mxu0 %v960
    %1286 = vmatprep.subr.bf16.mxu0 %v965
    %1287 = vmatpush1.bf16.msra.mxu0 %v964
    %1288 = vmatprep.subr.bf16.mxu0 %v969
    %1289 = vmatpush1.bf16.msra.mxu0 %v968
    %1290 = vmatprep.subr.bf16.mxu0 %v973
    %1291 = vmatpush1.bf16.msra.mxu0 %v972
    %1292 = vmatprep.subr.bf16.mxu0 %v977
    %1293 = vmatpush1.bf16.msra.mxu0 %v976
    %1294 = vmatprep.subr.bf16.mxu0 %v981
    %1295 = vmatpush1.bf16.msra.mxu0 %v980
    %1296 = vmatprep.subr.bf16.mxu0 %v985
    %1297 = vmatpush1.bf16.msra.mxu0 %v984
    %1298 = vmatprep.subr.bf16.mxu0 %v989
    %1299 = vmatpush1.bf16.msra.mxu0 %v988
    %1300 = vmatprep.subr.bf16.mxu0 %v993
    %1301 = vmatpush1.bf16.msra.mxu0 %v992
    %1302 = vmatprep.subr.bf16.mxu0 %v997
    %1303 = vmatpush1.bf16.msra.mxu0 %v996
    %1304 = vmatprep.mubr.bf16.mxu0 %v397
    %1305 = vmatmul.mubr.bf16.gmra.mrb[0].mxu0 %v396
    %v1306 = vpop.f32.mrb[0].mxu0
    %v1307 = vadd.f32 %v541, %v1306
    %v1308 = vpop.f32.mrb[0].mxu0
    %v1309 = vadd.f32 %v545, %v1308
    %v1310 = vpop.f32.mrb[0].mxu0
    %v1311 = vpop.f32.mrb[0].mxu0
    %1312 = vdwg.mxu0
    %1313 = vmatprep.subr.bf16.mxu0 %v1001
    %1314 = vmatpush1.bf16.msra.mxu0 %v1000
    %1315 = vmatprep.subr.bf16.mxu0 %v1005
    %1316 = vmatpush1.bf16.msra.mxu0 %v1004
    %1317 = vmatprep.subr.bf16.mxu0 %v1009
    %1318 = vmatpush1.bf16.msra.mxu0 %v1008
    %1319 = vmatprep.subr.bf16.mxu0 %v1013
    %1320 = vmatpush1.bf16.msra.mxu0 %v1012
    %1321 = vmatprep.subr.bf16.mxu0 %v1017
    %1322 = vmatpush1.bf16.msra.mxu0 %v1016
    %1323 = vmatprep.subr.bf16.mxu0 %v1021
    %1324 = vmatpush1.bf16.msra.mxu0 %v1020
    %1325 = vmatprep.subr.bf16.mxu0 %v1025
    %1326 = vmatpush1.bf16.msra.mxu0 %v1024
    %1327 = vmatprep.subr.bf16.mxu0 %v1029
    %1328 = vmatpush1.bf16.msra.mxu0 %v1028
    %1329 = vmatprep.subr.bf16.mxu0 %v1033
    %1330 = vmatpush1.bf16.msra.mxu0 %v1032
    %1331 = vmatprep.subr.bf16.mxu0 %v1037
    %1332 = vmatpush1.bf16.msra.mxu0 %v1036
    %1333 = vmatprep.subr.bf16.mxu0 %v1041
    %1334 = vmatpush1.bf16.msra.mxu0 %v1040
    %1335 = vmatprep.subr.bf16.mxu0 %v1045
    %1336 = vmatpush1.bf16.msra.mxu0 %v1044
    %1337 = vmatprep.subr.bf16.mxu0 %v1049
    %1338 = vmatpush1.bf16.msra.mxu0 %v1048
    %1339 = vmatprep.subr.bf16.mxu0 %v1053
    %1340 = vmatpush1.bf16.msra.mxu0 %v1052
    %1341 = vmatprep.subr.bf16.mxu0 %v1057
    %1342 = vmatpush1.bf16.msra.mxu0 %v1056
    %1343 = vmatprep.subr.bf16.mxu0 %v1061
    %1344 = vmatpush1.bf16.msra.mxu0 %v1060
    %1345 = vmatprep.mubr.bf16.mxu0 %v399
    %1346 = vmatmul.mubr.bf16.gmra.mrb[0].mxu0 %v398
    %v1347 = vpop.f32.mrb[0].mxu0
    %v1348 = vadd.f32 %v1307, %v1347
    %v1349 = vpop.f32.mrb[0].mxu0
    %v1350 = vadd.f32 %v1309, %v1349
    %v1351 = vpop.f32.mrb[0].mxu0
    %v1352 = vpop.f32.mrb[0].mxu0
    %1353 = vdwg.mxu0
    %v1354 = vxor.u32 %v1266, 2147483648
    %v1355 = vxor.u32 %v1268, 2147483648
    %v1356 = vxor.u32 %v1348, 2147483648
    %v1357 = vxor.u32 %v1350, 2147483648
    %v1358 = vmul.f32 %v1354, 1.442695
    %v1359 = vpow.pop %v1358
    %v1360 = vmul.f32 %v1355, 1.442695
    %v1361 = vpow.pop %v1360
    %v1362 = vmul.f32 %v1356, 1.442695
    %v1363 = vpow.pop %v1362
    %v1364 = vmul.f32 %v1357, 1.442695
    %v1365 = vpow.pop %v1364
    %v1366 = vadd.f32 %v1359, 1.0
    %v1367 = vadd.f32 %v1361, 1.0
    %v1368 = vadd.f32 %v1363, 1.0
    %v1369 = vadd.f32 %v1365, 1.0
    %v1370 = vrcp.pop %v1366
    %v1371 = vmul.f32 1.0, %v1370
    %v1372 = vrcp.pop %v1367
    %v1373 = vmul.f32 1.0, %v1372
    %v1374 = vrcp.pop %v1368
    %v1375 = vmul.f32 1.0, %v1374
    %v1376 = vrcp.pop %v1369
    %v1377 = vmul.f32 1.0, %v1376
    %v1378 = vmul.f32 %v1266, %v1371
    %v1379 = vmul.f32 %v1268, %v1373
    %v1380 = vmul.f32 %v1348, %v1375
    %v1381 = vmul.f32 %v1350, %v1377
    %v1382 = vpack.c.bf16 %v1378, %v1378
    %v1383 = vpack.c.bf16 %v1379, %v1379
    %v1384 = vpack.c.bf16 %v1380, %v1380
    %v1385 = vpack.c.bf16 %v1381, %v1381
    %v1386 = vld [vmem:[#allocation8] sm:$0xff]
    %v1387 = vld [vmem:[#allocation8 + $0x8] sm:$0xff]
    %v1388 = vld [vmem:[#allocation8 + $0x10] sm:$0xff]
    %v1389 = vld [vmem:[#allocation8 + $0x18] sm:$0xff]
    %v1390 = vld [vmem:[#allocation8 + $0x20] sm:$0xff]
    %v1391 = vld [vmem:[#allocation8 + $0x28] sm:$0xff]
    %v1392 = vld [vmem:[#allocation8 + $0x30] sm:$0xff]
    %v1393 = vld [vmem:[#allocation8 + $0x38] sm:$0xff]
    %v1394 = vld [vmem:[#allocation8 + $0x40] sm:$0xff]
    %v1395 = vld [vmem:[#allocation8 + $0x48] sm:$0xff]
    %v1396 = vld [vmem:[#allocation8 + $0x50] sm:$0xff]
    %v1397 = vld [vmem:[#allocation8 + $0x58] sm:$0xff]
    %v1398 = vld [vmem:[#allocation8 + $0x60] sm:$0xff]
    %v1399 = vld [vmem:[#allocation8 + $0x68] sm:$0xff]
    %v1400 = vld [vmem:[#allocation8 + $0x70] sm:$0xff]
    %v1401 = vld [vmem:[#allocation8 + $0x78] sm:$0xff]
    %v1402 = vld [vmem:[#allocation8 + $0x80] sm:$0xff]
    %v1403 = vld [vmem:[#allocation8 + $0x88] sm:$0xff]
    %v1404 = vld [vmem:[#allocation8 + $0x90] sm:$0xff]
    %v1405 = vld [vmem:[#allocation8 + $0x98] sm:$0xff]
    %v1406 = vld [vmem:[#allocation8 + $0xa0] sm:$0xff]
    %v1407 = vld [vmem:[#allocation8 + $0xa8] sm:$0xff]
    %v1408 = vld [vmem:[#allocation8 + $0xb0] sm:$0xff]
    %v1409 = vld [vmem:[#allocation8 + $0xb8] sm:$0xff]
    %v1410 = vld [vmem:[#allocation8 + $0xc0] sm:$0xff]
    %v1411 = vld [vmem:[#allocation8 + $0xc8] sm:$0xff]
    %v1412 = vld [vmem:[#allocation8 + $0xd0] sm:$0xff]
    %v1413 = vld [vmem:[#allocation8 + $0xd8] sm:$0xff]
    %v1414 = vld [vmem:[#allocation8 + $0xe0] sm:$0xff]
    %v1415 = vld [vmem:[#allocation8 + $0xe8] sm:$0xff]
    %v1416 = vld [vmem:[#allocation8 + $0xf0] sm:$0xff]
    %v1417 = vld [vmem:[#allocation8 + $0xf8] sm:$0xff]
    %v1418 = vld [vmem:[#allocation8 + $0x100] sm:$0xff]
    %v1419 = vld [vmem:[#allocation8 + $0x108] sm:$0xff]
    %v1420 = vld [vmem:[#allocation8 + $0x110] sm:$0xff]
    %v1421 = vld [vmem:[#allocation8 + $0x118] sm:$0xff]
    %v1422 = vld [vmem:[#allocation8 + $0x120] sm:$0xff]
    %v1423 = vld [vmem:[#allocation8 + $0x128] sm:$0xff]
    %v1424 = vld [vmem:[#allocation8 + $0x130] sm:$0xff]
    %v1425 = vld [vmem:[#allocation8 + $0x138] sm:$0xff]
    %v1426 = vld [vmem:[#allocation8 + $0x140] sm:$0xff]
    %v1427 = vld [vmem:[#allocation8 + $0x148] sm:$0xff]
    %v1428 = vld [vmem:[#allocation8 + $0x150] sm:$0xff]
    %v1429 = vld [vmem:[#allocation8 + $0x158] sm:$0xff]
    %v1430 = vld [vmem:[#allocation8 + $0x160] sm:$0xff]
    %v1431 = vld [vmem:[#allocation8 + $0x168] sm:$0xff]
    %v1432 = vld [vmem:[#allocation8 + $0x170] sm:$0xff]
    %v1433 = vld [vmem:[#allocation8 + $0x178] sm:$0xff]
    %v1434 = vld [vmem:[#allocation8 + $0x180] sm:$0xff]
    %v1435 = vld [vmem:[#allocation8 + $0x188] sm:$0xff]
    %v1436 = vld [vmem:[#allocation8 + $0x190] sm:$0xff]
    %v1437 = vld [vmem:[#allocation8 + $0x198] sm:$0xff]
    %v1438 = vld [vmem:[#allocation8 + $0x1a0] sm:$0xff]
    %v1439 = vld [vmem:[#allocation8 + $0x1a8] sm:$0xff]
    %v1440 = vld [vmem:[#allocation8 + $0x1b0] sm:$0xff]
    %v1441 = vld [vmem:[#allocation8 + $0x1b8] sm:$0xff]
    %v1442 = vld [vmem:[#allocation8 + $0x1c0] sm:$0xff]
    %v1443 = vld [vmem:[#allocation8 + $0x1c8] sm:$0xff]
    %v1444 = vld [vmem:[#allocation8 + $0x1d0] sm:$0xff]
    %v1445 = vld [vmem:[#allocation8 + $0x1d8] sm:$0xff]
    %v1446 = vld [vmem:[#allocation8 + $0x1e0] sm:$0xff]
    %v1447 = vld [vmem:[#allocation8 + $0x1e8] sm:$0xff]
    %v1448 = vld [vmem:[#allocation8 + $0x1f0] sm:$0xff]
    %v1449 = vld [vmem:[#allocation8 + $0x1f8] sm:$0xff]
    %v1450 = vld [vmem:[#allocation8 + $0x200] sm:$0xff]
    %v1451 = vld [vmem:[#allocation8 + $0x208] sm:$0xff]
    %v1452 = vld [vmem:[#allocation8 + $0x210] sm:$0xff]
    %v1453 = vld [vmem:[#allocation8 + $0x218] sm:$0xff]
    %v1454 = vld [vmem:[#allocation8 + $0x220] sm:$0xff]
    %v1455 = vld [vmem:[#allocation8 + $0x228] sm:$0xff]
    %v1456 = vld [vmem:[#allocation8 + $0x230] sm:$0xff]
    %v1457 = vld [vmem:[#allocation8 + $0x238] sm:$0xff]
    %v1458 = vld [vmem:[#allocation8 + $0x240] sm:$0xff]
    %v1459 = vld [vmem:[#allocation8 + $0x248] sm:$0xff]
    %v1460 = vld [vmem:[#allocation8 + $0x250] sm:$0xff]
    %v1461 = vld [vmem:[#allocation8 + $0x258] sm:$0xff]
    %v1462 = vld [vmem:[#allocation8 + $0x260] sm:$0xff]
    %v1463 = vld [vmem:[#allocation8 + $0x268] sm:$0xff]
    %v1464 = vld [vmem:[#allocation8 + $0x270] sm:$0xff]
    %v1465 = vld [vmem:[#allocation8 + $0x278] sm:$0xff]
    %v1466 = vld [vmem:[#allocation8 + $0x280] sm:$0xff]
    %v1467 = vld [vmem:[#allocation8 + $0x288] sm:$0xff]
    %v1468 = vld [vmem:[#allocation8 + $0x290] sm:$0xff]
    %v1469 = vld [vmem:[#allocation8 + $0x298] sm:$0xff]
    %v1470 = vld [vmem:[#allocation8 + $0x2a0] sm:$0xff]
    %v1471 = vld [vmem:[#allocation8 + $0x2a8] sm:$0xff]
    %v1472 = vld [vmem:[#allocation8 + $0x2b0] sm:$0xff]
    %v1473 = vld [vmem:[#allocation8 + $0x2b8] sm:$0xff]
    %v1474 = vld [vmem:[#allocation8 + $0x2c0] sm:$0xff]
    %v1475 = vld [vmem:[#allocation8 + $0x2c8] sm:$0xff]
    %v1476 = vld [vmem:[#allocation8 + $0x2d0] sm:$0xff]
    %v1477 = vld [vmem:[#allocation8 + $0x2d8] sm:$0xff]
    %v1478 = vld [vmem:[#allocation8 + $0x2e0] sm:$0xff]
    %v1479 = vld [vmem:[#allocation8 + $0x2e8] sm:$0xff]
    %v1480 = vld [vmem:[#allocation8 + $0x2f0] sm:$0xff]
    %v1481 = vld [vmem:[#allocation8 + $0x2f8] sm:$0xff]
    %v1482 = vld [vmem:[#allocation8 + $0x300] sm:$0xff]
    %v1483 = vld [vmem:[#allocation8 + $0x308] sm:$0xff]
    %v1484 = vld [vmem:[#allocation8 + $0x310] sm:$0xff]
    %v1485 = vld [vmem:[#allocation8 + $0x318] sm:$0xff]
    %v1486 = vld [vmem:[#allocation8 + $0x320] sm:$0xff]
    %v1487 = vld [vmem:[#allocation8 + $0x328] sm:$0xff]
    %v1488 = vld [vmem:[#allocation8 + $0x330] sm:$0xff]
    %v1489 = vld [vmem:[#allocation8 + $0x338] sm:$0xff]
    %v1490 = vld [vmem:[#allocation8 + $0x340] sm:$0xff]
    %v1491 = vld [vmem:[#allocation8 + $0x348] sm:$0xff]
    %v1492 = vld [vmem:[#allocation8 + $0x350] sm:$0xff]
    %v1493 = vld [vmem:[#allocation8 + $0x358] sm:$0xff]
    %v1494 = vld [vmem:[#allocation8 + $0x360] sm:$0xff]
    %v1495 = vld [vmem:[#allocation8 + $0x368] sm:$0xff]
    %v1496 = vld [vmem:[#allocation8 + $0x370] sm:$0xff]
    %v1497 = vld [vmem:[#allocation8 + $0x378] sm:$0xff]
    %v1498 = vld [vmem:[#allocation8 + $0x380] sm:$0xff]
    %v1499 = vld [vmem:[#allocation8 + $0x388] sm:$0xff]
    %v1500 = vld [vmem:[#allocation8 + $0x390] sm:$0xff]
    %v1501 = vld [vmem:[#allocation8 + $0x398] sm:$0xff]
    %v1502 = vld [vmem:[#allocation8 + $0x3a0] sm:$0xff]
    %v1503 = vld [vmem:[#allocation8 + $0x3a8] sm:$0xff]
    %v1504 = vld [vmem:[#allocation8 + $0x3b0] sm:$0xff]
    %v1505 = vld [vmem:[#allocation8 + $0x3b8] sm:$0xff]
    %v1506 = vld [vmem:[#allocation8 + $0x3c0] sm:$0xff]
    %v1507 = vld [vmem:[#allocation8 + $0x3c8] sm:$0xff]
    %v1508 = vld [vmem:[#allocation8 + $0x3d0] sm:$0xff]
    %v1509 = vld [vmem:[#allocation8 + $0x3d8] sm:$0xff]
    %v1510 = vld [vmem:[#allocation8 + $0x3e0] sm:$0xff]
    %v1511 = vld [vmem:[#allocation8 + $0x3e8] sm:$0xff]
    %v1512 = vld [vmem:[#allocation8 + $0x3f0] sm:$0xff]
    %v1513 = vld [vmem:[#allocation8 + $0x3f8] sm:$0xff]
    %v1514 = vld [vmem:[%s8] sm:$0xf]
    %v1516 = vlaneseq
    %v1517 = vshrl.u32 %v1516, 7
    %v1518 = vsub.s32 0, %v1517
    %v1519 = vrot.slane %v1514, %v1518
    %v1520 = vlaneseq
    %v1521 = vshrl.u32 %v1520, 7
    %v1522 = vsub.s32 1, %v1521
    %v1523 = vrot.slane %v1514, %v1522
    %v1524 = vlaneseq
    %v1525 = vshrl.u32 %v1524, 7
    %v1526 = vsub.s32 2, %v1525
    %v1527 = vrot.slane %v1514, %v1526
    %v1528 = vlaneseq
    %v1529 = vshrl.u32 %v1528, 7
    %v1530 = vsub.s32 3, %v1529
    %v1531 = vrot.slane %v1514, %v1530
    %v1664 = vunpack.c.l.b16 %v1386
    %v1665 = vunpack.c.h.b16 %v1386
    %v1666 = vunpack.c.l.b16 %v1387
    %v1667 = vunpack.c.h.b16 %v1387
    %v1668 = vunpack.c.l.b16 %v1388
    %v1669 = vunpack.c.h.b16 %v1388
    %v1670 = vunpack.c.l.b16 %v1389
    %v1671 = vunpack.c.h.b16 %v1389
    %v1672 = vunpack.c.l.b16 %v1390
    %v1673 = vunpack.c.h.b16 %v1390
    %v1674 = vunpack.c.l.b16 %v1391
    %v1675 = vunpack.c.h.b16 %v1391
    %v1676 = vunpack.c.l.b16 %v1392
    %v1677 = vunpack.c.h.b16 %v1392
    %v1678 = vunpack.c.l.b16 %v1393
    %v1679 = vunpack.c.h.b16 %v1393
    %v1680 = vunpack.c.l.b16 %v1394
    %v1681 = vunpack.c.h.b16 %v1394
    %v1682 = vunpack.c.l.b16 %v1395
    %v1683 = vunpack.c.h.b16 %v1395
    %v1684 = vunpack.c.l.b16 %v1396
    %v1685 = vunpack.c.h.b16 %v1396
    %v1686 = vunpack.c.l.b16 %v1397
    %v1687 = vunpack.c.h.b16 %v1397
    %v1688 = vunpack.c.l.b16 %v1398
    %v1689 = vunpack.c.h.b16 %v1398
    %v1690 = vunpack.c.l.b16 %v1399
    %v1691 = vunpack.c.h.b16 %v1399
    %v1692 = vunpack.c.l.b16 %v1400
    %v1693 = vunpack.c.h.b16 %v1400
    %v1694 = vunpack.c.l.b16 %v1401
    %v1695 = vunpack.c.h.b16 %v1401
    %v1696 = vunpack.c.l.b16 %v1402
    %v1697 = vunpack.c.h.b16 %v1402
    %v1698 = vunpack.c.l.b16 %v1403
    %v1699 = vunpack.c.h.b16 %v1403
    %v1700 = vunpack.c.l.b16 %v1404
    %v1701 = vunpack.c.h.b16 %v1404
    %v1702 = vunpack.c.l.b16 %v1405
    %v1703 = vunpack.c.h.b16 %v1405
    %v1704 = vunpack.c.l.b16 %v1406
    %v1705 = vunpack.c.h.b16 %v1406
    %v1706 = vunpack.c.l.b16 %v1407
    %v1707 = vunpack.c.h.b16 %v1407
    %v1708 = vunpack.c.l.b16 %v1408
    %v1709 = vunpack.c.h.b16 %v1408
    %v1710 = vunpack.c.l.b16 %v1409
    %v1711 = vunpack.c.h.b16 %v1409
    %v1712 = vunpack.c.l.b16 %v1410
    %v1713 = vunpack.c.h.b16 %v1410
    %v1714 = vunpack.c.l.b16 %v1411
    %v1715 = vunpack.c.h.b16 %v1411
    %v1716 = vunpack.c.l.b16 %v1412
    %v1717 = vunpack.c.h.b16 %v1412
    %v1718 = vunpack.c.l.b16 %v1413
    %v1719 = vunpack.c.h.b16 %v1413
    %v1720 = vunpack.c.l.b16 %v1414
    %v1721 = vunpack.c.h.b16 %v1414
    %v1722 = vunpack.c.l.b16 %v1415
    %v1723 = vunpack.c.h.b16 %v1415
    %v1724 = vunpack.c.l.b16 %v1416
    %v1725 = vunpack.c.h.b16 %v1416
    %v1726 = vunpack.c.l.b16 %v1417
    %v1727 = vunpack.c.h.b16 %v1417
    %v1728 = vunpack.c.l.b16 %v1418
    %v1729 = vunpack.c.h.b16 %v1418
    %v1730 = vunpack.c.l.b16 %v1419
    %v1731 = vunpack.c.h.b16 %v1419
    %v1732 = vunpack.c.l.b16 %v1420
    %v1733 = vunpack.c.h.b16 %v1420
    %v1734 = vunpack.c.l.b16 %v1421
    %v1735 = vunpack.c.h.b16 %v1421
    %v1736 = vunpack.c.l.b16 %v1422
    %v1737 = vunpack.c.h.b16 %v1422
    %v1738 = vunpack.c.l.b16 %v1423
    %v1739 = vunpack.c.h.b16 %v1423
    %v1740 = vunpack.c.l.b16 %v1424
    %v1741 = vunpack.c.h.b16 %v1424
    %v1742 = vunpack.c.l.b16 %v1425
    %v1743 = vunpack.c.h.b16 %v1425
    %v1744 = vunpack.c.l.b16 %v1426
    %v1745 = vunpack.c.h.b16 %v1426
    %v1746 = vunpack.c.l.b16 %v1427
    %v1747 = vunpack.c.h.b16 %v1427
    %v1748 = vunpack.c.l.b16 %v1428
    %v1749 = vunpack.c.h.b16 %v1428
    %v1750 = vunpack.c.l.b16 %v1429
    %v1751 = vunpack.c.h.b16 %v1429
    %v1752 = vunpack.c.l.b16 %v1430
    %v1753 = vunpack.c.h.b16 %v1430
    %v1754 = vunpack.c.l.b16 %v1431
    %v1755 = vunpack.c.h.b16 %v1431
    %v1756 = vunpack.c.l.b16 %v1432
    %v1757 = vunpack.c.h.b16 %v1432
    %v1758 = vunpack.c.l.b16 %v1433
    %v1759 = vunpack.c.h.b16 %v1433
    %v1760 = vunpack.c.l.b16 %v1434
    %v1761 = vunpack.c.h.b16 %v1434
    %v1762 = vunpack.c.l.b16 %v1435
    %v1763 = vunpack.c.h.b16 %v1435
    %v1764 = vunpack.c.l.b16 %v1436
    %v1765 = vunpack.c.h.b16 %v1436
    %v1766 = vunpack.c.l.b16 %v1437
    %v1767 = vunpack.c.h.b16 %v1437
    %v1768 = vunpack.c.l.b16 %v1438
    %v1769 = vunpack.c.h.b16 %v1438
    %v1770 = vunpack.c.l.b16 %v1439
    %v1771 = vunpack.c.h.b16 %v1439
    %v1772 = vunpack.c.l.b16 %v1440
    %v1773 = vunpack.c.h.b16 %v1440
    %v1774 = vunpack.c.l.b16 %v1441
    %v1775 = vunpack.c.h.b16 %v1441
    %v1776 = vunpack.c.l.b16 %v1442
    %v1777 = vunpack.c.h.b16 %v1442
    %v1778 = vunpack.c.l.b16 %v1443
    %v1779 = vunpack.c.h.b16 %v1443
    %v1780 = vunpack.c.l.b16 %v1444
    %v1781 = vunpack.c.h.b16 %v1444
    %v1782 = vunpack.c.l.b16 %v1445
    %v1783 = vunpack.c.h.b16 %v1445
    %v1784 = vunpack.c.l.b16 %v1446
    %v1785 = vunpack.c.h.b16 %v1446
    %v1786 = vunpack.c.l.b16 %v1447
    %v1787 = vunpack.c.h.b16 %v1447
    %v1788 = vunpack.c.l.b16 %v1448
    %v1789 = vunpack.c.h.b16 %v1448
    %v1790 = vunpack.c.l.b16 %v1449
    %v1791 = vunpack.c.h.b16 %v1449
    %v1792 = vunpack.c.l.b16 %v1450
    %v1793 = vunpack.c.h.b16 %v1450
    %v1794 = vunpack.c.l.b16 %v1451
    %v1795 = vunpack.c.h.b16 %v1451
    %v1796 = vunpack.c.l.b16 %v1452
    %v1797 = vunpack.c.h.b16 %v1452
    %v1798 = vunpack.c.l.b16 %v1453
    %v1799 = vunpack.c.h.b16 %v1453
    %v1800 = vunpack.c.l.b16 %v1454
    %v1801 = vunpack.c.h.b16 %v1454
    %v1802 = vunpack.c.l.b16 %v1455
    %v1803 = vunpack.c.h.b16 %v1455
    %v1804 = vunpack.c.l.b16 %v1456
    %v1805 = vunpack.c.h.b16 %v1456
    %v1806 = vunpack.c.l.b16 %v1457
    %v1807 = vunpack.c.h.b16 %v1457
    %v1808 = vunpack.c.l.b16 %v1458
    %v1809 = vunpack.c.h.b16 %v1458
    %v1810 = vunpack.c.l.b16 %v1459
    %v1811 = vunpack.c.h.b16 %v1459
    %v1812 = vunpack.c.l.b16 %v1460
    %v1813 = vunpack.c.h.b16 %v1460
    %v1814 = vunpack.c.l.b16 %v1461
    %v1815 = vunpack.c.h.b16 %v1461
    %v1816 = vunpack.c.l.b16 %v1462
    %v1817 = vunpack.c.h.b16 %v1462
    %v1818 = vunpack.c.l.b16 %v1463
    %v1819 = vunpack.c.h.b16 %v1463
    %v1820 = vunpack.c.l.b16 %v1464
    %v1821 = vunpack.c.h.b16 %v1464
    %v1822 = vunpack.c.l.b16 %v1465
    %v1823 = vunpack.c.h.b16 %v1465
    %v1824 = vunpack.c.l.b16 %v1466
    %v1825 = vunpack.c.h.b16 %v1466
    %v1826 = vunpack.c.l.b16 %v1467
    %v1827 = vunpack.c.h.b16 %v1467
    %v1828 = vunpack.c.l.b16 %v1468
    %v1829 = vunpack.c.h.b16 %v1468
    %v1830 = vunpack.c.l.b16 %v1469
    %v1831 = vunpack.c.h.b16 %v1469
    %v1832 = vunpack.c.l.b16 %v1470
    %v1833 = vunpack.c.h.b16 %v1470
    %v1834 = vunpack.c.l.b16 %v1471
    %v1835 = vunpack.c.h.b16 %v1471
    %v1836 = vunpack.c.l.b16 %v1472
    %v1837 = vunpack.c.h.b16 %v1472
    %v1838 = vunpack.c.l.b16 %v1473
    %v1839 = vunpack.c.h.b16 %v1473
    %v1840 = vunpack.c.l.b16 %v1474
    %v1841 = vunpack.c.h.b16 %v1474
    %v1842 = vunpack.c.l.b16 %v1475
    %v1843 = vunpack.c.h.b16 %v1475
    %v1844 = vunpack.c.l.b16 %v1476
    %v1845 = vunpack.c.h.b16 %v1476
    %v1846 = vunpack.c.l.b16 %v1477
    %v1847 = vunpack.c.h.b16 %v1477
    %v1848 = vunpack.c.l.b16 %v1478
    %v1849 = vunpack.c.h.b16 %v1478
    %v1850 = vunpack.c.l.b16 %v1479
    %v1851 = vunpack.c.h.b16 %v1479
    %v1852 = vunpack.c.l.b16 %v1480
    %v1853 = vunpack.c.h.b16 %v1480
    %v1854 = vunpack.c.l.b16 %v1481
    %v1855 = vunpack.c.h.b16 %v1481
    %v1856 = vunpack.c.l.b16 %v1482
    %v1857 = vunpack.c.h.b16 %v1482
    %v1858 = vunpack.c.l.b16 %v1483
    %v1859 = vunpack.c.h.b16 %v1483
    %v1860 = vunpack.c.l.b16 %v1484
    %v1861 = vunpack.c.h.b16 %v1484
    %v1862 = vunpack.c.l.b16 %v1485
    %v1863 = vunpack.c.h.b16 %v1485
    %v1864 = vunpack.c.l.b16 %v1486
    %v1865 = vunpack.c.h.b16 %v1486
    %v1866 = vunpack.c.l.b16 %v1487
    %v1867 = vunpack.c.h.b16 %v1487
    %v1868 = vunpack.c.l.b16 %v1488
    %v1869 = vunpack.c.h.b16 %v1488
    %v1870 = vunpack.c.l.b16 %v1489
    %v1871 = vunpack.c.h.b16 %v1489
    %v1872 = vunpack.c.l.b16 %v1490
    %v1873 = vunpack.c.h.b16 %v1490
    %v1874 = vunpack.c.l.b16 %v1491
    %v1875 = vunpack.c.h.b16 %v1491
    %v1876 = vunpack.c.l.b16 %v1492
    %v1877 = vunpack.c.h.b16 %v1492
    %v1878 = vunpack.c.l.b16 %v1493
    %v1879 = vunpack.c.h.b16 %v1493
    %v1880 = vunpack.c.l.b16 %v1494
    %v1881 = vunpack.c.h.b16 %v1494
    %v1882 = vunpack.c.l.b16 %v1495
    %v1883 = vunpack.c.h.b16 %v1495
    %v1884 = vunpack.c.l.b16 %v1496
    %v1885 = vunpack.c.h.b16 %v1496
    %v1886 = vunpack.c.l.b16 %v1497
    %v1887 = vunpack.c.h.b16 %v1497
    %v1888 = vunpack.c.l.b16 %v1498
    %v1889 = vunpack.c.h.b16 %v1498
    %v1890 = vunpack.c.l.b16 %v1499
    %v1891 = vunpack.c.h.b16 %v1499
    %v1892 = vunpack.c.l.b16 %v1500
    %v1893 = vunpack.c.h.b16 %v1500
    %v1894 = vunpack.c.l.b16 %v1501
    %v1895 = vunpack.c.h.b16 %v1501
    %v1896 = vunpack.c.l.b16 %v1502
    %v1897 = vunpack.c.h.b16 %v1502
    %v1898 = vunpack.c.l.b16 %v1503
    %v1899 = vunpack.c.h.b16 %v1503
    %v1900 = vunpack.c.l.b16 %v1504
    %v1901 = vunpack.c.h.b16 %v1504
    %v1902 = vunpack.c.l.b16 %v1505
    %v1903 = vunpack.c.h.b16 %v1505
    %v1904 = vunpack.c.l.b16 %v1506
    %v1905 = vunpack.c.h.b16 %v1506
    %v1906 = vunpack.c.l.b16 %v1507
    %v1907 = vunpack.c.h.b16 %v1507
    %v1908 = vunpack.c.l.b16 %v1508
    %v1909 = vunpack.c.h.b16 %v1508
    %v1910 = vunpack.c.l.b16 %v1509
    %v1911 = vunpack.c.h.b16 %v1509
    %v1912 = vunpack.c.l.b16 %v1510
    %v1913 = vunpack.c.h.b16 %v1510
    %v1914 = vunpack.c.l.b16 %v1511
    %v1915 = vunpack.c.h.b16 %v1511
    %v1916 = vunpack.c.l.b16 %v1512
    %v1917 = vunpack.c.h.b16 %v1512
    %v1918 = vunpack.c.l.b16 %v1513
    %v1919 = vunpack.c.h.b16 %v1513
    %v1920 = vpack.c.b16 %v1668, %v1664
    %v1921 = vpack.c.b16 %v1669, %v1665
    %v1922 = vpack.c.b16 %v1670, %v1666
    %v1923 = vpack.c.b16 %v1671, %v1667
    %v1924 = vpack.c.b16 %v1676, %v1672
    %v1925 = vpack.c.b16 %v1677, %v1673
    %v1926 = vpack.c.b16 %v1678, %v1674
    %v1927 = vpack.c.b16 %v1679, %v1675
    %v1928 = vpack.c.b16 %v1684, %v1680
    %v1929 = vpack.c.b16 %v1685, %v1681
    %v1930 = vpack.c.b16 %v1686, %v1682
    %v1931 = vpack.c.b16 %v1687, %v1683
    %v1932 = vpack.c.b16 %v1692, %v1688
    %v1933 = vpack.c.b16 %v1693, %v1689
    %v1934 = vpack.c.b16 %v1694, %v1690
    %v1935 = vpack.c.b16 %v1695, %v1691
    %v1936 = vpack.c.b16 %v1700, %v1696
    %v1937 = vpack.c.b16 %v1701, %v1697
    %v1938 = vpack.c.b16 %v1702, %v1698
    %v1939 = vpack.c.b16 %v1703, %v1699
    %v1940 = vpack.c.b16 %v1708, %v1704
    %v1941 = vpack.c.b16 %v1709, %v1705
    %v1942 = vpack.c.b16 %v1710, %v1706
    %v1943 = vpack.c.b16 %v1711, %v1707
    %v1944 = vpack.c.b16 %v1716, %v1712
    %v1945 = vpack.c.b16 %v1717, %v1713
    %v1946 = vpack.c.b16 %v1718, %v1714
    %v1947 = vpack.c.b16 %v1719, %v1715
    %v1948 = vpack.c.b16 %v1724, %v1720
    %v1949 = vpack.c.b16 %v1725, %v1721
    %v1950 = vpack.c.b16 %v1726, %v1722
    %v1951 = vpack.c.b16 %v1727, %v1723
    %v1952 = vpack.c.b16 %v1732, %v1728
    %v1953 = vpack.c.b16 %v1733, %v1729
    %v1954 = vpack.c.b16 %v1734, %v1730
    %v1955 = vpack.c.b16 %v1735, %v1731
    %v1956 = vpack.c.b16 %v1740, %v1736
    %v1957 = vpack.c.b16 %v1741, %v1737
    %v1958 = vpack.c.b16 %v1742, %v1738
    %v1959 = vpack.c.b16 %v1743, %v1739
    %v1960 = vpack.c.b16 %v1748, %v1744
    %v1961 = vpack.c.b16 %v1749, %v1745
    %v1962 = vpack.c.b16 %v1750, %v1746
    %v1963 = vpack.c.b16 %v1751, %v1747
    %v1964 = vpack.c.b16 %v1756, %v1752
    %v1965 = vpack.c.b16 %v1757, %v1753
    %v1966 = vpack.c.b16 %v1758, %v1754
    %v1967 = vpack.c.b16 %v1759, %v1755
    %v1968 = vpack.c.b16 %v1764, %v1760
    %v1969 = vpack.c.b16 %v1765, %v1761
    %v1970 = vpack.c.b16 %v1766, %v1762
    %v1971 = vpack.c.b16 %v1767, %v1763
    %v1972 = vpack.c.b16 %v1772, %v1768
    %v1973 = vpack.c.b16 %v1773, %v1769
    %v1974 = vpack.c.b16 %v1774, %v1770
    %v1975 = vpack.c.b16 %v1775, %v1771
    %v1976 = vpack.c.b16 %v1780, %v1776
    %v1977 = vpack.c.b16 %v1781, %v1777
    %v1978 = vpack.c.b16 %v1782, %v1778
    %v1979 = vpack.c.b16 %v1783, %v1779
    %v1980 = vpack.c.b16 %v1788, %v1784
    %v1981 = vpack.c.b16 %v1789, %v1785
    %v1982 = vpack.c.b16 %v1790, %v1786
    %v1983 = vpack.c.b16 %v1791, %v1787
    %v1984 = vpack.c.b16 %v1796, %v1792
    %v1985 = vpack.c.b16 %v1797, %v1793
    %v1986 = vpack.c.b16 %v1798, %v1794
    %v1987 = vpack.c.b16 %v1799, %v1795
    %v1988 = vpack.c.b16 %v1804, %v1800
    %v1989 = vpack.c.b16 %v1805, %v1801
    %v1990 = vpack.c.b16 %v1806, %v1802
    %v1991 = vpack.c.b16 %v1807, %v1803
    %v1992 = vpack.c.b16 %v1812, %v1808
    %v1993 = vpack.c.b16 %v1813, %v1809
    %v1994 = vpack.c.b16 %v1814, %v1810
    %v1995 = vpack.c.b16 %v1815, %v1811
    %v1996 = vpack.c.b16 %v1820, %v1816
    %v1997 = vpack.c.b16 %v1821, %v1817
    %v1998 = vpack.c.b16 %v1822, %v1818
    %v1999 = vpack.c.b16 %v1823, %v1819
    %v2000 = vpack.c.b16 %v1828, %v1824
    %v2001 = vpack.c.b16 %v1829, %v1825
    %v2002 = vpack.c.b16 %v1830, %v1826
    %v2003 = vpack.c.b16 %v1831, %v1827
    %v2004 = vpack.c.b16 %v1836, %v1832
    %v2005 = vpack.c.b16 %v1837, %v1833
    %v2006 = vpack.c.b16 %v1838, %v1834
    %v2007 = vpack.c.b16 %v1839, %v1835
    %v2008 = vpack.c.b16 %v1844, %v1840
    %v2009 = vpack.c.b16 %v1845, %v1841
    %v2010 = vpack.c.b16 %v1846, %v1842
    %v2011 = vpack.c.b16 %v1847, %v1843
    %v2012 = vpack.c.b16 %v1852, %v1848
    %v2013 = vpack.c.b16 %v1853, %v1849
    %v2014 = vpack.c.b16 %v1854, %v1850
    %v2015 = vpack.c.b16 %v1855, %v1851
    %v2016 = vpack.c.b16 %v1860, %v1856
    %v2017 = vpack.c.b16 %v1861, %v1857
    %v2018 = vpack.c.b16 %v1862, %v1858
    %v2019 = vpack.c.b16 %v1863, %v1859
    %v2020 = vpack.c.b16 %v1868, %v1864
    %v2021 = vpack.c.b16 %v1869, %v1865
    %v2022 = vpack.c.b16 %v1870, %v1866
    %v2023 = vpack.c.b16 %v1871, %v1867
    %v2024 = vpack.c.b16 %v1876, %v1872
    %v2025 = vpack.c.b16 %v1877, %v1873
    %v2026 = vpack.c.b16 %v1878, %v1874
    %v2027 = vpack.c.b16 %v1879, %v1875
    %v2028 = vpack.c.b16 %v1884, %v1880
    %v2029 = vpack.c.b16 %v1885, %v1881
    %v2030 = vpack.c.b16 %v1886, %v1882
    %v2031 = vpack.c.b16 %v1887, %v1883
    %v2032 = vpack.c.b16 %v1892, %v1888
    %v2033 = vpack.c.b16 %v1893, %v1889
    %v2034 = vpack.c.b16 %v1894, %v1890
    %v2035 = vpack.c.b16 %v1895, %v1891
    %v2036 = vpack.c.b16 %v1900, %v1896
    %v2037 = vpack.c.b16 %v1901, %v1897
    %v2038 = vpack.c.b16 %v1902, %v1898
    %v2039 = vpack.c.b16 %v1903, %v1899
    %v2040 = vpack.c.b16 %v1908, %v1904
    %v2041 = vpack.c.b16 %v1909, %v1905
    %v2042 = vpack.c.b16 %v1910, %v1906
    %v2043 = vpack.c.b16 %v1911, %v1907
    %v2044 = vpack.c.b16 %v1916, %v1912
    %v2045 = vpack.c.b16 %v1917, %v1913
    %v2046 = vpack.c.b16 %v1918, %v1914
    %v2047 = vpack.c.b16 %v1919, %v1915
    %2176 = vmatprep.subr.bf16.mxu0 %v1921
    %2177 = vmatpush1.bf16.msra.mxu0 %v1920
    %2178 = vmatprep.subr.bf16.mxu0 %v1925
    %2179 = vmatpush1.bf16.msra.mxu0 %v1924
    %2180 = vmatprep.subr.bf16.mxu0 %v1929
    %2181 = vmatpush1.bf16.msra.mxu0 %v1928
    %2182 = vmatprep.subr.bf16.mxu0 %v1933
    %2183 = vmatpush1.bf16.msra.mxu0 %v1932
    %2184 = vmatprep.subr.bf16.mxu0 %v1937
    %2185 = vmatpush1.bf16.msra.mxu0 %v1936
    %2186 = vmatprep.subr.bf16.mxu0 %v1941
    %2187 = vmatpush1.bf16.msra.mxu0 %v1940
    %2188 = vmatprep.subr.bf16.mxu0 %v1945
    %2189 = vmatpush1.bf16.msra.mxu0 %v1944
    %2190 = vmatprep.subr.bf16.mxu0 %v1949
    %2191 = vmatpush1.bf16.msra.mxu0 %v1948
    %2192 = vmatprep.subr.bf16.mxu0 %v1953
    %2193 = vmatpush1.bf16.msra.mxu0 %v1952
    %2194 = vmatprep.subr.bf16.mxu0 %v1957
    %2195 = vmatpush1.bf16.msra.mxu0 %v1956
    %2196 = vmatprep.subr.bf16.mxu0 %v1961
    %2197 = vmatpush1.bf16.msra.mxu0 %v1960
    %2198 = vmatprep.subr.bf16.mxu0 %v1965
    %2199 = vmatpush1.bf16.msra.mxu0 %v1964
    %2200 = vmatprep.subr.bf16.mxu0 %v1969
    %2201 = vmatpush1.bf16.msra.mxu0 %v1968
    %2202 = vmatprep.subr.bf16.mxu0 %v1973
    %2203 = vmatpush1.bf16.msra.mxu0 %v1972
    %2204 = vmatprep.subr.bf16.mxu0 %v1977
    %2205 = vmatpush1.bf16.msra.mxu0 %v1976
    %2206 = vmatprep.subr.bf16.mxu0 %v1981
    %2207 = vmatpush1.bf16.msra.mxu0 %v1980
    %2208 = vmatprep.mubr.bf16.mxu0 %v1383
    %2209 = vmatmul.mubr.bf16.gmra.mrb[0].mxu0 %v1382
    %v2210 = vpop.f32.mrb[0].mxu0
    %v2211 = vadd.f32 %v1519, %v2210
    %v2212 = vpop.f32.mrb[0].mxu0
    %v2213 = vadd.f32 %v1523, %v2212
    %v2214 = vpop.f32.mrb[0].mxu0
    %v2215 = vpop.f32.mrb[0].mxu0
    %2216 = vdwg.mxu0
    %2217 = vmatprep.subr.bf16.mxu0 %v1985
    %2218 = vmatpush1.bf16.msra.mxu0 %v1984
    %2219 = vmatprep.subr.bf16.mxu0 %v1989
    %2220 = vmatpush1.bf16.msra.mxu0 %v1988
    %2221 = vmatprep.subr.bf16.mxu0 %v1993
    %2222 = vmatpush1.bf16.msra.mxu0 %v1992
    %2223 = vmatprep.subr.bf16.mxu0 %v1997
    %2224 = vmatpush1.bf16.msra.mxu0 %v1996
    %2225 = vmatprep.subr.bf16.mxu0 %v2001
    %2226 = vmatpush1.bf16.msra.mxu0 %v2000
    %2227 = vmatprep.subr.bf16.mxu0 %v2005
    %2228 = vmatpush1.bf16.msra.mxu0 %v2004
    %2229 = vmatprep.subr.bf16.mxu0 %v2009
    %2230 = vmatpush1.bf16.msra.mxu0 %v2008
    %2231 = vmatprep.subr.bf16.mxu0 %v2013
    %2232 = vmatpush1.bf16.msra.mxu0 %v2012
    %2233 = vmatprep.subr.bf16.mxu0 %v2017
    %2234 = vmatpush1.bf16.msra.mxu0 %v2016
    %2235 = vmatprep.subr.bf16.mxu0 %v2021
    %2236 = vmatpush1.bf16.msra.mxu0 %v2020
    %2237 = vmatprep.subr.bf16.mxu0 %v2025
    %2238 = vmatpush1.bf16.msra.mxu0 %v2024
    %2239 = vmatprep.subr.bf16.mxu0 %v2029
    %2240 = vmatpush1.bf16.msra.mxu0 %v2028
    %2241 = vmatprep.subr.bf16.mxu0 %v2033
    %2242 = vmatpush1.bf16.msra.mxu0 %v2032
    %2243 = vmatprep.subr.bf16.mxu0 %v2037
    %2244 = vmatpush1.bf16.msra.mxu0 %v2036
    %2245 = vmatprep.subr.bf16.mxu0 %v2041
    %2246 = vmatpush1.bf16.msra.mxu0 %v2040
    %2247 = vmatprep.subr.bf16.mxu0 %v2045
    %2248 = vmatpush1.bf16.msra.mxu0 %v2044
    %2249 = vmatprep.mubr.bf16.mxu0 %v1385
    %2250 = vmatmul.mubr.bf16.gmra.mrb[0].mxu0 %v1384
    %v2251 = vpop.f32.mrb[0].mxu0
    %v2252 = vadd.f32 %v2211, %v2251
    %v2253 = vpop.f32.mrb[0].mxu0
    %v2254 = vadd.f32 %v2213, %v2253
    %v2255 = vpop.f32.mrb[0].mxu0
    %v2256 = vpop.f32.mrb[0].mxu0
    %2257 = vdwg.mxu0
    %2258 = vmatprep.subr.bf16.mxu0 %v1923
    %2259 = vmatpush1.bf16.msra.mxu0 %v1922
    %2260 = vmatprep.subr.bf16.mxu0 %v1927
    %2261 = vmatpush1.bf16.msra.mxu0 %v1926
    %2262 = vmatprep.subr.bf16.mxu0 %v1931
    %2263 = vmatpush1.bf16.msra.mxu0 %v1930
    %2264 = vmatprep.subr.bf16.mxu0 %v1935
    %2265 = vmatpush1.bf16.msra.mxu0 %v1934
    %2266 = vmatprep.subr.bf16.mxu0 %v1939
    %2267 = vmatpush1.bf16.msra.mxu0 %v1938
    %2268 = vmatprep.subr.bf16.mxu0 %v1943
    %2269 = vmatpush1.bf16.msra.mxu0 %v1942
    %2270 = vmatprep.subr.bf16.mxu0 %v1947
    %2271 = vmatpush1.bf16.msra.mxu0 %v1946
    %2272 = vmatprep.subr.bf16.mxu0 %v1951
    %2273 = vmatpush1.bf16.msra.mxu0 %v1950
    %2274 = vmatprep.subr.bf16.mxu0 %v1955
    %2275 = vmatpush1.bf16.msra.mxu0 %v1954
    %2276 = vmatprep.subr.bf16.mxu0 %v1959
    %2277 = vmatpush1.bf16.msra.mxu0 %v1958
    %2278 = vmatprep.subr.bf16.mxu0 %v1963
    %2279 = vmatpush1.bf16.msra.mxu0 %v1962
    %2280 = vmatprep.subr.bf16.mxu0 %v1967
    %2281 = vmatpush1.bf16.msra.mxu0 %v1966
    %2282 = vmatprep.subr.bf16.mxu0 %v1971
    %2283 = vmatpush1.bf16.msra.mxu0 %v1970
    %2284 = vmatprep.subr.bf16.mxu0 %v1975
    %2285 = vmatpush1.bf16.msra.mxu0 %v1974
    %2286 = vmatprep.subr.bf16.mxu0 %v1979
    %2287 = vmatpush1.bf16.msra.mxu0 %v1978
    %2288 = vmatprep.subr.bf16.mxu0 %v1983
    %2289 = vmatpush1.bf16.msra.mxu0 %v1982
    %2290 = vmatprep.mubr.bf16.mxu0 %v1383
    %2291 = vmatmul.mubr.bf16.gmra.mrb[0].mxu0 %v1382
    %v2292 = vpop.f32.mrb[0].mxu0
    %v2293 = vadd.f32 %v1527, %v2292
    %v2294 = vpop.f32.mrb[0].mxu0
    %v2295 = vadd.f32 %v1531, %v2294
    %v2296 = vpop.f32.mrb[0].mxu0
    %v2297 = vpop.f32.mrb[0].mxu0
    %2298 = vdwg.mxu0
    %2299 = vmatprep.subr.bf16.mxu0 %v1987
    %2300 = vmatpush1.bf16.msra.mxu0 %v1986
    %2301 = vmatprep.subr.bf16.mxu0 %v1991
    %2302 = vmatpush1.bf16.msra.mxu0 %v1990
    %2303 = vmatprep.subr.bf16.mxu0 %v1995
    %2304 = vmatpush1.bf16.msra.mxu0 %v1994
    %2305 = vmatprep.subr.bf16.mxu0 %v1999
    %2306 = vmatpush1.bf16.msra.mxu0 %v1998
    %2307 = vmatprep.subr.bf16.mxu0 %v2003
    %2308 = vmatpush1.bf16.msra.mxu0 %v2002
    %2309 = vmatprep.subr.bf16.mxu0 %v2007
    %2310 = vmatpush1.bf16.msra.mxu0 %v2006
    %2311 = vmatprep.subr.bf16.mxu0 %v2011
    %2312 = vmatpush1.bf16.msra.mxu0 %v2010
    %2313 = vmatprep.subr.bf16.mxu0 %v2015
    %2314 = vmatpush1.bf16.msra.mxu0 %v2014
    %2315 = vmatprep.subr.bf16.mxu0 %v2019
    %2316 = vmatpush1.bf16.msra.mxu0 %v2018
    %2317 = vmatprep.subr.bf16.mxu0 %v2023
    %2318 = vmatpush1.bf16.msra.mxu0 %v2022
    %2319 = vmatprep.subr.bf16.mxu0 %v2027
    %2320 = vmatpush1.bf16.msra.mxu0 %v2026
    %2321 = vmatprep.subr.bf16.mxu0 %v2031
    %2322 = vmatpush1.bf16.msra.mxu0 %v2030
    %2323 = vmatprep.subr.bf16.mxu0 %v2035
    %2324 = vmatpush1.bf16.msra.mxu0 %v2034
    %2325 = vmatprep.subr.bf16.mxu0 %v2039
    %2326 = vmatpush1.bf16.msra.mxu0 %v2038
    %2327 = vmatprep.subr.bf16.mxu0 %v2043
    %2328 = vmatpush1.bf16.msra.mxu0 %v2042
    %2329 = vmatprep.subr.bf16.mxu0 %v2047
    %2330 = vmatpush1.bf16.msra.mxu0 %v2046
    %2331 = vmatprep.mubr.bf16.mxu0 %v1385
    %2332 = vmatmul.mubr.bf16.gmra.mrb[0].mxu0 %v1384
    %v2333 = vpop.f32.mrb[0].mxu0
    %v2334 = vadd.f32 %v2293, %v2333
    %v2335 = vpop.f32.mrb[0].mxu0
    %v2336 = vadd.f32 %v2295, %v2335
    %v2337 = vpop.f32.mrb[0].mxu0
    %v2338 = vpop.f32.mrb[0].mxu0
    %2339 = vdwg.mxu0
    %v2340 = vxor.u32 %v2252, 2147483648
    %v2341 = vxor.u32 %v2254, 2147483648
    %v2342 = vxor.u32 %v2334, 2147483648
    %v2343 = vxor.u32 %v2336, 2147483648
    %v2344 = vmul.f32 %v2340, 1.442695
    %v2345 = vpow.pop %v2344
    %v2346 = vmul.f32 %v2341, 1.442695
    %v2347 = vpow.pop %v2346
    %v2348 = vmul.f32 %v2342, 1.442695
    %v2349 = vpow.pop %v2348
    %v2350 = vmul.f32 %v2343, 1.442695
    %v2351 = vpow.pop %v2350
    %v2352 = vadd.f32 %v2345, 1.0
    %v2353 = vadd.f32 %v2347, 1.0
    %v2354 = vadd.f32 %v2349, 1.0
    %v2355 = vadd.f32 %v2351, 1.0
    %v2356 = vrcp.pop %v2352
    %v2357 = vmul.f32 1.0, %v2356
    %v2358 = vrcp.pop %v2353
    %v2359 = vmul.f32 1.0, %v2358
    %v2360 = vrcp.pop %v2354
    %v2361 = vmul.f32 1.0, %v2360
    %v2362 = vrcp.pop %v2355
    %v2363 = vmul.f32 1.0, %v2362
    %v2364 = vmul.f32 %v2252, %v2357
    %v2365 = vmul.f32 %v2254, %v2359
    %v2366 = vmul.f32 %v2334, %v2361
    %v2367 = vmul.f32 %v2336, %v2363
    %v2368 = vpack.c.bf16 %v2364, %v2364
    %v2369 = vpack.c.bf16 %v2365, %v2365
    %v2370 = vpack.c.bf16 %v2366, %v2366
    %v2371 = vpack.c.bf16 %v2367, %v2367
    %v2372 = vld [vmem:[#allocation10] sm:$0xff]
    %v2373 = vld [vmem:[#allocation10 + $0x8] sm:$0xff]
    %v2374 = vld [vmem:[#allocation10 + $0x10] sm:$0xff]
    %v2375 = vld [vmem:[#allocation10 + $0x18] sm:$0xf]
    %v2376 = vld [vmem:[#allocation10 + $0x1c] sm:$0xff]
    %v2377 = vld [vmem:[#allocation10 + $0x24] sm:$0xff]
    %v2378 = vld [vmem:[#allocation10 + $0x2c] sm:$0xff]
    %v2379 = vld [vmem:[#allocation10 + $0x34] sm:$0xf]
    %v2380 = vld [vmem:[#allocation10 + $0x38] sm:$0xff]
    %v2381 = vld [vmem:[#allocation10 + $0x40] sm:$0xff]
    %v2382 = vld [vmem:[#allocation10 + $0x48] sm:$0xff]
    %v2383 = vld [vmem:[#allocation10 + $0x50] sm:$0xf]
    %v2384 = vld [vmem:[#allocation10 + $0x54] sm:$0xff]
    %v2385 = vld [vmem:[#allocation10 + $0x5c] sm:$0xff]
    %v2386 = vld [vmem:[#allocation10 + $0x64] sm:$0xff]
    %v2387 = vld [vmem:[#allocation10 + $0x6c] sm:$0xf]
    %v2388 = vld [vmem:[#allocation10 + $0x70] sm:$0xff]
    %v2389 = vld [vmem:[#allocation10 + $0x78] sm:$0xff]
    %v2390 = vld [vmem:[#allocation10 + $0x80] sm:$0xff]
    %v2391 = vld [vmem:[#allocation10 + $0x88] sm:$0xf]
    %v2392 = vld [vmem:[#allocation10 + $0x8c] sm:$0xff]
    %v2393 = vld [vmem:[#allocation10 + $0x94] sm:$0xff]
    %v2394 = vld [vmem:[#allocation10 + $0x9c] sm:$0xff]
    %v2395 = vld [vmem:[#allocation10 + $0xa4] sm:$0xf]
    %v2396 = vld [vmem:[#allocation10 + $0xa8] sm:$0xff]
    %v2397 = vld [vmem:[#allocation10 + $0xb0] sm:$0xff]
    %v2398 = vld [vmem:[#allocation10 + $0xb8] sm:$0xff]
    %v2399 = vld [vmem:[#allocation10 + $0xc0] sm:$0xf]
    %v2400 = vld [vmem:[#allocation10 + $0xc4] sm:$0xff]
    %v2401 = vld [vmem:[#allocation10 + $0xcc] sm:$0xff]
    %v2402 = vld [vmem:[#allocation10 + $0xd4] sm:$0xff]
    %v2403 = vld [vmem:[#allocation10 + $0xdc] sm:$0xf]
    %v2404 = vld [vmem:[#allocation10 + $0xe0] sm:$0xff]
    %v2405 = vld [vmem:[#allocation10 + $0xe8] sm:$0xff]
    %v2406 = vld [vmem:[#allocation10 + $0xf0] sm:$0xff]
    %v2407 = vld [vmem:[#allocation10 + $0xf8] sm:$0xf]
    %v2408 = vld [vmem:[#allocation10 + $0xfc] sm:$0xff]
    %v2409 = vld [vmem:[#allocation10 + $0x104] sm:$0xff]
    %v2410 = vld [vmem:[#allocation10 + $0x10c] sm:$0xff]
    %v2411 = vld [vmem:[#allocation10 + $0x114] sm:$0xf]
    %v2412 = vld [vmem:[#allocation10 + $0x118] sm:$0xff]
    %v2413 = vld [vmem:[#allocation10 + $0x120] sm:$0xff]
    %v2414 = vld [vmem:[#allocation10 + $0x128] sm:$0xff]
    %v2415 = vld [vmem:[#allocation10 + $0x130] sm:$0xf]
    %v2416 = vld [vmem:[#allocation10 + $0x134] sm:$0xff]
    %v2417 = vld [vmem:[#allocation10 + $0x13c] sm:$0xff]
    %v2418 = vld [vmem:[#allocation10 + $0x144] sm:$0xff]
    %v2419 = vld [vmem:[#allocation10 + $0x14c] sm:$0xf]
    %v2420 = vld [vmem:[#allocation10 + $0x150] sm:$0xff]
    %v2421 = vld [vmem:[#allocation10 + $0x158] sm:$0xff]
    %v2422 = vld [vmem:[#allocation10 + $0x160] sm:$0xff]
    %v2423 = vld [vmem:[#allocation10 + $0x168] sm:$0xf]
    %v2424 = vld [vmem:[#allocation10 + $0x16c] sm:$0xff]
    %v2425 = vld [vmem:[#allocation10 + $0x174] sm:$0xff]
    %v2426 = vld [vmem:[#allocation10 + $0x17c] sm:$0xff]
    %v2427 = vld [vmem:[#allocation10 + $0x184] sm:$0xf]
    %v2428 = vld [vmem:[#allocation10 + $0x188] sm:$0xff]
    %v2429 = vld [vmem:[#allocation10 + $0x190] sm:$0xff]
    %v2430 = vld [vmem:[#allocation10 + $0x198] sm:$0xff]
    %v2431 = vld [vmem:[#allocation10 + $0x1a0] sm:$0xf]
    %v2432 = vld [vmem:[#allocation10 + $0x1a4] sm:$0xff]
    %v2433 = vld [vmem:[#allocation10 + $0x1ac] sm:$0xff]
    %v2434 = vld [vmem:[#allocation10 + $0x1b4] sm:$0xff]
    %v2435 = vld [vmem:[#allocation10 + $0x1bc] sm:$0xf]
    %v2436 = vld [vmem:[#allocation10 + $0x1c0] sm:$0xff]
    %v2437 = vld [vmem:[#allocation10 + $0x1c8] sm:$0xff]
    %v2438 = vld [vmem:[#allocation10 + $0x1d0] sm:$0xff]
    %v2439 = vld [vmem:[#allocation10 + $0x1d8] sm:$0xf]
    %v2440 = vld [vmem:[#allocation10 + $0x1dc] sm:$0xff]
    %v2441 = vld [vmem:[#allocation10 + $0x1e4] sm:$0xff]
    %v2442 = vld [vmem:[#allocation10 + $0x1ec] sm:$0xff]
    %v2443 = vld [vmem:[#allocation10 + $0x1f4] sm:$0xf]
    %v2444 = vld [vmem:[#allocation10 + $0x1f8] sm:$0xff]
    %v2445 = vld [vmem:[#allocation10 + $0x200] sm:$0xff]
    %v2446 = vld [vmem:[#allocation10 + $0x208] sm:$0xff]
    %v2447 = vld [vmem:[#allocation10 + $0x210] sm:$0xf]
    %v2448 = vld [vmem:[#allocation10 + $0x214] sm:$0xff]
    %v2449 = vld [vmem:[#allocation10 + $0x21c] sm:$0xff]
    %v2450 = vld [vmem:[#allocation10 + $0x224] sm:$0xff]
    %v2451 = vld [vmem:[#allocation10 + $0x22c] sm:$0xf]
    %v2452 = vld [vmem:[#allocation10 + $0x230] sm:$0xff]
    %v2453 = vld [vmem:[#allocation10 + $0x238] sm:$0xff]
    %v2454 = vld [vmem:[#allocation10 + $0x240] sm:$0xff]
    %v2455 = vld [vmem:[#allocation10 + $0x248] sm:$0xf]
    %v2456 = vld [vmem:[#allocation10 + $0x24c] sm:$0xff]
    %v2457 = vld [vmem:[#allocation10 + $0x254] sm:$0xff]
    %v2458 = vld [vmem:[#allocation10 + $0x25c] sm:$0xff]
    %v2459 = vld [vmem:[#allocation10 + $0x264] sm:$0xf]
    %v2460 = vld [vmem:[#allocation10 + $0x268] sm:$0xff]
    %v2461 = vld [vmem:[#allocation10 + $0x270] sm:$0xff]
    %v2462 = vld [vmem:[#allocation10 + $0x278] sm:$0xff]
    %v2463 = vld [vmem:[#allocation10 + $0x280] sm:$0xf]
    %v2464 = vld [vmem:[#allocation10 + $0x284] sm:$0xff]
    %v2465 = vld [vmem:[#allocation10 + $0x28c] sm:$0xff]
    %v2466 = vld [vmem:[#allocation10 + $0x294] sm:$0xff]
    %v2467 = vld [vmem:[#allocation10 + $0x29c] sm:$0xf]
    %v2468 = vld [vmem:[#allocation10 + $0x2a0] sm:$0xff]
    %v2469 = vld [vmem:[#allocation10 + $0x2a8] sm:$0xff]
    %v2470 = vld [vmem:[#allocation10 + $0x2b0] sm:$0xff]
    %v2471 = vld [vmem:[#allocation10 + $0x2b8] sm:$0xf]
    %v2472 = vld [vmem:[#allocation10 + $0x2bc] sm:$0xff]
    %v2473 = vld [vmem:[#allocation10 + $0x2c4] sm:$0xff]
    %v2474 = vld [vmem:[#allocation10 + $0x2cc] sm:$0xff]
    %v2475 = vld [vmem:[#allocation10 + $0x2d4] sm:$0xf]
    %v2476 = vld [vmem:[#allocation10 + $0x2d8] sm:$0xff]
    %v2477 = vld [vmem:[#allocation10 + $0x2e0] sm:$0xff]
    %v2478 = vld [vmem:[#allocation10 + $0x2e8] sm:$0xff]
    %v2479 = vld [vmem:[#allocation10 + $0x2f0] sm:$0xf]
    %v2480 = vld [vmem:[#allocation10 + $0x2f4] sm:$0xff]
    %v2481 = vld [vmem:[#allocation10 + $0x2fc] sm:$0xff]
    %v2482 = vld [vmem:[#allocation10 + $0x304] sm:$0xff]
    %v2483 = vld [vmem:[#allocation10 + $0x30c] sm:$0xf]
    %v2484 = vld [vmem:[#allocation10 + $0x310] sm:$0xff]
    %v2485 = vld [vmem:[#allocation10 + $0x318] sm:$0xff]
    %v2486 = vld [vmem:[#allocation10 + $0x320] sm:$0xff]
    %v2487 = vld [vmem:[#allocation10 + $0x328] sm:$0xf]
    %v2488 = vld [vmem:[#allocation10 + $0x32c] sm:$0xff]
    %v2489 = vld [vmem:[#allocation10 + $0x334] sm:$0xff]
    %v2490 = vld [vmem:[#allocation10 + $0x33c] sm:$0xff]
    %v2491 = vld [vmem:[#allocation10 + $0x344] sm:$0xf]
    %v2492 = vld [vmem:[#allocation10 + $0x348] sm:$0xff]
    %v2493 = vld [vmem:[#allocation10 + $0x350] sm:$0xff]
    %v2494 = vld [vmem:[#allocation10 + $0x358] sm:$0xff]
    %v2495 = vld [vmem:[#allocation10 + $0x360] sm:$0xf]
    %v2496 = vld [vmem:[#allocation10 + $0x364] sm:$0xff]
    %v2497 = vld [vmem:[#allocation10 + $0x36c] sm:$0xff]
    %v2498 = vld [vmem:[#allocation10 + $0x374] sm:$0xff]
    %v2499 = vld [vmem:[#allocation10 + $0x37c] sm:$0xf]
    %v2500 = vld [vmem:[#allocation10 + $0x380] sm:$0xff]
    %v2501 = vld [vmem:[#allocation10 + $0x388] sm:$0xff]
    %v2502 = vld [vmem:[#allocation10 + $0x390] sm:$0xff]
    %v2503 = vld [vmem:[#allocation10 + $0x398] sm:$0xf]
    %v2504 = vld [vmem:[#allocation10 + $0x39c] sm:$0xff]
    %v2505 = vld [vmem:[#allocation10 + $0x3a4] sm:$0xff]
    %v2506 = vld [vmem:[#allocation10 + $0x3ac] sm:$0xff]
    %v2507 = vld [vmem:[#allocation10 + $0x3b4] sm:$0xf]
    %v2508 = vld [vmem:[#allocation10 + $0x3b8] sm:$0xff]
    %v2509 = vld [vmem:[#allocation10 + $0x3c0] sm:$0xff]
    %v2510 = vld [vmem:[#allocation10 + $0x3c8] sm:$0xff]
    %v2511 = vld [vmem:[#allocation10 + $0x3d0] sm:$0xf]
    %v2512 = vld [vmem:[#allocation10 + $0x3d4] sm:$0xff]
    %v2513 = vld [vmem:[#allocation10 + $0x3dc] sm:$0xff]
    %v2514 = vld [vmem:[#allocation10 + $0x3e4] sm:$0xff]
    %v2515 = vld [vmem:[#allocation10 + $0x3ec] sm:$0xf]
    %v2516 = vld [vmem:[#allocation10 + $0x3f0] sm:$0xff]
    %v2517 = vld [vmem:[#allocation10 + $0x3f8] sm:$0xff]
    %v2518 = vld [vmem:[#allocation10 + $0x400] sm:$0xff]
    %v2519 = vld [vmem:[#allocation10 + $0x408] sm:$0xf]
    %v2520 = vld [vmem:[#allocation10 + $0x40c] sm:$0xff]
    %v2521 = vld [vmem:[#allocation10 + $0x414] sm:$0xff]
    %v2522 = vld [vmem:[#allocation10 + $0x41c] sm:$0xff]
    %v2523 = vld [vmem:[#allocation10 + $0x424] sm:$0xf]
    %v2524 = vld [vmem:[#allocation10 + $0x428] sm:$0xff]
    %v2525 = vld [vmem:[#allocation10 + $0x430] sm:$0xff]
    %v2526 = vld [vmem:[#allocation10 + $0x438] sm:$0xff]
    %v2527 = vld [vmem:[#allocation10 + $0x440] sm:$0xf]
    %v2528 = vld [vmem:[#allocation10 + $0x444] sm:$0xff]
    %v2529 = vld [vmem:[#allocation10 + $0x44c] sm:$0xff]
    %v2530 = vld [vmem:[#allocation10 + $0x454] sm:$0xff]
    %v2531 = vld [vmem:[#allocation10 + $0x45c] sm:$0xf]
    %v2532 = vld [vmem:[#allocation10 + $0x460] sm:$0xff]
    %v2533 = vld [vmem:[#allocation10 + $0x468] sm:$0xff]
    %v2534 = vld [vmem:[#allocation10 + $0x470] sm:$0xff]
    %v2535 = vld [vmem:[#allocation10 + $0x478] sm:$0xf]
    %v2536 = vld [vmem:[#allocation10 + $0x47c] sm:$0xff]
    %v2537 = vld [vmem:[#allocation10 + $0x484] sm:$0xff]
    %v2538 = vld [vmem:[#allocation10 + $0x48c] sm:$0xff]
    %v2539 = vld [vmem:[#allocation10 + $0x494] sm:$0xf]
    %v2540 = vld [vmem:[#allocation10 + $0x498] sm:$0xff]
    %v2541 = vld [vmem:[#allocation10 + $0x4a0] sm:$0xff]
    %v2542 = vld [vmem:[#allocation10 + $0x4a8] sm:$0xff]
    %v2543 = vld [vmem:[#allocation10 + $0x4b0] sm:$0xf]
    %v2544 = vld [vmem:[#allocation10 + $0x4b4] sm:$0xff]
    %v2545 = vld [vmem:[#allocation10 + $0x4bc] sm:$0xff]
    %v2546 = vld [vmem:[#allocation10 + $0x4c4] sm:$0xff]
    %v2547 = vld [vmem:[#allocation10 + $0x4cc] sm:$0xf]
    %v2548 = vld [vmem:[#allocation10 + $0x4d0] sm:$0xff]
    %v2549 = vld [vmem:[#allocation10 + $0x4d8] sm:$0xff]
    %v2550 = vld [vmem:[#allocation10 + $0x4e0] sm:$0xff]
    %v2551 = vld [vmem:[#allocation10 + $0x4e8] sm:$0xf]
    %v2552 = vld [vmem:[#allocation10 + $0x4ec] sm:$0xff]
    %v2553 = vld [vmem:[#allocation10 + $0x4f4] sm:$0xff]
    %v2554 = vld [vmem:[#allocation10 + $0x4fc] sm:$0xff]
    %v2555 = vld [vmem:[#allocation10 + $0x504] sm:$0xf]
    %v2556 = vld [vmem:[#allocation10 + $0x508] sm:$0xff]
    %v2557 = vld [vmem:[#allocation10 + $0x510] sm:$0xff]
    %v2558 = vld [vmem:[#allocation10 + $0x518] sm:$0xff]
    %v2559 = vld [vmem:[#allocation10 + $0x520] sm:$0xf]
    %v2560 = vld [vmem:[#allocation10 + $0x524] sm:$0xff]
    %v2561 = vld [vmem:[#allocation10 + $0x52c] sm:$0xff]
    %v2562 = vld [vmem:[#allocation10 + $0x534] sm:$0xff]
    %v2563 = vld [vmem:[#allocation10 + $0x53c] sm:$0xf]
    %v2564 = vld [vmem:[#allocation10 + $0x540] sm:$0xff]
    %v2565 = vld [vmem:[#allocation10 + $0x548] sm:$0xff]
    %v2566 = vld [vmem:[#allocation10 + $0x550] sm:$0xff]
    %v2567 = vld [vmem:[#allocation10 + $0x558] sm:$0xf]
    %v2568 = vld [vmem:[#allocation10 + $0x55c] sm:$0xff]
    %v2569 = vld [vmem:[#allocation10 + $0x564] sm:$0xff]
    %v2570 = vld [vmem:[#allocation10 + $0x56c] sm:$0xff]
    %v2571 = vld [vmem:[#allocation10 + $0x574] sm:$0xf]
    %v2572 = vld [vmem:[#allocation10 + $0x578] sm:$0xff]
    %v2573 = vld [vmem:[#allocation10 + $0x580] sm:$0xff]
    %v2574 = vld [vmem:[#allocation10 + $0x588] sm:$0xff]
    %v2575 = vld [vmem:[#allocation10 + $0x590] sm:$0xf]
    %v2576 = vld [vmem:[#allocation10 + $0x594] sm:$0xff]
    %v2577 = vld [vmem:[#allocation10 + $0x59c] sm:$0xff]
    %v2578 = vld [vmem:[#allocation10 + $0x5a4] sm:$0xff]
    %v2579 = vld [vmem:[#allocation10 + $0x5ac] sm:$0xf]
    %v2580 = vld [vmem:[#allocation10 + $0x5b0] sm:$0xff]
    %v2581 = vld [vmem:[#allocation10 + $0x5b8] sm:$0xff]
    %v2582 = vld [vmem:[#allocation10 + $0x5c0] sm:$0xff]
    %v2583 = vld [vmem:[#allocation10 + $0x5c8] sm:$0xf]
    %v2584 = vld [vmem:[#allocation10 + $0x5cc] sm:$0xff]
    %v2585 = vld [vmem:[#allocation10 + $0x5d4] sm:$0xff]
    %v2586 = vld [vmem:[#allocation10 + $0x5dc] sm:$0xff]
    %v2587 = vld [vmem:[#allocation10 + $0x5e4] sm:$0xf]
    %v2588 = vld [vmem:[#allocation10 + $0x5e8] sm:$0xff]
    %v2589 = vld [vmem:[#allocation10 + $0x5f0] sm:$0xff]
    %v2590 = vld [vmem:[#allocation10 + $0x5f8] sm:$0xff]
    %v2591 = vld [vmem:[#allocation10 + $0x600] sm:$0xf]
    %v2592 = vld [vmem:[#allocation10 + $0x604] sm:$0xff]
    %v2593 = vld [vmem:[#allocation10 + $0x60c] sm:$0xff]
    %v2594 = vld [vmem:[#allocation10 + $0x614] sm:$0xff]
    %v2595 = vld [vmem:[#allocation10 + $0x61c] sm:$0xf]
    %v2596 = vld [vmem:[#allocation10 + $0x620] sm:$0xff]
    %v2597 = vld [vmem:[#allocation10 + $0x628] sm:$0xff]
    %v2598 = vld [vmem:[#allocation10 + $0x630] sm:$0xff]
    %v2599 = vld [vmem:[#allocation10 + $0x638] sm:$0xf]
    %v2600 = vld [vmem:[#allocation10 + $0x63c] sm:$0xff]
    %v2601 = vld [vmem:[#allocation10 + $0x644] sm:$0xff]
    %v2602 = vld [vmem:[#allocation10 + $0x64c] sm:$0xff]
    %v2603 = vld [vmem:[#allocation10 + $0x654] sm:$0xf]
    %v2604 = vld [vmem:[#allocation10 + $0x658] sm:$0xff]
    %v2605 = vld [vmem:[#allocation10 + $0x660] sm:$0xff]
    %v2606 = vld [vmem:[#allocation10 + $0x668] sm:$0xff]
    %v2607 = vld [vmem:[#allocation10 + $0x670] sm:$0xf]
    %v2608 = vld [vmem:[#allocation10 + $0x674] sm:$0xff]
    %v2609 = vld [vmem:[#allocation10 + $0x67c] sm:$0xff]
    %v2610 = vld [vmem:[#allocation10 + $0x684] sm:$0xff]
    %v2611 = vld [vmem:[#allocation10 + $0x68c] sm:$0xf]
    %v2612 = vld [vmem:[#allocation10 + $0x690] sm:$0xff]
    %v2613 = vld [vmem:[#allocation10 + $0x698] sm:$0xff]
    %v2614 = vld [vmem:[#allocation10 + $0x6a0] sm:$0xff]
    %v2615 = vld [vmem:[#allocation10 + $0x6a8] sm:$0xf]
    %v2616 = vld [vmem:[#allocation10 + $0x6ac] sm:$0xff]
    %v2617 = vld [vmem:[#allocation10 + $0x6b4] sm:$0xff]
    %v2618 = vld [vmem:[#allocation10 + $0x6bc] sm:$0xff]
    %v2619 = vld [vmem:[#allocation10 + $0x6c4] sm:$0xf]
    %v2620 = vld [vmem:[#allocation10 + $0x6c8] sm:$0xff]
    %v2621 = vld [vmem:[#allocation10 + $0x6d0] sm:$0xff]
    %v2622 = vld [vmem:[#allocation10 + $0x6d8] sm:$0xff]
    %v2623 = vld [vmem:[#allocation10 + $0x6e0] sm:$0xf]
    %v2624 = vld [vmem:[#allocation10 + $0x6e4] sm:$0xff]
    %v2625 = vld [vmem:[#allocation10 + $0x6ec] sm:$0xff]
    %v2626 = vld [vmem:[#allocation10 + $0x6f4] sm:$0xff]
    %v2627 = vld [vmem:[#allocation10 + $0x6fc] sm:$0xf]
    %v2628 = vld [vmem:[%s10] sm:$0xff]
    %v2630 = vlaneseq
    %v2631 = vshrl.u32 %v2630, 7
    %v2632 = vsub.s32 0, %v2631
    %v2633 = vrot.slane %v2628, %v2632
    %v2634 = vlaneseq
    %v2635 = vshrl.u32 %v2634, 7
    %v2636 = vsub.s32 1, %v2635
    %v2637 = vrot.slane %v2628, %v2636
    %v2638 = vlaneseq
    %v2639 = vshrl.u32 %v2638, 7
    %v2640 = vsub.s32 2, %v2639
    %v2641 = vrot.slane %v2628, %v2640
    %v2642 = vlaneseq
    %v2643 = vshrl.u32 %v2642, 7
    %v2644 = vsub.s32 3, %v2643
    %v2645 = vrot.slane %v2628, %v2644
    %v2646 = vlaneseq
    %v2647 = vshrl.u32 %v2646, 7
    %v2648 = vsub.s32 4, %v2647
    %v2649 = vrot.slane %v2628, %v2648
    %v2650 = vlaneseq
    %v2651 = vshrl.u32 %v2650, 7
    %v2652 = vsub.s32 5, %v2651
    %v2653 = vrot.slane %v2628, %v2652
    %v2654 = vlaneseq
    %v2655 = vshrl.u32 %v2654, 7
    %v2656 = vsub.s32 6, %v2655
    %v2657 = vrot.slane %v2628, %v2656
    %v2921 = vunpack.c.l.b16 %v2372
    %v2922 = vunpack.c.h.b16 %v2372
    %v2923 = vunpack.c.l.b16 %v2373
    %v2924 = vunpack.c.h.b16 %v2373
    %v2925 = vunpack.c.l.b16 %v2374
    %v2926 = vunpack.c.h.b16 %v2374
    %v2927 = vunpack.c.l.b16 %v2375
    %v2928 = vunpack.c.l.b16 %v2376
    %v2929 = vunpack.c.h.b16 %v2376
    %v2930 = vunpack.c.l.b16 %v2377
    %v2931 = vunpack.c.h.b16 %v2377
    %v2932 = vunpack.c.l.b16 %v2378
    %v2933 = vunpack.c.h.b16 %v2378
    %v2934 = vunpack.c.l.b16 %v2379
    %v2935 = vunpack.c.l.b16 %v2380
    %v2936 = vunpack.c.h.b16 %v2380
    %v2937 = vunpack.c.l.b16 %v2381
    %v2938 = vunpack.c.h.b16 %v2381
    %v2939 = vunpack.c.l.b16 %v2382
    %v2940 = vunpack.c.h.b16 %v2382
    %v2941 = vunpack.c.l.b16 %v2383
    %v2942 = vunpack.c.l.b16 %v2384
    %v2943 = vunpack.c.h.b16 %v2384
    %v2944 = vunpack.c.l.b16 %v2385
    %v2945 = vunpack.c.h.b16 %v2385
    %v2946 = vunpack.c.l.b16 %v2386
    %v2947 = vunpack.c.h.b16 %v2386
    %v2948 = vunpack.c.l.b16 %v2387
    %v2949 = vunpack.c.l.b16 %v2388
    %v2950 = vunpack.c.h.b16 %v2388
    %v2951 = vunpack.c.l.b16 %v2389
    %v2952 = vunpack.c.h.b16 %v2389
    %v2953 = vunpack.c.l.b16 %v2390
    %v2954 = vunpack.c.h.b16 %v2390
    %v2955 = vunpack.c.l.b16 %v2391
    %v2956 = vunpack.c.l.b16 %v2392
    %v2957 = vunpack.c.h.b16 %v2392
    %v2958 = vunpack.c.l.b16 %v2393
    %v2959 = vunpack.c.h.b16 %v2393
    %v2960 = vunpack.c.l.b16 %v2394
    %v2961 = vunpack.c.h.b16 %v2394
    %v2962 = vunpack.c.l.b16 %v2395
    %v2963 = vunpack.c.l.b16 %v2396
    %v2964 = vunpack.c.h.b16 %v2396
    %v2965 = vunpack.c.l.b16 %v2397
    %v2966 = vunpack.c.h.b16 %v2397
    %v2967 = vunpack.c.l.b16 %v2398
    %v2968 = vunpack.c.h.b16 %v2398
    %v2969 = vunpack.c.l.b16 %v2399
    %v2970 = vunpack.c.l.b16 %v2400
    %v2971 = vunpack.c.h.b16 %v2400
    %v2972 = vunpack.c.l.b16 %v2401
    %v2973 = vunpack.c.h.b16 %v2401
    %v2974 = vunpack.c.l.b16 %v2402
    %v2975 = vunpack.c.h.b16 %v2402
    %v2976 = vunpack.c.l.b16 %v2403
    %v2977 = vunpack.c.l.b16 %v2404
    %v2978 = vunpack.c.h.b16 %v2404
    %v2979 = vunpack.c.l.b16 %v2405
    %v2980 = vunpack.c.h.b16 %v2405
    %v2981 = vunpack.c.l.b16 %v2406
    %v2982 = vunpack.c.h.b16 %v2406
    %v2983 = vunpack.c.l.b16 %v2407
    %v2984 = vunpack.c.l.b16 %v2408
    %v2985 = vunpack.c.h.b16 %v2408
    %v2986 = vunpack.c.l.b16 %v2409
    %v2987 = vunpack.c.h.b16 %v2409
    %v2988 = vunpack.c.l.b16 %v2410
    %v2989 = vunpack.c.h.b16 %v2410
    %v2990 = vunpack.c.l.b16 %v2411
    %v2991 = vunpack.c.l.b16 %v2412
    %v2992 = vunpack.c.h.b16 %v2412
    %v2993 = vunpack.c.l.b16 %v2413
    %v2994 = vunpack.c.h.b16 %v2413
    %v2995 = vunpack.c.l.b16 %v2414
    %v2996 = vunpack.c.h.b16 %v2414
    %v2997 = vunpack.c.l.b16 %v2415
    %v2998 = vunpack.c.l.b16 %v2416
    %v2999 = vunpack.c.h.b16 %v2416
    %v3000 = vunpack.c.l.b16 %v2417
    %v3001 = vunpack.c.h.b16 %v2417
    %v3002 = vunpack.c.l.b16 %v2418
    %v3003 = vunpack.c.h.b16 %v2418
    %v3004 = vunpack.c.l.b16 %v2419
    %v3005 = vunpack.c.l.b16 %v2420
    %v3006 = vunpack.c.h.b16 %v2420
    %v3007 = vunpack.c.l.b16 %v2421
    %v3008 = vunpack.c.h.b16 %v2421
    %v3009 = vunpack.c.l.b16 %v2422
    %v3010 = vunpack.c.h.b16 %v2422
    %v3011 = vunpack.c.l.b16 %v2423
    %v3012 = vunpack.c.l.b16 %v2424
    %v3013 = vunpack.c.h.b16 %v2424
    %v3014 = vunpack.c.l.b16 %v2425
    %v3015 = vunpack.c.h.b16 %v2425
    %v3016 = vunpack.c.l.b16 %v2426
    %v3017 = vunpack.c.h.b16 %v2426
    %v3018 = vunpack.c.l.b16 %v2427
    %v3019 = vunpack.c.l.b16 %v2428
    %v3020 = vunpack.c.h.b16 %v2428
    %v3021 = vunpack.c.l.b16 %v2429
    %v3022 = vunpack.c.h.b16 %v2429
    %v3023 = vunpack.c.l.b16 %v2430
    %v3024 = vunpack.c.h.b16 %v2430
    %v3025 = vunpack.c.l.b16 %v2431
    %v3026 = vunpack.c.l.b16 %v2432
    %v3027 = vunpack.c.h.b16 %v2432
    %v3028 = vunpack.c.l.b16 %v2433
    %v3029 = vunpack.c.h.b16 %v2433
    %v3030 = vunpack.c.l.b16 %v2434
    %v3031 = vunpack.c.h.b16 %v2434
    %v3032 = vunpack.c.l.b16 %v2435
    %v3033 = vunpack.c.l.b16 %v2436
    %v3034 = vunpack.c.h.b16 %v2436
    %v3035 = vunpack.c.l.b16 %v2437
    %v3036 = vunpack.c.h.b16 %v2437
    %v3037 = vunpack.c.l.b16 %v2438
    %v3038 = vunpack.c.h.b16 %v2438
    %v3039 = vunpack.c.l.b16 %v2439
    %v3040 = vunpack.c.l.b16 %v2440
    %v3041 = vunpack.c.h.b16 %v2440
    %v3042 = vunpack.c.l.b16 %v2441
    %v3043 = vunpack.c.h.b16 %v2441
    %v3044 = vunpack.c.l.b16 %v2442
    %v3045 = vunpack.c.h.b16 %v2442
    %v3046 = vunpack.c.l.b16 %v2443
    %v3047 = vunpack.c.l.b16 %v2444
    %v3048 = vunpack.c.h.b16 %v2444
    %v3049 = vunpack.c.l.b16 %v2445
    %v3050 = vunpack.c.h.b16 %v2445
    %v3051 = vunpack.c.l.b16 %v2446
    %v3052 = vunpack.c.h.b16 %v2446
    %v3053 = vunpack.c.l.b16 %v2447
    %v3054 = vunpack.c.l.b16 %v2448
    %v3055 = vunpack.c.h.b16 %v2448
    %v3056 = vunpack.c.l.b16 %v2449
    %v3057 = vunpack.c.h.b16 %v2449
    %v3058 = vunpack.c.l.b16 %v2450
    %v3059 = vunpack.c.h.b16 %v2450
    %v3060 = vunpack.c.l.b16 %v2451
    %v3061 = vunpack.c.l.b16 %v2452
    %v3062 = vunpack.c.h.b16 %v2452
    %v3063 = vunpack.c.l.b16 %v2453
    %v3064 = vunpack.c.h.b16 %v2453
    %v3065 = vunpack.c.l.b16 %v2454
    %v3066 = vunpack.c.h.b16 %v2454
    %v3067 = vunpack.c.l.b16 %v2455
    %v3068 = vunpack.c.l.b16 %v2456
    %v3069 = vunpack.c.h.b16 %v2456
    %v3070 = vunpack.c.l.b16 %v2457
    %v3071 = vunpack.c.h.b16 %v2457
    %v3072 = vunpack.c.l.b16 %v2458
    %v3073 = vunpack.c.h.b16 %v2458
    %v3074 = vunpack.c.l.b16 %v2459
    %v3075 = vunpack.c.l.b16 %v2460
    %v3076 = vunpack.c.h.b16 %v2460
    %v3077 = vunpack.c.l.b16 %v2461
    %v3078 = vunpack.c.h.b16 %v2461
    %v3079 = vunpack.c.l.b16 %v2462
    %v3080 = vunpack.c.h.b16 %v2462
    %v3081 = vunpack.c.l.b16 %v2463
    %v3082 = vunpack.c.l.b16 %v2464
    %v3083 = vunpack.c.h.b16 %v2464
    %v3084 = vunpack.c.l.b16 %v2465
    %v3085 = vunpack.c.h.b16 %v2465
    %v3086 = vunpack.c.l.b16 %v2466
    %v3087 = vunpack.c.h.b16 %v2466
    %v3088 = vunpack.c.l.b16 %v2467
    %v3089 = vunpack.c.l.b16 %v2468
    %v3090 = vunpack.c.h.b16 %v2468
    %v3091 = vunpack.c.l.b16 %v2469
    %v3092 = vunpack.c.h.b16 %v2469
    %v3093 = vunpack.c.l.b16 %v2470
    %v3094 = vunpack.c.h.b16 %v2470
    %v3095 = vunpack.c.l.b16 %v2471
    %v3096 = vunpack.c.l.b16 %v2472
    %v3097 = vunpack.c.h.b16 %v2472
    %v3098 = vunpack.c.l.b16 %v2473
    %v3099 = vunpack.c.h.b16 %v2473
    %v3100 = vunpack.c.l.b16 %v2474
    %v3101 = vunpack.c.h.b16 %v2474
    %v3102 = vunpack.c.l.b16 %v2475
    %v3103 = vunpack.c.l.b16 %v2476
    %v3104 = vunpack.c.h.b16 %v2476
    %v3105 = vunpack.c.l.b16 %v2477
    %v3106 = vunpack.c.h.b16 %v2477
    %v3107 = vunpack.c.l.b16 %v2478
    %v3108 = vunpack.c.h.b16 %v2478
    %v3109 = vunpack.c.l.b16 %v2479
    %v3110 = vunpack.c.l.b16 %v2480
    %v3111 = vunpack.c.h.b16 %v2480
    %v3112 = vunpack.c.l.b16 %v2481
    %v3113 = vunpack.c.h.b16 %v2481
    %v3114 = vunpack.c.l.b16 %v2482
    %v3115 = vunpack.c.h.b16 %v2482
    %v3116 = vunpack.c.l.b16 %v2483
    %v3117 = vunpack.c.l.b16 %v2484
    %v3118 = vunpack.c.h.b16 %v2484
    %v3119 = vunpack.c.l.b16 %v2485
    %v3120 = vunpack.c.h.b16 %v2485
    %v3121 = vunpack.c.l.b16 %v2486
    %v3122 = vunpack.c.h.b16 %v2486
    %v3123 = vunpack.c.l.b16 %v2487
    %v3124 = vunpack.c.l.b16 %v2488
    %v3125 = vunpack.c.h.b16 %v2488
    %v3126 = vunpack.c.l.b16 %v2489
    %v3127 = vunpack.c.h.b16 %v2489
    %v3128 = vunpack.c.l.b16 %v2490
    %v3129 = vunpack.c.h.b16 %v2490
    %v3130 = vunpack.c.l.b16 %v2491
    %v3131 = vunpack.c.l.b16 %v2492
    %v3132 = vunpack.c.h.b16 %v2492
    %v3133 = vunpack.c.l.b16 %v2493
    %v3134 = vunpack.c.h.b16 %v2493
    %v3135 = vunpack.c.l.b16 %v2494
    %v3136 = vunpack.c.h.b16 %v2494
    %v3137 = vunpack.c.l.b16 %v2495
    %v3138 = vunpack.c.l.b16 %v2496
    %v3139 = vunpack.c.h.b16 %v2496
    %v3140 = vunpack.c.l.b16 %v2497
    %v3141 = vunpack.c.h.b16 %v2497
    %v3142 = vunpack.c.l.b16 %v2498
    %v3143 = vunpack.c.h.b16 %v2498
    %v3144 = vunpack.c.l.b16 %v2499
    %v3145 = vunpack.c.l.b16 %v2500
    %v3146 = vunpack.c.h.b16 %v2500
    %v3147 = vunpack.c.l.b16 %v2501
    %v3148 = vunpack.c.h.b16 %v2501
    %v3149 = vunpack.c.l.b16 %v2502
    %v3150 = vunpack.c.h.b16 %v2502
    %v3151 = vunpack.c.l.b16 %v2503
    %v3152 = vunpack.c.l.b16 %v2504
    %v3153 = vunpack.c.h.b16 %v2504
    %v3154 = vunpack.c.l.b16 %v2505
    %v3155 = vunpack.c.h.b16 %v2505
    %v3156 = vunpack.c.l.b16 %v2506
    %v3157 = vunpack.c.h.b16 %v2506
    %v3158 = vunpack.c.l.b16 %v2507
    %v3159 = vunpack.c.l.b16 %v2508
    %v3160 = vunpack.c.h.b16 %v2508
    %v3161 = vunpack.c.l.b16 %v2509
    %v3162 = vunpack.c.h.b16 %v2509
    %v3163 = vunpack.c.l.b16 %v2510
    %v3164 = vunpack.c.h.b16 %v2510
    %v3165 = vunpack.c.l.b16 %v2511
    %v3166 = vunpack.c.l.b16 %v2512
    %v3167 = vunpack.c.h.b16 %v2512
    %v3168 = vunpack.c.l.b16 %v2513
    %v3169 = vunpack.c.h.b16 %v2513
    %v3170 = vunpack.c.l.b16 %v2514
    %v3171 = vunpack.c.h.b16 %v2514
    %v3172 = vunpack.c.l.b16 %v2515
    %v3173 = vunpack.c.l.b16 %v2516
    %v3174 = vunpack.c.h.b16 %v2516
    %v3175 = vunpack.c.l.b16 %v2517
    %v3176 = vunpack.c.h.b16 %v2517
    %v3177 = vunpack.c.l.b16 %v2518
    %v3178 = vunpack.c.h.b16 %v2518
    %v3179 = vunpack.c.l.b16 %v2519
    %v3180 = vunpack.c.l.b16 %v2520
    %v3181 = vunpack.c.h.b16 %v2520
    %v3182 = vunpack.c.l.b16 %v2521
    %v3183 = vunpack.c.h.b16 %v2521
    %v3184 = vunpack.c.l.b16 %v2522
    %v3185 = vunpack.c.h.b16 %v2522
    %v3186 = vunpack.c.l.b16 %v2523
    %v3187 = vunpack.c.l.b16 %v2524
    %v3188 = vunpack.c.h.b16 %v2524
    %v3189 = vunpack.c.l.b16 %v2525
    %v3190 = vunpack.c.h.b16 %v2525
    %v3191 = vunpack.c.l.b16 %v2526
    %v3192 = vunpack.c.h.b16 %v2526
    %v3193 = vunpack.c.l.b16 %v2527
    %v3194 = vunpack.c.l.b16 %v2528
    %v3195 = vunpack.c.h.b16 %v2528
    %v3196 = vunpack.c.l.b16 %v2529
    %v3197 = vunpack.c.h.b16 %v2529
    %v3198 = vunpack.c.l.b16 %v2530
    %v3199 = vunpack.c.h.b16 %v2530
    %v3200 = vunpack.c.l.b16 %v2531
    %v3201 = vunpack.c.l.b16 %v2532
    %v3202 = vunpack.c.h.b16 %v2532
    %v3203 = vunpack.c.l.b16 %v2533
    %v3204 = vunpack.c.h.b16 %v2533
    %v3205 = vunpack.c.l.b16 %v2534
    %v3206 = vunpack.c.h.b16 %v2534
    %v3207 = vunpack.c.l.b16 %v2535
    %v3208 = vunpack.c.l.b16 %v2536
    %v3209 = vunpack.c.h.b16 %v2536
    %v3210 = vunpack.c.l.b16 %v2537
    %v3211 = vunpack.c.h.b16 %v2537
    %v3212 = vunpack.c.l.b16 %v2538
    %v3213 = vunpack.c.h.b16 %v2538
    %v3214 = vunpack.c.l.b16 %v2539
    %v3215 = vunpack.c.l.b16 %v2540
    %v3216 = vunpack.c.h.b16 %v2540
    %v3217 = vunpack.c.l.b16 %v2541
    %v3218 = vunpack.c.h.b16 %v2541
    %v3219 = vunpack.c.l.b16 %v2542
    %v3220 = vunpack.c.h.b16 %v2542
    %v3221 = vunpack.c.l.b16 %v2543
    %v3222 = vunpack.c.l.b16 %v2544
    %v3223 = vunpack.c.h.b16 %v2544
    %v3224 = vunpack.c.l.b16 %v2545
    %v3225 = vunpack.c.h.b16 %v2545
    %v3226 = vunpack.c.l.b16 %v2546
    %v3227 = vunpack.c.h.b16 %v2546
    %v3228 = vunpack.c.l.b16 %v2547
    %v3229 = vunpack.c.l.b16 %v2548
    %v3230 = vunpack.c.h.b16 %v2548
    %v3231 = vunpack.c.l.b16 %v2549
    %v3232 = vunpack.c.h.b16 %v2549
    %v3233 = vunpack.c.l.b16 %v2550
    %v3234 = vunpack.c.h.b16 %v2550
    %v3235 = vunpack.c.l.b16 %v2551
    %v3236 = vunpack.c.l.b16 %v2552
    %v3237 = vunpack.c.h.b16 %v2552
    %v3238 = vunpack.c.l.b16 %v2553
    %v3239 = vunpack.c.h.b16 %v2553
    %v3240 = vunpack.c.l.b16 %v2554
    %v3241 = vunpack.c.h.b16 %v2554
    %v3242 = vunpack.c.l.b16 %v2555
    %v3243 = vunpack.c.l.b16 %v2556
    %v3244 = vunpack.c.h.b16 %v2556
    %v3245 = vunpack.c.l.b16 %v2557
    %v3246 = vunpack.c.h.b16 %v2557
    %v3247 = vunpack.c.l.b16 %v2558
    %v3248 = vunpack.c.h.b16 %v2558
    %v3249 = vunpack.c.l.b16 %v2559
    %v3250 = vunpack.c.l.b16 %v2560
    %v3251 = vunpack.c.h.b16 %v2560
    %v3252 = vunpack.c.l.b16 %v2561
    %v3253 = vunpack.c.h.b16 %v2561
    %v3254 = vunpack.c.l.b16 %v2562
    %v3255 = vunpack.c.h.b16 %v2562
    %v3256 = vunpack.c.l.b16 %v2563
    %v3257 = vunpack.c.l.b16 %v2564
    %v3258 = vunpack.c.h.b16 %v2564
    %v3259 = vunpack.c.l.b16 %v2565
    %v3260 = vunpack.c.h.b16 %v2565
    %v3261 = vunpack.c.l.b16 %v2566
    %v3262 = vunpack.c.h.b16 %v2566
    %v3263 = vunpack.c.l.b16 %v2567
    %v3264 = vunpack.c.l.b16 %v2568
    %v3265 = vunpack.c.h.b16 %v2568
    %v3266 = vunpack.c.l.b16 %v2569
    %v3267 = vunpack.c.h.b16 %v2569
    %v3268 = vunpack.c.l.b16 %v2570
    %v3269 = vunpack.c.h.b16 %v2570
    %v3270 = vunpack.c.l.b16 %v2571
    %v3271 = vunpack.c.l.b16 %v2572
    %v3272 = vunpack.c.h.b16 %v2572
    %v3273 = vunpack.c.l.b16 %v2573
    %v3274 = vunpack.c.h.b16 %v2573
    %v3275 = vunpack.c.l.b16 %v2574
    %v3276 = vunpack.c.h.b16 %v2574
    %v3277 = vunpack.c.l.b16 %v2575
    %v3278 = vunpack.c.l.b16 %v2576
    %v3279 = vunpack.c.h.b16 %v2576
    %v3280 = vunpack.c.l.b16 %v2577
    %v3281 = vunpack.c.h.b16 %v2577
    %v3282 = vunpack.c.l.b16 %v2578
    %v3283 = vunpack.c.h.b16 %v2578
    %v3284 = vunpack.c.l.b16 %v2579
    %v3285 = vunpack.c.l.b16 %v2580
    %v3286 = vunpack.c.h.b16 %v2580
    %v3287 = vunpack.c.l.b16 %v2581
    %v3288 = vunpack.c.h.b16 %v2581
    %v3289 = vunpack.c.l.b16 %v2582
    %v3290 = vunpack.c.h.b16 %v2582
    %v3291 = vunpack.c.l.b16 %v2583
    %v3292 = vunpack.c.l.b16 %v2584
    %v3293 = vunpack.c.h.b16 %v2584
    %v3294 = vunpack.c.l.b16 %v2585
    %v3295 = vunpack.c.h.b16 %v2585
    %v3296 = vunpack.c.l.b16 %v2586
    %v3297 = vunpack.c.h.b16 %v2586
    %v3298 = vunpack.c.l.b16 %v2587
    %v3299 = vunpack.c.l.b16 %v2588
    %v3300 = vunpack.c.h.b16 %v2588
    %v3301 = vunpack.c.l.b16 %v2589
    %v3302 = vunpack.c.h.b16 %v2589
    %v3303 = vunpack.c.l.b16 %v2590
    %v3304 = vunpack.c.h.b16 %v2590
    %v3305 = vunpack.c.l.b16 %v2591
    %v3306 = vunpack.c.l.b16 %v2592
    %v3307 = vunpack.c.h.b16 %v2592
    %v3308 = vunpack.c.l.b16 %v2593
    %v3309 = vunpack.c.h.b16 %v2593
    %v3310 = vunpack.c.l.b16 %v2594
    %v3311 = vunpack.c.h.b16 %v2594
    %v3312 = vunpack.c.l.b16 %v2595
    %v3313 = vunpack.c.l.b16 %v2596
    %v3314 = vunpack.c.h.b16 %v2596
    %v3315 = vunpack.c.l.b16 %v2597
    %v3316 = vunpack.c.h.b16 %v2597
    %v3317 = vunpack.c.l.b16 %v2598
    %v3318 = vunpack.c.h.b16 %v2598
    %v3319 = vunpack.c.l.b16 %v2599
    %v3320 = vunpack.c.l.b16 %v2600
    %v3321 = vunpack.c.h.b16 %v2600
    %v3322 = vunpack.c.l.b16 %v2601
    %v3323 = vunpack.c.h.b16 %v2601
    %v3324 = vunpack.c.l.b16 %v2602
    %v3325 = vunpack.c.h.b16 %v2602
    %v3326 = vunpack.c.l.b16 %v2603
    %v3327 = vunpack.c.l.b16 %v2604
    %v3328 = vunpack.c.h.b16 %v2604
    %v3329 = vunpack.c.l.b16 %v2605
    %v3330 = vunpack.c.h.b16 %v2605
    %v3331 = vunpack.c.l.b16 %v2606
    %v3332 = vunpack.c.h.b16 %v2606
    %v3333 = vunpack.c.l.b16 %v2607
    %v3334 = vunpack.c.l.b16 %v2608
    %v3335 = vunpack.c.h.b16 %v2608
    %v3336 = vunpack.c.l.b16 %v2609
    %v3337 = vunpack.c.h.b16 %v2609
    %v3338 = vunpack.c.l.b16 %v2610
    %v3339 = vunpack.c.h.b16 %v2610
    %v3340 = vunpack.c.l.b16 %v2611
    %v3341 = vunpack.c.l.b16 %v2612
    %v3342 = vunpack.c.h.b16 %v2612
    %v3343 = vunpack.c.l.b16 %v2613
    %v3344 = vunpack.c.h.b16 %v2613
    %v3345 = vunpack.c.l.b16 %v2614
    %v3346 = vunpack.c.h.b16 %v2614
    %v3347 = vunpack.c.l.b16 %v2615
    %v3348 = vunpack.c.l.b16 %v2616
    %v3349 = vunpack.c.h.b16 %v2616
    %v3350 = vunpack.c.l.b16 %v2617
    %v3351 = vunpack.c.h.b16 %v2617
    %v3352 = vunpack.c.l.b16 %v2618
    %v3353 = vunpack.c.h.b16 %v2618
    %v3354 = vunpack.c.l.b16 %v2619
    %v3355 = vunpack.c.l.b16 %v2620
    %v3356 = vunpack.c.h.b16 %v2620
    %v3357 = vunpack.c.l.b16 %v2621
    %v3358 = vunpack.c.h.b16 %v2621
    %v3359 = vunpack.c.l.b16 %v2622
    %v3360 = vunpack.c.h.b16 %v2622
    %v3361 = vunpack.c.l.b16 %v2623
    %v3362 = vunpack.c.l.b16 %v2624
    %v3363 = vunpack.c.h.b16 %v2624
    %v3364 = vunpack.c.l.b16 %v2625
    %v3365 = vunpack.c.h.b16 %v2625
    %v3366 = vunpack.c.l.b16 %v2626
    %v3367 = vunpack.c.h.b16 %v2626
    %v3368 = vunpack.c.l.b16 %v2627
    %v3369 = vpack.c.b16 %v2928, %v2921
    %v3370 = vpack.c.b16 %v2929, %v2922
    %v3371 = vpack.c.b16 %v2930, %v2923
    %v3372 = vpack.c.b16 %v2931, %v2924
    %v3373 = vpack.c.b16 %v2932, %v2925
    %v3374 = vpack.c.b16 %v2933, %v2926
    %v3375 = vpack.c.b16 %v2934, %v2927
    %v3376 = vpack.c.b16 %v2942, %v2935
    %v3377 = vpack.c.b16 %v2943, %v2936
    %v3378 = vpack.c.b16 %v2944, %v2937
    %v3379 = vpack.c.b16 %v2945, %v2938
    %v3380 = vpack.c.b16 %v2946, %v2939
    %v3381 = vpack.c.b16 %v2947, %v2940
    %v3382 = vpack.c.b16 %v2948, %v2941
    %v3383 = vpack.c.b16 %v2956, %v2949
    %v3384 = vpack.c.b16 %v2957, %v2950
    %v3385 = vpack.c.b16 %v2958, %v2951
    %v3386 = vpack.c.b16 %v2959, %v2952
    %v3387 = vpack.c.b16 %v2960, %v2953
    %v3388 = vpack.c.b16 %v2961, %v2954
    %v3389 = vpack.c.b16 %v2962, %v2955
    %v3390 = vpack.c.b16 %v2970, %v2963
    %v3391 = vpack.c.b16 %v2971, %v2964
    %v3392 = vpack.c.b16 %v2972, %v2965
    %v3393 = vpack.c.b16 %v2973, %v2966
    %v3394 = vpack.c.b16 %v2974, %v2967
    %v3395 = vpack.c.b16 %v2975, %v2968
    %v3396 = vpack.c.b16 %v2976, %v2969
    %v3397 = vpack.c.b16 %v2984, %v2977
    %v3398 = vpack.c.b16 %v2985, %v2978
    %v3399 = vpack.c.b16 %v2986, %v2979
    %v3400 = vpack.c.b16 %v2987, %v2980
    %v3401 = vpack.c.b16 %v2988, %v2981
    %v3402 = vpack.c.b16 %v2989, %v2982
    %v3403 = vpack.c.b16 %v2990, %v2983
    %v3404 = vpack.c.b16 %v2998, %v2991
    %v3405 = vpack.c.b16 %v2999, %v2992
    %v3406 = vpack.c.b16 %v3000, %v2993
    %v3407 = vpack.c.b16 %v3001, %v2994
    %v3408 = vpack.c.b16 %v3002, %v2995
    %v3409 = vpack.c.b16 %v3003, %v2996
    %v3410 = vpack.c.b16 %v3004, %v2997
    %v3411 = vpack.c.b16 %v3012, %v3005
    %v3412 = vpack.c.b16 %v3013, %v3006
    %v3413 = vpack.c.b16 %v3014, %v3007
    %v3414 = vpack.c.b16 %v3015, %v3008
    %v3415 = vpack.c.b16 %v3016, %v3009
    %v3416 = vpack.c.b16 %v3017, %v3010
    %v3417 = vpack.c.b16 %v3018, %v3011
    %v3418 = vpack.c.b16 %v3026, %v3019
    %v3419 = vpack.c.b16 %v3027, %v3020
    %v3420 = vpack.c.b16 %v3028, %v3021
    %v3421 = vpack.c.b16 %v3029, %v3022
    %v3422 = vpack.c.b16 %v3030, %v3023
    %v3423 = vpack.c.b16 %v3031, %v3024
    %v3424 = vpack.c.b16 %v3032, %v3025
    %v3425 = vpack.c.b16 %v3040, %v3033
    %v3426 = vpack.c.b16 %v3041, %v3034
    %v3427 = vpack.c.b16 %v3042, %v3035
    %v3428 = vpack.c.b16 %v3043, %v3036
    %v3429 = vpack.c.b16 %v3044, %v3037
    %v3430 = vpack.c.b16 %v3045, %v3038
    %v3431 = vpack.c.b16 %v3046, %v3039
    %v3432 = vpack.c.b16 %v3054, %v3047
    %v3433 = vpack.c.b16 %v3055, %v3048
    %v3434 = vpack.c.b16 %v3056, %v3049
    %v3435 = vpack.c.b16 %v3057, %v3050
    %v3436 = vpack.c.b16 %v3058, %v3051
    %v3437 = vpack.c.b16 %v3059, %v3052
    %v3438 = vpack.c.b16 %v3060, %v3053
    %v3439 = vpack.c.b16 %v3068, %v3061
    %v3440 = vpack.c.b16 %v3069, %v3062
    %v3441 = vpack.c.b16 %v3070, %v3063
    %v3442 = vpack.c.b16 %v3071, %v3064
    %v3443 = vpack.c.b16 %v3072, %v3065
    %v3444 = vpack.c.b16 %v3073, %v3066
    %v3445 = vpack.c.b16 %v3074, %v3067
    %v3446 = vpack.c.b16 %v3082, %v3075
    %v3447 = vpack.c.b16 %v3083, %v3076
    %v3448 = vpack.c.b16 %v3084, %v3077
    %v3449 = vpack.c.b16 %v3085, %v3078
    %v3450 = vpack.c.b16 %v3086, %v3079
    %v3451 = vpack.c.b16 %v3087, %v3080
    %v3452 = vpack.c.b16 %v3088, %v3081
    %v3453 = vpack.c.b16 %v3096, %v3089
    %v3454 = vpack.c.b16 %v3097, %v3090
    %v3455 = vpack.c.b16 %v3098, %v3091
    %v3456 = vpack.c.b16 %v3099, %v3092
    %v3457 = vpack.c.b16 %v3100, %v3093
    %v3458 = vpack.c.b16 %v3101, %v3094
    %v3459 = vpack.c.b16 %v3102, %v3095
    %v3460 = vpack.c.b16 %v3110, %v3103
    %v3461 = vpack.c.b16 %v3111, %v3104
    %v3462 = vpack.c.b16 %v3112, %v3105
    %v3463 = vpack.c.b16 %v3113, %v3106
    %v3464 = vpack.c.b16 %v3114, %v3107
    %v3465 = vpack.c.b16 %v3115, %v3108
    %v3466 = vpack.c.b16 %v3116, %v3109
    %v3467 = vpack.c.b16 %v3124, %v3117
    %v3468 = vpack.c.b16 %v3125, %v3118
    %v3469 = vpack.c.b16 %v3126, %v3119
    %v3470 = vpack.c.b16 %v3127, %v3120
    %v3471 = vpack.c.b16 %v3128, %v3121
    %v3472 = vpack.c.b16 %v3129, %v3122
    %v3473 = vpack.c.b16 %v3130, %v3123
    %v3474 = vpack.c.b16 %v3138, %v3131
    %v3475 = vpack.c.b16 %v3139, %v3132
    %v3476 = vpack.c.b16 %v3140, %v3133
    %v3477 = vpack.c.b16 %v3141, %v3134
    %v3478 = vpack.c.b16 %v3142, %v3135
    %v3479 = vpack.c.b16 %v3143, %v3136
    %v3480 = vpack.c.b16 %v3144, %v3137
    %v3481 = vpack.c.b16 %v3152, %v3145
    %v3482 = vpack.c.b16 %v3153, %v3146
    %v3483 = vpack.c.b16 %v3154, %v3147
    %v3484 = vpack.c.b16 %v3155, %v3148
    %v3485 = vpack.c.b16 %v3156, %v3149
    %v3486 = vpack.c.b16 %v3157, %v3150
    %v3487 = vpack.c.b16 %v3158, %v3151
    %v3488 = vpack.c.b16 %v3166, %v3159
    %v3489 = vpack.c.b16 %v3167, %v3160
    %v3490 = vpack.c.b16 %v3168, %v3161
    %v3491 = vpack.c.b16 %v3169, %v3162
    %v3492 = vpack.c.b16 %v3170, %v3163
    %v3493 = vpack.c.b16 %v3171, %v3164
    %v3494 = vpack.c.b16 %v3172, %v3165
    %v3495 = vpack.c.b16 %v3180, %v3173
    %v3496 = vpack.c.b16 %v3181, %v3174
    %v3497 = vpack.c.b16 %v3182, %v3175
    %v3498 = vpack.c.b16 %v3183, %v3176
    %v3499 = vpack.c.b16 %v3184, %v3177
    %v3500 = vpack.c.b16 %v3185, %v3178
    %v3501 = vpack.c.b16 %v3186, %v3179
    %v3502 = vpack.c.b16 %v3194, %v3187
    %v3503 = vpack.c.b16 %v3195, %v3188
    %v3504 = vpack.c.b16 %v3196, %v3189
    %v3505 = vpack.c.b16 %v3197, %v3190
    %v3506 = vpack.c.b16 %v3198, %v3191
    %v3507 = vpack.c.b16 %v3199, %v3192
    %v3508 = vpack.c.b16 %v3200, %v3193
    %v3509 = vpack.c.b16 %v3208, %v3201
    %v3510 = vpack.c.b16 %v3209, %v3202
    %v3511 = vpack.c.b16 %v3210, %v3203
    %v3512 = vpack.c.b16 %v3211, %v3204
    %v3513 = vpack.c.b16 %v3212, %v3205
    %v3514 = vpack.c.b16 %v3213, %v3206
    %v3515 = vpack.c.b16 %v3214, %v3207
    %v3516 = vpack.c.b16 %v3222, %v3215
    %v3517 = vpack.c.b16 %v3223, %v3216
    %v3518 = vpack.c.b16 %v3224, %v3217
    %v3519 = vpack.c.b16 %v3225, %v3218
    %v3520 = vpack.c.b16 %v3226, %v3219
    %v3521 = vpack.c.b16 %v3227, %v3220
    %v3522 = vpack.c.b16 %v3228, %v3221
    %v3523 = vpack.c.b16 %v3236, %v3229
    %v3524 = vpack.c.b16 %v3237, %v3230
    %v3525 = vpack.c.b16 %v3238, %v3231
    %v3526 = vpack.c.b16 %v3239, %v3232
    %v3527 = vpack.c.b16 %v3240, %v3233
    %v3528 = vpack.c.b16 %v3241, %v3234
    %v3529 = vpack.c.b16 %v3242, %v3235
    %v3530 = vpack.c.b16 %v3250, %v3243
    %v3531 = vpack.c.b16 %v3251, %v3244
    %v3532 = vpack.c.b16 %v3252, %v3245
    %v3533 = vpack.c.b16 %v3253, %v3246
    %v3534 = vpack.c.b16 %v3254, %v3247
    %v3535 = vpack.c.b16 %v3255, %v3248
    %v3536 = vpack.c.b16 %v3256, %v3249
    %v3537 = vpack.c.b16 %v3264, %v3257
    %v3538 = vpack.c.b16 %v3265, %v3258
    %v3539 = vpack.c.b16 %v3266, %v3259
    %v3540 = vpack.c.b16 %v3267, %v3260
    %v3541 = vpack.c.b16 %v3268, %v3261
    %v3542 = vpack.c.b16 %v3269, %v3262
    %v3543 = vpack.c.b16 %v3270, %v3263
    %v3544 = vpack.c.b16 %v3278, %v3271
    %v3545 = vpack.c.b16 %v3279, %v3272
    %v3546 = vpack.c.b16 %v3280, %v3273
    %v3547 = vpack.c.b16 %v3281, %v3274
    %v3548 = vpack.c.b16 %v3282, %v3275
    %v3549 = vpack.c.b16 %v3283, %v3276
    %v3550 = vpack.c.b16 %v3284, %v3277
    %v3551 = vpack.c.b16 %v3292, %v3285
    %v3552 = vpack.c.b16 %v3293, %v3286
    %v3553 = vpack.c.b16 %v3294, %v3287
    %v3554 = vpack.c.b16 %v3295, %v3288
    %v3555 = vpack.c.b16 %v3296, %v3289
    %v3556 = vpack.c.b16 %v3297, %v3290
    %v3557 = vpack.c.b16 %v3298, %v3291
    %v3558 = vpack.c.b16 %v3306, %v3299
    %v3559 = vpack.c.b16 %v3307, %v3300
    %v3560 = vpack.c.b16 %v3308, %v3301
    %v3561 = vpack.c.b16 %v3309, %v3302
    %v3562 = vpack.c.b16 %v3310, %v3303
    %v3563 = vpack.c.b16 %v3311, %v3304
    %v3564 = vpack.c.b16 %v3312, %v3305
    %v3565 = vpack.c.b16 %v3320, %v3313
    %v3566 = vpack.c.b16 %v3321, %v3314
    %v3567 = vpack.c.b16 %v3322, %v3315
    %v3568 = vpack.c.b16 %v3323, %v3316
    %v3569 = vpack.c.b16 %v3324, %v3317
    %v3570 = vpack.c.b16 %v3325, %v3318
    %v3571 = vpack.c.b16 %v3326, %v3319
    %v3572 = vpack.c.b16 %v3334, %v3327
    %v3573 = vpack.c.b16 %v3335, %v3328
    %v3574 = vpack.c.b16 %v3336, %v3329
    %v3575 = vpack.c.b16 %v3337, %v3330
    %v3576 = vpack.c.b16 %v3338, %v3331
    %v3577 = vpack.c.b16 %v3339, %v3332
    %v3578 = vpack.c.b16 %v3340, %v3333
    %v3579 = vpack.c.b16 %v3348, %v3341
    %v3580 = vpack.c.b16 %v3349, %v3342
    %v3581 = vpack.c.b16 %v3350, %v3343
    %v3582 = vpack.c.b16 %v3351, %v3344
    %v3583 = vpack.c.b16 %v3352, %v3345
    %v3584 = vpack.c.b16 %v3353, %v3346
    %v3585 = vpack.c.b16 %v3354, %v3347
    %v3586 = vpack.c.b16 %v3362, %v3355
    %v3587 = vpack.c.b16 %v3363, %v3356
    %v3588 = vpack.c.b16 %v3364, %v3357
    %v3589 = vpack.c.b16 %v3365, %v3358
    %v3590 = vpack.c.b16 %v3366, %v3359
    %v3591 = vpack.c.b16 %v3367, %v3360
    %v3592 = vpack.c.b16 %v3368, %v3361
    %3817 = vmatprep.subr.bf16.mxu0 %v3370
    %3818 = vmatpush1.bf16.msra.mxu0 %v3369
    %3819 = vmatprep.subr.bf16.mxu0 %v3377
    %3820 = vmatpush1.bf16.msra.mxu0 %v3376
    %3821 = vmatprep.subr.bf16.mxu0 %v3384
    %3822 = vmatpush1.bf16.msra.mxu0 %v3383
    %3823 = vmatprep.subr.bf16.mxu0 %v3391
    %3824 = vmatpush1.bf16.msra.mxu0 %v3390
    %3825 = vmatprep.subr.bf16.mxu0 %v3398
    %3826 = vmatpush1.bf16.msra.mxu0 %v3397
    %3827 = vmatprep.subr.bf16.mxu0 %v3405
    %3828 = vmatpush1.bf16.msra.mxu0 %v3404
    %3829 = vmatprep.subr.bf16.mxu0 %v3412
    %3830 = vmatpush1.bf16.msra.mxu0 %v3411
    %3831 = vmatprep.subr.bf16.mxu0 %v3419
    %3832 = vmatpush1.bf16.msra.mxu0 %v3418
    %3833 = vmatprep.subr.bf16.mxu0 %v3426
    %3834 = vmatpush1.bf16.msra.mxu0 %v3425
    %3835 = vmatprep.subr.bf16.mxu0 %v3433
    %3836 = vmatpush1.bf16.msra.mxu0 %v3432
    %3837 = vmatprep.subr.bf16.mxu0 %v3440
    %3838 = vmatpush1.bf16.msra.mxu0 %v3439
    %3839 = vmatprep.subr.bf16.mxu0 %v3447
    %3840 = vmatpush1.bf16.msra.mxu0 %v3446
    %3841 = vmatprep.subr.bf16.mxu0 %v3454
    %3842 = vmatpush1.bf16.msra.mxu0 %v3453
    %3843 = vmatprep.subr.bf16.mxu0 %v3461
    %3844 = vmatpush1.bf16.msra.mxu0 %v3460
    %3845 = vmatprep.subr.bf16.mxu0 %v3468
    %3846 = vmatpush1.bf16.msra.mxu0 %v3467
    %3847 = vmatprep.subr.bf16.mxu0 %v3475
    %3848 = vmatpush1.bf16.msra.mxu0 %v3474
    %3849 = vmatprep.mubr.bf16.mxu0 %v2369
    %3850 = vmatmul.mubr.bf16.gmra.mrb[0].mxu0 %v2368
    %v3851 = vpop.f32.mrb[0].mxu0
    %v3852 = vadd.f32 %v2633, %v3851
    %v3853 = vpop.f32.mrb[0].mxu0
    %v3854 = vadd.f32 %v2637, %v3853
    %v3855 = vpop.f32.mrb[0].mxu0
    %v3856 = vpop.f32.mrb[0].mxu0
    %3857 = vdwg.mxu0
    %3858 = vmatprep.subr.bf16.mxu0 %v3482
    %3859 = vmatpush1.bf16.msra.mxu0 %v3481
    %3860 = vmatprep.subr.bf16.mxu0 %v3489
    %3861 = vmatpush1.bf16.msra.mxu0 %v3488
    %3862 = vmatprep.subr.bf16.mxu0 %v3496
    %3863 = vmatpush1.bf16.msra.mxu0 %v3495
    %3864 = vmatprep.subr.bf16.mxu0 %v3503
    %3865 = vmatpush1.bf16.msra.mxu0 %v3502
    %3866 = vmatprep.subr.bf16.mxu0 %v3510
    %3867 = vmatpush1.bf16.msra.mxu0 %v3509
    %3868 = vmatprep.subr.bf16.mxu0 %v3517
    %3869 = vmatpush1.bf16.msra.mxu0 %v3516
    %3870 = vmatprep.subr.bf16.mxu0 %v3524
    %3871 = vmatpush1.bf16.msra.mxu0 %v3523
    %3872 = vmatprep.subr.bf16.mxu0 %v3531
    %3873 = vmatpush1.bf16.msra.mxu0 %v3530
    %3874 = vmatprep.subr.bf16.mxu0 %v3538
    %3875 = vmatpush1.bf16.msra.mxu0 %v3537
    %3876 = vmatprep.subr.bf16.mxu0 %v3545
    %3877 = vmatpush1.bf16.msra.mxu0 %v3544
    %3878 = vmatprep.subr.bf16.mxu0 %v3552
    %3879 = vmatpush1.bf16.msra.mxu0 %v3551
    %3880 = vmatprep.subr.bf16.mxu0 %v3559
    %3881 = vmatpush1.bf16.msra.mxu0 %v3558
    %3882 = vmatprep.subr.bf16.mxu0 %v3566
    %3883 = vmatpush1.bf16.msra.mxu0 %v3565
    %3884 = vmatprep.subr.bf16.mxu0 %v3573
    %3885 = vmatpush1.bf16.msra.mxu0 %v3572
    %3886 = vmatprep.subr.bf16.mxu0 %v3580
    %3887 = vmatpush1.bf16.msra.mxu0 %v3579
    %3888 = vmatprep.subr.bf16.mxu0 %v3587
    %3889 = vmatpush1.bf16.msra.mxu0 %v3586
    %3890 = vmatprep.mubr.bf16.mxu0 %v2371
    %3891 = vmatmul.mubr.bf16.gmra.mrb[0].mxu0 %v2370
    %v3892 = vpop.f32.mrb[0].mxu0
    %v3893 = vadd.f32 %v3852, %v3892
    %v3894 = vpop.f32.mrb[0].mxu0
    %v3895 = vadd.f32 %v3854, %v3894
    %v3896 = vpop.f32.mrb[0].mxu0
    %v3897 = vpop.f32.mrb[0].mxu0
    %3898 = vdwg.mxu0
    %3899 = vmatprep.subr.bf16.mxu0 %v3372
    %3900 = vmatpush1.bf16.msra.mxu0 %v3371
    %3901 = vmatprep.subr.bf16.mxu0 %v3379
    %3902 = vmatpush1.bf16.msra.mxu0 %v3378
    %3903 = vmatprep.subr.bf16.mxu0 %v3386
    %3904 = vmatpush1.bf16.msra.mxu0 %v3385
    %3905 = vmatprep.subr.bf16.mxu0 %v3393
    %3906 = vmatpush1.bf16.msra.mxu0 %v3392
    %3907 = vmatprep.subr.bf16.mxu0 %v3400
    %3908 = vmatpush1.bf16.msra.mxu0 %v3399
    %3909 = vmatprep.subr.bf16.mxu0 %v3407
    %3910 = vmatpush1.bf16.msra.mxu0 %v3406
    %3911 = vmatprep.subr.bf16.mxu0 %v3414
    %3912 = vmatpush1.bf16.msra.mxu0 %v3413
    %3913 = vmatprep.subr.bf16.mxu0 %v3421
    %3914 = vmatpush1.bf16.msra.mxu0 %v3420
    %3915 = vmatprep.subr.bf16.mxu0 %v3428
    %3916 = vmatpush1.bf16.msra.mxu0 %v3427
    %3917 = vmatprep.subr.bf16.mxu0 %v3435
    %3918 = vmatpush1.bf16.msra.mxu0 %v3434
    %3919 = vmatprep.subr.bf16.mxu0 %v3442
    %3920 = vmatpush1.bf16.msra.mxu0 %v3441
    %3921 = vmatprep.subr.bf16.mxu0 %v3449
    %3922 = vmatpush1.bf16.msra.mxu0 %v3448
    %3923 = vmatprep.subr.bf16.mxu0 %v3456
    %3924 = vmatpush1.bf16.msra.mxu0 %v3455
    %3925 = vmatprep.subr.bf16.mxu0 %v3463
    %3926 = vmatpush1.bf16.msra.mxu0 %v3462
    %3927 = vmatprep.subr.bf16.mxu0 %v3470
    %3928 = vmatpush1.bf16.msra.mxu0 %v3469
    %3929 = vmatprep.subr.bf16.mxu0 %v3477
    %3930 = vmatpush1.bf16.msra.mxu0 %v3476
    %3931 = vmatprep.mubr.bf16.mxu0 %v2369
    %3932 = vmatmul.mubr.bf16.gmra.mrb[0].mxu0 %v2368
    %v3933 = vpop.f32.mrb[0].mxu0
    %v3934 = vadd.f32 %v2641, %v3933
    %v3935 = vpop.f32.mrb[0].mxu0
    %v3936 = vadd.f32 %v2645, %v3935
    %v3937 = vpop.f32.mrb[0].mxu0
    %v3938 = vpop.f32.mrb[0].mxu0
    %3939 = vdwg.mxu0
    %3940 = vmatprep.subr.bf16.mxu0 %v3484
    %3941 = vmatpush1.bf16.msra.mxu0 %v3483
    %3942 = vmatprep.subr.bf16.mxu0 %v3491
    %3943 = vmatpush1.bf16.msra.mxu0 %v3490
    %3944 = vmatprep.subr.bf16.mxu0 %v3498
    %3945 = vmatpush1.bf16.msra.mxu0 %v3497
    %3946 = vmatprep.subr.bf16.mxu0 %v3505
    %3947 = vmatpush1.bf16.msra.mxu0 %v3504
    %3948 = vmatprep.subr.bf16.mxu0 %v3512
    %3949 = vmatpush1.bf16.msra.mxu0 %v3511
    %3950 = vmatprep.subr.bf16.mxu0 %v3519
    %3951 = vmatpush1.bf16.msra.mxu0 %v3518
    %3952 = vmatprep.subr.bf16.mxu0 %v3526
    %3953 = vmatpush1.bf16.msra.mxu0 %v3525
    %3954 = vmatprep.subr.bf16.mxu0 %v3533
    %3955 = vmatpush1.bf16.msra.mxu0 %v3532
    %3956 = vmatprep.subr.bf16.mxu0 %v3540
    %3957 = vmatpush1.bf16.msra.mxu0 %v3539
    %3958 = vmatprep.subr.bf16.mxu0 %v3547
    %3959 = vmatpush1.bf16.msra.mxu0 %v3546
    %3960 = vmatprep.subr.bf16.mxu0 %v3554
    %3961 = vmatpush1.bf16.msra.mxu0 %v3553
    %3962 = vmatprep.subr.bf16.mxu0 %v3561
    %3963 = vmatpush1.bf16.msra.mxu0 %v3560
    %3964 = vmatprep.subr.bf16.mxu0 %v3568
    %3965 = vmatpush1.bf16.msra.mxu0 %v3567
    %3966 = vmatprep.subr.bf16.mxu0 %v3575
    %3967 = vmatpush1.bf16.msra.mxu0 %v3574
    %3968 = vmatprep.subr.bf16.mxu0 %v3582
    %3969 = vmatpush1.bf16.msra.mxu0 %v3581
    %3970 = vmatprep.subr.bf16.mxu0 %v3589
    %3971 = vmatpush1.bf16.msra.mxu0 %v3588
    %3972 = vmatprep.mubr.bf16.mxu0 %v2371
    %3973 = vmatmul.mubr.bf16.gmra.mrb[0].mxu0 %v2370
    %v3974 = vpop.f32.mrb[0].mxu0
    %v3975 = vadd.f32 %v3934, %v3974
    %v3976 = vpop.f32.mrb[0].mxu0
    %v3977 = vadd.f32 %v3936, %v3976
    %v3978 = vpop.f32.mrb[0].mxu0
    %v3979 = vpop.f32.mrb[0].mxu0
    %3980 = vdwg.mxu0
    %3981 = vmatprep.subr.bf16.mxu0 %v3374
    %3982 = vmatpush1.bf16.msra.mxu0 %v3373
    %3983 = vmatprep.subr.bf16.mxu0 %v3381
    %3984 = vmatpush1.bf16.msra.mxu0 %v3380
    %3985 = vmatprep.subr.bf16.mxu0 %v3388
    %3986 = vmatpush1.bf16.msra.mxu0 %v3387
    %3987 = vmatprep.subr.bf16.mxu0 %v3395
    %3988 = vmatpush1.bf16.msra.mxu0 %v3394
    %3989 = vmatprep.subr.bf16.mxu0 %v3402
    %3990 = vmatpush1.bf16.msra.mxu0 %v3401
    %3991 = vmatprep.subr.bf16.mxu0 %v3409
    %3992 = vmatpush1.bf16.msra.mxu0 %v3408
    %3993 = vmatprep.subr.bf16.mxu0 %v3416
    %3994 = vmatpush1.bf16.msra.mxu0 %v3415
    %3995 = vmatprep.subr.bf16.mxu0 %v3423
    %3996 = vmatpush1.bf16.msra.mxu0 %v3422
    %3997 = vmatprep.subr.bf16.mxu0 %v3430
    %3998 = vmatpush1.bf16.msra.mxu0 %v3429
    %3999 = vmatprep.subr.bf16.mxu0 %v3437
    %4000 = vmatpush1.bf16.msra.mxu0 %v3436
    %4001 = vmatprep.subr.bf16.mxu0 %v3444
    %4002 = vmatpush1.bf16.msra.mxu0 %v3443
    %4003 = vmatprep.subr.bf16.mxu0 %v3451
    %4004 = vmatpush1.bf16.msra.mxu0 %v3450
    %4005 = vmatprep.subr.bf16.mxu0 %v3458
    %4006 = vmatpush1.bf16.msra.mxu0 %v3457
    %4007 = vmatprep.subr.bf16.mxu0 %v3465
    %4008 = vmatpush1.bf16.msra.mxu0 %v3464
    %4009 = vmatprep.subr.bf16.mxu0 %v3472
    %4010 = vmatpush1.bf16.msra.mxu0 %v3471
    %4011 = vmatprep.subr.bf16.mxu0 %v3479
    %4012 = vmatpush1.bf16.msra.mxu0 %v3478
    %4013 = vmatprep.mubr.bf16.mxu0 %v2369
    %4014 = vmatmul.mubr.bf16.gmra.mrb[0].mxu0 %v2368
    %v4015 = vpop.f32.mrb[0].mxu0
    %v4016 = vadd.f32 %v2649, %v4015
    %v4017 = vpop.f32.mrb[0].mxu0
    %v4018 = vadd.f32 %v2653, %v4017
    %v4019 = vpop.f32.mrb[0].mxu0
    %v4020 = vpop.f32.mrb[0].mxu0
    %4021 = vdwg.mxu0
    %4022 = vmatprep.subr.bf16.mxu0 %v3486
    %4023 = vmatpush1.bf16.msra.mxu0 %v3485
    %4024 = vmatprep.subr.bf16.mxu0 %v3493
    %4025 = vmatpush1.bf16.msra.mxu0 %v3492
    %4026 = vmatprep.subr.bf16.mxu0 %v3500
    %4027 = vmatpush1.bf16.msra.mxu0 %v3499
    %4028 = vmatprep.subr.bf16.mxu0 %v3507
    %4029 = vmatpush1.bf16.msra.mxu0 %v3506
    %4030 = vmatprep.subr.bf16.mxu0 %v3514
    %4031 = vmatpush1.bf16.msra.mxu0 %v3513
    %4032 = vmatprep.subr.bf16.mxu0 %v3521
    %4033 = vmatpush1.bf16.msra.mxu0 %v3520
    %4034 = vmatprep.subr.bf16.mxu0 %v3528
    %4035 = vmatpush1.bf16.msra.mxu0 %v3527
    %4036 = vmatprep.subr.bf16.mxu0 %v3535
    %4037 = vmatpush1.bf16.msra.mxu0 %v3534
    %4038 = vmatprep.subr.bf16.mxu0 %v3542
    %4039 = vmatpush1.bf16.msra.mxu0 %v3541
    %4040 = vmatprep.subr.bf16.mxu0 %v3549
    %4041 = vmatpush1.bf16.msra.mxu0 %v3548
    %4042 = vmatprep.subr.bf16.mxu0 %v3556
    %4043 = vmatpush1.bf16.msra.mxu0 %v3555
    %4044 = vmatprep.subr.bf16.mxu0 %v3563
    %4045 = vmatpush1.bf16.msra.mxu0 %v3562
    %4046 = vmatprep.subr.bf16.mxu0 %v3570
    %4047 = vmatpush1.bf16.msra.mxu0 %v3569
    %4048 = vmatprep.subr.bf16.mxu0 %v3577
    %4049 = vmatpush1.bf16.msra.mxu0 %v3576
    %4050 = vmatprep.subr.bf16.mxu0 %v3584
    %4051 = vmatpush1.bf16.msra.mxu0 %v3583
    %4052 = vmatprep.subr.bf16.mxu0 %v3591
    %4053 = vmatpush1.bf16.msra.mxu0 %v3590
    %4054 = vmatprep.mubr.bf16.mxu0 %v2371
    %4055 = vmatmul.mubr.bf16.gmra.mrb[0].mxu0 %v2370
    %v4056 = vpop.f32.mrb[0].mxu0
    %v4057 = vadd.f32 %v4016, %v4056
    %v4058 = vpop.f32.mrb[0].mxu0
    %v4059 = vadd.f32 %v4018, %v4058
    %v4060 = vpop.f32.mrb[0].mxu0
    %v4061 = vpop.f32.mrb[0].mxu0
    %4062 = vdwg.mxu0
    %4063 = vmatprep.subr.bf16.mxu0 0
    %4064 = vmatpush1.bf16.msra.mxu0 %v3375
    %4065 = vmatprep.subr.bf16.mxu0 0
    %4066 = vmatpush1.bf16.msra.mxu0 %v3382
    %4067 = vmatprep.subr.bf16.mxu0 0
    %4068 = vmatpush1.bf16.msra.mxu0 %v3389
    %4069 = vmatprep.subr.bf16.mxu0 0
    %4070 = vmatpush1.bf16.msra.mxu0 %v3396
    %4071 = vmatprep.subr.bf16.mxu0 0
    %4072 = vmatpush1.bf16.msra.mxu0 %v3403
    %4073 = vmatprep.subr.bf16.mxu0 0
    %4074 = vmatpush1.bf16.msra.mxu0 %v3410
    %4075 = vmatprep.subr.bf16.mxu0 0
    %4076 = vmatpush1.bf16.msra.mxu0 %v3417
    %4077 = vmatprep.subr.bf16.mxu0 0
    %4078 = vmatpush1.bf16.msra.mxu0 %v3424
    %4079 = vmatprep.subr.bf16.mxu0 0
    %4080 = vmatpush1.bf16.msra.mxu0 %v3431
    %4081 = vmatprep.subr.bf16.mxu0 0
    %4082 = vmatpush1.bf16.msra.mxu0 %v3438
    %4083 = vmatprep.subr.bf16.mxu0 0
    %4084 = vmatpush1.bf16.msra.mxu0 %v3445
    %4085 = vmatprep.subr.bf16.mxu0 0
    %4086 = vmatpush1.bf16.msra.mxu0 %v3452
    %4087 = vmatprep.subr.bf16.mxu0 0
    %4088 = vmatpush1.bf16.msra.mxu0 %v3459
    %4089 = vmatprep.subr.bf16.mxu0 0
    %4090 = vmatpush1.bf16.msra.mxu0 %v3466
    %4091 = vmatprep.subr.bf16.mxu0 0
    %4092 = vmatpush1.bf16.msra.mxu0 %v3473
    %4093 = vmatprep.subr.bf16.mxu0 0
    %4094 = vmatpush1.bf16.msra.mxu0 %v3480
    %4095 = vmatprep.mubr.bf16.mxu0 %v2369
    %4096 = vmatmul.mubr.bf16.gmra.mrb[0].mxu0 %v2368
    %v4097 = vpop.f32.mrb[0].mxu0
    %v4098 = vadd.f32 %v2657, %v4097
    %v4099 = vpop.f32.mrb[0].mxu0
    %v4100 = vpop.f32.mrb[0].mxu0
    %v4101 = vpop.f32.mrb[0].mxu0
    %4102 = vdwg.mxu0
    %4103 = vmatprep.subr.bf16.mxu0 0
    %4104 = vmatpush1.bf16.msra.mxu0 %v3487
    %4105 = vmatprep.subr.bf16.mxu0 0
    %4106 = vmatpush1.bf16.msra.mxu0 %v3494
    %4107 = vmatprep.subr.bf16.mxu0 0
    %4108 = vmatpush1.bf16.msra.mxu0 %v3501
    %4109 = vmatprep.subr.bf16.mxu0 0
    %4110 = vmatpush1.bf16.msra.mxu0 %v3508
    %4111 = vmatprep.subr.bf16.mxu0 0
    %4112 = vmatpush1.bf16.msra.mxu0 %v3515
    %4113 = vmatprep.subr.bf16.mxu0 0
    %4114 = vmatpush1.bf16.msra.mxu0 %v3522
    %4115 = vmatprep.subr.bf16.mxu0 0
    %4116 = vmatpush1.bf16.msra.mxu0 %v3529
    %4117 = vmatprep.subr.bf16.mxu0 0
    %4118 = vmatpush1.bf16.msra.mxu0 %v3536
    %4119 = vmatprep.subr.bf16.mxu0 0
    %4120 = vmatpush1.bf16.msra.mxu0 %v3543
    %4121 = vmatprep.subr.bf16.mxu0 0
    %4122 = vmatpush1.bf16.msra.mxu0 %v3550
    %4123 = vmatprep.subr.bf16.mxu0 0
    %4124 = vmatpush1.bf16.msra.mxu0 %v3557
    %4125 = vmatprep.subr.bf16.mxu0 0
    %4126 = vmatpush1.bf16.msra.mxu0 %v3564
    %4127 = vmatprep.subr.bf16.mxu0 0
    %4128 = vmatpush1.bf16.msra.mxu0 %v3571
    %4129 = vmatprep.subr.bf16.mxu0 0
    %4130 = vmatpush1.bf16.msra.mxu0 %v3578
    %4131 = vmatprep.subr.bf16.mxu0 0
    %4132 = vmatpush1.bf16.msra.mxu0 %v3585
    %4133 = vmatprep.subr.bf16.mxu0 0
    %4134 = vmatpush1.bf16.msra.mxu0 %v3592
    %4135 = vmatprep.mubr.bf16.mxu0 %v2371
    %4136 = vmatmul.mubr.bf16.gmra.mrb[0].mxu0 %v2370
    %v4137 = vpop.f32.mrb[0].mxu0
    %v4138 = vadd.f32 %v4098, %v4137
    %v4139 = vpop.f32.mrb[0].mxu0
    %v4140 = vpop.f32.mrb[0].mxu0
    %v4141 = vpop.f32.mrb[0].mxu0
    %4142 = vdwg.mxu0
    %4143 = vst [vmem:[#allocation11] sm:$0xff] %v3893
    %4144 = vst [vmem:[#allocation11 + $0x8] sm:$0xff] %v3895
    %4145 = vst [vmem:[#allocation11 + $0x10] sm:$0xff] %v3975
    %4146 = vst [vmem:[#allocation11 + $0x18] sm:$0xff] %v3977
    %4147 = vst [vmem:[#allocation11 + $0x20] sm:$0xff] %v4057
    %4148 = vst [vmem:[#allocation11 + $0x28] sm:$0xff] %v4059
    %4149 = vst [vmem:[#allocation11 + $0x30] sm:$0xff] %v4138
    // Predicated region
    $region66: #{tpu_custom_call.1} parent=1 // pred_check
      _
    $region67: #{tpu_custom_call.1} parent=1 // pred_check_branch
      %4151 = sbr.rel (0) target = $region69
    $region68: #{tpu_custom_call.1} parent=1 // pred_region
      %s4153 = ssub.s32 896, 896
      %4154 = vsyncadd [#allocation4], %s4153
      %s4156 = sshll.u32 [#allocation11], 4
      %s4157 = int_to_ptr.vmem [resolvable:$true] %s4156
      %4159 = dma.vmem_to_hbm [thread:$0]  %s4157, 896, %s11, [#allocation4]
    $region69: #{tpu_custom_call.1} parent=1 // pred_fallthru
      _
    // Predicated region
    $region70: #{tpu_custom_call.1} parent=1 // pred_check
      _
    $region71: #{tpu_custom_call.1} parent=1 // pred_check_branch
      %4161 = sbr.rel (0) target = $region73
    $region72: #{tpu_custom_call.1} parent=1 // pred_region
      %4162 = dma.done [#allocation4], 896
    $region73: #{tpu_custom_call.1} parent=1 // pred_fallthru
      _
    %4163 = vsyncpa [#allocation3], 1
    %4164 = vsyncpa [#allocation6], 1
    %4165 = vsyncpa [#allocation9], 1
    %4166 = vsyncpa [#allocation4], 1

</llo_original>
